<compile_context>
chip_gen: v5e
topology: v5e:2x2
jax: 0.10.0
libtpu: 0.0.40
codegen_flags: <defaults>
</compile_context>

<pallas_src>
import functools

import jax
import jax.numpy as jnp
from jax.experimental import pallas as pl
from jax.experimental.pallas import tpu as pltpu


# ----------------------------- fused kernel --------------------------------


def _activate(z, act):
    if act == "hs":                                   # h_swish: x * relu6(x+3)/6
        return z * (jnp.clip(z + 3.0, 0.0, 6.0) * (1.0 / 6.0))
    return jnp.maximum(z, 0.0)                        # ReLU


def fused_inverted_residual_kernel(
        mask_ref, x_ref,
        w_exp_ref, b1_ref,
        w_dw_ref, b2_ref,
        w_se1_ref, bse1_ref, w_se2_ref, bse2_ref,
        w_pt_ref, b3_ref,
        o_ref, *,
        k, stride, pad, H, W, H_out, W_out, act, se, use_connect):
    Hp = x_ref.shape[1]
    Wq = x_ref.shape[2]
    Cin = x_ref.shape[3]
    exp = w_exp_ref.shape[1]
    Cout = o_ref.shape[3]

    xp = x_ref[0]                                     # (Hp, Wq, Cin), native dtype

    # ---- expand: 1x1 conv (BN scale pre-folded) + shift + activation -------
    rows = xp.reshape(Hp * Wq, Cin)                   # layout-preserving (Wq % 8 == 0)
    z = jnp.dot(rows, w_exp_ref[...], preferred_element_type=jnp.float32)
    z = _activate(z + b1_ref[...], act)               # (Hp*Wq, exp) f32
    # Zero the halo (and the alignment over-pad): matches Conv2d zero padding.
    zp = z.reshape(Hp, Wq, exp) * mask_ref[...]       # mask is (Hp, Wq, 1) of 0/1

    # ---- depthwise kxk conv + BN shift --------------------------------------
    acc = jnp.zeros((H_out, W_out, exp), jnp.float32)
    for kh in range(k):
        for kw in range(k):
            if stride == 1:
                patch = zp[kh:kh + H_out, kw:kw + W_out, :]
            else:
                patch = zp[kh:kh + stride * (H_out - 1) + 1:stride,
                           kw:kw + stride * (W_out - 1) + 1:stride, :]
            acc = acc + patch * w_dw_ref[kh * k + kw, :][None, None, :]
    dw = acc + b2_ref[...][None]                      # (H_out, W_out, exp) f32
    dw_rows = dw.reshape(H_out * W_out, exp)

    # ---- Squeeze-and-Excite: compute the per-channel gate only -------------
    if se:
        pooled = jnp.sum(dw_rows, axis=0, keepdims=True) * (1.0 / (H_out * W_out))
        hdn = jnp.dot(pooled, w_se1_ref[...], preferred_element_type=jnp.float32)
        hdn = jnp.maximum(hdn + bse1_ref[...], 0.0)
        gate = jnp.dot(hdn, w_se2_ref[...], preferred_element_type=jnp.float32)
        gate = jnp.clip(gate + bse2_ref[...] + 3.0, 0.0, 6.0) * (1.0 / 6.0)  # h_sigmoid
        dw_rows = dw_rows * gate                      # (HW, exp) * (1, exp)

    # ---- project: 1x1 conv (BN scale pre-folded) + shift + act (+ residual) -
    y = jnp.dot(dw_rows, w_pt_ref[...], preferred_element_type=jnp.float32)
    y = _activate(y + b3_ref[...], act)
    if use_connect:                                   # stride==1 and Cin==Cout
        x_in = xp[pad:pad + H, pad:pad + W, :].reshape(H * W, Cin)
        y = y + x_in.astype(jnp.float32)
    o_ref[0] = y.reshape(H_out, W_out, Cout).astype(o_ref.dtype)


# ----------------------------- wrapper --------------------------------------


def inverted_residual_block(x_nchw, params, *, kernel_size, stride, NL, SE):
    N, Cin, H, W = x_nchw.shape
    act = "hs" if NL == "HS" else "relu"
    exp_size = params["w_exp"].shape[1]
    Cout = params["w_pt"].shape[1]
    hidden = params["w_se1"].shape[1]

    pad = (kernel_size - 1) // 2
    H_out = (H + 2 * pad - kernel_size) // stride + 1
    W_out = (W + 2 * pad - kernel_size) // stride + 1
    Hp = H + 2 * pad
    Wp = W + 2 * pad
    Wq = ((Wp + 7) // 8) * 8                # keep the sublane dim 8-aligned
    use_connect = (stride == 1) and (Cin == Cout)

    # NHWC + spatial zero pad of the *small* Cin-wide input (extra right-pad to Wq).
    x = jnp.transpose(x_nchw, (0, 2, 3, 1))
    xp = jnp.pad(x, ((0, 0), (pad, pad), (pad, Wq - W - pad), (0, 0)))

    # 0/1 interior mask for the expanded activation's halo (tiny constant).
    ih = jnp.arange(Hp)[:, None]
    iw = jnp.arange(Wq)[None, :]
    interior = (ih >= pad) & (ih < pad + H) & (iw >= pad) & (iw < pad + W)
    mask = interior.astype(jnp.float32)[:, :, None]                  # (Hp, Wq, 1)

    kernel = functools.partial(
        fused_inverted_residual_kernel,
        k=kernel_size, stride=stride, pad=pad, H=H, W=W,
        H_out=H_out, W_out=W_out, act=act, se=SE, use_connect=use_connect)

    def const(shape):
        return pl.BlockSpec(shape, lambda b: (0,) * len(shape))

    out = pl.pallas_call(
        kernel,
        out_shape=jax.ShapeDtypeStruct((N, H_out, W_out, Cout), x.dtype),
        grid=(N,),
        in_specs=[
            const((Hp, Wq, 1)),                                       # halo mask
            pl.BlockSpec((1, Hp, Wq, Cin), lambda b: (b, 0, 0, 0)),   # padded input
            const((Cin, exp_size)), const((1, exp_size)),             # expand conv
            const((kernel_size * kernel_size, exp_size)), const((1, exp_size)),  # dw conv
            const((exp_size, hidden)), const((1, hidden)),            # SE fc1
            const((hidden, exp_size)), const((1, exp_size)),          # SE fc2
            const((exp_size, Cout)), const((1, Cout)),                # project conv
        ],
        out_specs=pl.BlockSpec((1, H_out, W_out, Cout), lambda b: (b, 0, 0, 0)),
        compiler_params=pltpu.CompilerParams(dimension_semantics=("parallel",)),
    )(mask, xp,
      params["w_exp"], params["b1"],
      params["w_dw"], params["b2"],
      params["w_se1"], params["b_se1"], params["w_se2"], params["b_se2"],
      params["w_pt"], params["b3"])

    return jnp.transpose(out, (0, 3, 1, 2))            # back to NCHW


# ----------------------------- params ---------------------------------------


def make_params(key, in_channels, out_channels, exp_size, kernel_size, divide=4, eps=1e-5):
    ks = jax.random.split(key, 24)
    n = lambda k, shape, s=0.1: s * jax.random.normal(k, shape, jnp.float32)

    def fold(w, conv_bias, gamma, beta, mean, var):
        # Fold BN scale into the conv weight's output-channel (last) axis;
        # only the per-channel shift remains for the kernel epilogue.
        scale = gamma / jnp.sqrt(var + eps)
        w_f = w * scale[None, :]
        bias = conv_bias if conv_bias is not None else 0.0
        shift = (bias - mean) * scale + beta
        return w_f, shift.reshape(1, -1)

    # expand 1x1 conv (bias=False) + BN
    w_exp, b1 = fold(n(ks[0], (in_channels, exp_size)), None,
                     1.0 + n(ks[1], (exp_size,)), n(ks[2], (exp_size,)),
                     n(ks[3], (exp_size,)), 1.0 + jnp.abs(n(ks[4], (exp_size,))))

    # depthwise kxk conv (bias=True) + BN  -- weight stored as (k*k, C)
    w_dw, b2 = fold(n(ks[5], (kernel_size * kernel_size, exp_size)), n(ks[6], (exp_size,)),
                    1.0 + n(ks[7], (exp_size,)), n(ks[8], (exp_size,)),
                    n(ks[9], (exp_size,)), 1.0 + jnp.abs(n(ks[10], (exp_size,))))

    # SqueezeBlock
    hidden = exp_size // divide
    w_se1 = n(ks[11], (exp_size, hidden))
    b_se1 = n(ks[12], (hidden,)).reshape(1, -1)
    w_se2 = n(ks[13], (hidden, exp_size))
    b_se2 = n(ks[14], (exp_size,)).reshape(1, -1)

    # pointwise 1x1 conv (bias=True) + BN
    w_pt, b3 = fold(n(ks[15], (exp_size, out_channels)), n(ks[16], (out_channels,)),
                    1.0 + n(ks[17], (out_channels,)), n(ks[18], (out_channels,)),
                    n(ks[19], (out_channels,)), 1.0 + jnp.abs(n(ks[20], (out_channels,))))

    return dict(w_exp=w_exp, b1=b1, w_dw=w_dw, b2=b2,
                w_se1=w_se1, b_se1=b_se1, w_se2=w_se2, b_se2=b_se2,
                w_pt=w_pt, b3=b3)


# ----------------------------- pure-JAX reference ----------------------------


def _reference(x_nchw, p, *, kernel_size, stride, NL, SE):
    N, Cin, H, W = x_nchw.shape
    k = kernel_size
    pad = (k - 1) // 2
    act = ((lambda z: z * jnp.clip(z + 3.0, 0.0, 6.0) / 6.0) if NL == "HS"
           else (lambda z: jnp.maximum(z, 0.0)))
    x = jnp.transpose(x_nchw, (0, 2, 3, 1)).astype(jnp.float32)
    h1 = act(jnp.einsum("nhwc,ce->nhwe", x, p["w_exp"]) + p["b1"][0])
    hp = jnp.pad(h1, ((0, 0), (pad, pad), (pad, pad), (0, 0)))
    H_out = (H + 2 * pad - k) // stride + 1
    W_out = (W + 2 * pad - k) // stride + 1
    dw = jnp.zeros((N, H_out, W_out, h1.shape[-1]), jnp.float32)
    for kh in range(k):
        for kw in range(k):
            patch = hp[:, kh:kh + stride * (H_out - 1) + 1:stride,
                       kw:kw + stride * (W_out - 1) + 1:stride, :]
            dw = dw + patch * p["w_dw"][kh * k + kw]
    dw = dw + p["b2"][0]
    if SE:
        pooled = dw.mean(axis=(1, 2))
        hdn = jnp.maximum(pooled @ p["w_se1"] + p["b_se1"][0], 0.0)
        gate = jnp.clip(hdn @ p["w_se2"] + p["b_se2"][0] + 3.0, 0.0, 6.0) / 6.0
        dw = dw * gate[:, None, None, :]
    y = act(jnp.einsum("nhwe,eo->nhwo", dw, p["w_pt"]) + p["b3"][0])
    if stride == 1 and Cin == p["w_pt"].shape[1]:
        y = y + x
    return jnp.transpose(y, (0, 3, 1, 2))


# ----------------------------- main ------------------------------------------


if __name__ == "__main__":
    jax.config.update("jax_default_matmul_precision", "highest")

    key = jax.random.PRNGKey(0)
    kx, kp = jax.random.split(key)

    N, Cin, H, W = 2, 4, 16, 16
    Cout, exp_size, kernel_size, stride = 4, 8, 3, 1    # use_connect == True

    x = jax.random.normal(kx, (N, Cin, H, W), jnp.float32)   # NCHW, like PyTorch
    params = make_params(kp, Cin, Cout, exp_size, kernel_size)

    out = inverted_residual_block(x, params, kernel_size=kernel_size, stride=stride,
                                  NL="HS", SE=True)
    out = jax.block_until_ready(out)

    assert out.shape == (N, Cout, H, W), out.shape
    assert bool(jnp.all(jnp.isfinite(out)))

    ref = _reference(x, params, kernel_size=kernel_size, stride=stride, NL="HS", SE=True)
    assert bool(jnp.allclose(out, ref, atol=2e-2, rtol=2e-2)), \
        float(jnp.max(jnp.abs(out - ref)))

    print("KERNEL_OK")
</pallas_src>

<mosaic_0001>
module attributes {stable_mosaic.version = 11 : i64} {
  func.func @fused_inverted_residual_kernel(%arg0: i32, %arg1: memref<18x24x1xf32, #tpu.memory_space<vmem>>, %arg2: memref<1x18x24x4xf32, #tpu.memory_space<vmem>>, %arg3: memref<4x8xf32, #tpu.memory_space<vmem>>, %arg4: memref<1x8xf32, #tpu.memory_space<vmem>>, %arg5: memref<9x8xf32, #tpu.memory_space<vmem>>, %arg6: memref<1x8xf32, #tpu.memory_space<vmem>>, %arg7: memref<8x2xf32, #tpu.memory_space<vmem>>, %arg8: memref<1x2xf32, #tpu.memory_space<vmem>>, %arg9: memref<2x8xf32, #tpu.memory_space<vmem>>, %arg10: memref<1x8xf32, #tpu.memory_space<vmem>>, %arg11: memref<8x4xf32, #tpu.memory_space<vmem>>, %arg12: memref<1x4xf32, #tpu.memory_space<vmem>>, %arg13: memref<1x16x16x4xf32, #tpu.memory_space<vmem>>) attributes {dimension_semantics = [#tpu.dimension_semantics<parallel>], iteration_bounds = array<i64: 2>, scalar_prefetch = 0 : i64, scratch_operands = 0 : i64, tpu.core_type = #tpu.core_type<tc>, window_params = [{pipeline_mode = #tpu.pipeline_mode<synchronous>, transform_indices = @transform_0, window_bounds = array<i64: 18, 24, 1>}, {transform_indices = @transform_1, window_bounds = array<i64: 1, 18, 24, 4>}, {pipeline_mode = #tpu.pipeline_mode<synchronous>, transform_indices = @transform_2, window_bounds = array<i64: 4, 8>}, {pipeline_mode = #tpu.pipeline_mode<synchronous>, transform_indices = @transform_3, window_bounds = array<i64: 1, 8>}, {pipeline_mode = #tpu.pipeline_mode<synchronous>, transform_indices = @transform_4, window_bounds = array<i64: 9, 8>}, {pipeline_mode = #tpu.pipeline_mode<synchronous>, transform_indices = @transform_5, window_bounds = array<i64: 1, 8>}, {pipeline_mode = #tpu.pipeline_mode<synchronous>, transform_indices = @transform_6, window_bounds = array<i64: 8, 2>}, {pipeline_mode = #tpu.pipeline_mode<synchronous>, transform_indices = @transform_7, window_bounds = array<i64: 1, 2>}, {pipeline_mode = #tpu.pipeline_mode<synchronous>, transform_indices = @transform_8, window_bounds = array<i64: 2, 8>}, {pipeline_mode = #tpu.pipeline_mode<synchronous>, transform_indices = @transform_9, window_bounds = array<i64: 1, 8>}, {pipeline_mode = #tpu.pipeline_mode<synchronous>, transform_indices = @transform_10, window_bounds = array<i64: 8, 4>}, {pipeline_mode = #tpu.pipeline_mode<synchronous>, transform_indices = @transform_11, window_bounds = array<i64: 1, 4>}, {transform_indices = @transform_12, window_bounds = array<i64: 1, 16, 16, 4>}]} {
    %c0 = arith.constant 0 : index
    %c0_0 = arith.constant 0 : index
    %c0_1 = arith.constant 0 : index
    %c0_2 = arith.constant 0 : index
    %0 = vector.load %arg2[%c0, %c0_0, %c0_1, %c0_2] : memref<1x18x24x4xf32, #tpu.memory_space<vmem>>, vector<1x18x24x4xf32>
    %1 = vector.shape_cast %0 : vector<1x18x24x4xf32> to vector<18x24x4xf32>
    %2 = vector.shape_cast %1 : vector<18x24x4xf32> to vector<432x4xf32>
    %c0_3 = arith.constant 0 : index
    %c0_4 = arith.constant 0 : index
    %3 = vector.load %arg3[%c0_3, %c0_4] : memref<4x8xf32, #tpu.memory_space<vmem>>, vector<4x8xf32>
    %cst = arith.constant dense<0.000000e+00> : vector<432x8xf32>
    %4 = tpu.matmul %2, %3, %cst {dimension_numbers = #tpu.dot_dimension_numbers<[1], [0], [0], [1], [0, 0, 1, 1], [], []>, precision = #tpu.contract_precision<fp32>} : vector<432x4xf32>, vector<4x8xf32>, vector<432x8xf32> -> vector<432x8xf32>
    %c0_5 = arith.constant 0 : index
    %c0_6 = arith.constant 0 : index
    %5 = vector.load %arg4[%c0_5, %c0_6] : memref<1x8xf32, #tpu.memory_space<vmem>>, vector<1x8xf32>
    %6 = vector.broadcast %5 : vector<1x8xf32> to vector<432x8xf32>
    %7 = arith.addf %4, %6 : vector<432x8xf32>
    %cst_7 = arith.constant 3.000000e+00 : f32
    %8 = vector.broadcast %cst_7 : f32 to vector<432x8xf32>
    %9 = arith.addf %7, %8 : vector<432x8xf32>
    %cst_8 = arith.constant 0.000000e+00 : f32
    %cst_9 = arith.constant 6.000000e+00 : f32
    %10 = vector.broadcast %cst_8 : f32 to vector<432x8xf32>
    %11 = arith.maximumf %10, %9 : vector<432x8xf32>
    %12 = vector.broadcast %cst_9 : f32 to vector<432x8xf32>
    %13 = arith.minimumf %12, %11 : vector<432x8xf32>
    %cst_10 = arith.constant 0.166666672 : f32
    %14 = vector.broadcast %cst_10 : f32 to vector<432x8xf32>
    %15 = arith.mulf %13, %14 : vector<432x8xf32>
    %16 = arith.mulf %7, %15 : vector<432x8xf32>
    %17 = vector.shape_cast %16 : vector<432x8xf32> to vector<18x24x8xf32>
    %c0_11 = arith.constant 0 : index
    %c0_12 = arith.constant 0 : index
    %c0_13 = arith.constant 0 : index
    %18 = vector.load %arg1[%c0_11, %c0_12, %c0_13] : memref<18x24x1xf32, #tpu.memory_space<vmem>>, vector<18x24x1xf32>
    %19 = vector.broadcast %18 : vector<18x24x1xf32> to vector<18x24x8xf32>
    %20 = arith.mulf %17, %19 : vector<18x24x8xf32>
    %cst_14 = arith.constant 0.000000e+00 : f32
    %21 = vector.broadcast %cst_14 : f32 to vector<16x16x8xf32>
    %22 = vector.extract_strided_slice %20 {offsets = [0, 0, 0], sizes = [16, 16, 8], strides = [1, 1, 1]} : vector<18x24x8xf32> to vector<16x16x8xf32>
    %c0_15 = arith.constant 0 : index
    %c0_16 = arith.constant 0 : index
    %23 = vector.load %arg5[%c0_15, %c0_16] : memref<9x8xf32, #tpu.memory_space<vmem>>, vector<1x8xf32>
    %24 = vector.shape_cast %23 : vector<1x8xf32> to vector<8xf32>
    %25 = vector.shape_cast %24 : vector<8xf32> to vector<1x1x8xf32>
    %26 = vector.broadcast %25 : vector<1x1x8xf32> to vector<16x16x8xf32>
    %27 = arith.mulf %22, %26 : vector<16x16x8xf32>
    %28 = arith.addf %21, %27 : vector<16x16x8xf32>
    %29 = vector.extract_strided_slice %20 {offsets = [0, 1, 0], sizes = [16, 16, 8], strides = [1, 1, 1]} : vector<18x24x8xf32> to vector<16x16x8xf32>
    %c1 = arith.constant 1 : index
    %c0_17 = arith.constant 0 : index
    %30 = vector.load %arg5[%c1, %c0_17] : memref<9x8xf32, #tpu.memory_space<vmem>>, vector<1x8xf32>
    %31 = vector.shape_cast %30 : vector<1x8xf32> to vector<8xf32>
    %32 = vector.shape_cast %31 : vector<8xf32> to vector<1x1x8xf32>
    %33 = vector.broadcast %32 : vector<1x1x8xf32> to vector<16x16x8xf32>
    %34 = arith.mulf %29, %33 : vector<16x16x8xf32>
    %35 = arith.addf %28, %34 : vector<16x16x8xf32>
    %36 = vector.extract_strided_slice %20 {offsets = [0, 2, 0], sizes = [16, 16, 8], strides = [1, 1, 1]} : vector<18x24x8xf32> to vector<16x16x8xf32>
    %c2 = arith.constant 2 : index
    %c0_18 = arith.constant 0 : index
    %37 = vector.load %arg5[%c2, %c0_18] : memref<9x8xf32, #tpu.memory_space<vmem>>, vector<1x8xf32>
    %38 = vector.shape_cast %37 : vector<1x8xf32> to vector<8xf32>
    %39 = vector.shape_cast %38 : vector<8xf32> to vector<1x1x8xf32>
    %40 = vector.broadcast %39 : vector<1x1x8xf32> to vector<16x16x8xf32>
    %41 = arith.mulf %36, %40 : vector<16x16x8xf32>
    %42 = arith.addf %35, %41 : vector<16x16x8xf32>
    %43 = vector.extract_strided_slice %20 {offsets = [1, 0, 0], sizes = [16, 16, 8], strides = [1, 1, 1]} : vector<18x24x8xf32> to vector<16x16x8xf32>
    %c3 = arith.constant 3 : index
    %c0_19 = arith.constant 0 : index
    %44 = vector.load %arg5[%c3, %c0_19] : memref<9x8xf32, #tpu.memory_space<vmem>>, vector<1x8xf32>
    %45 = vector.shape_cast %44 : vector<1x8xf32> to vector<8xf32>
    %46 = vector.shape_cast %45 : vector<8xf32> to vector<1x1x8xf32>
    %47 = vector.broadcast %46 : vector<1x1x8xf32> to vector<16x16x8xf32>
    %48 = arith.mulf %43, %47 : vector<16x16x8xf32>
    %49 = arith.addf %42, %48 : vector<16x16x8xf32>
    %50 = vector.extract_strided_slice %20 {offsets = [1, 1, 0], sizes = [16, 16, 8], strides = [1, 1, 1]} : vector<18x24x8xf32> to vector<16x16x8xf32>
    %c4 = arith.constant 4 : index
    %c0_20 = arith.constant 0 : index
    %51 = vector.load %arg5[%c4, %c0_20] : memref<9x8xf32, #tpu.memory_space<vmem>>, vector<1x8xf32>
    %52 = vector.shape_cast %51 : vector<1x8xf32> to vector<8xf32>
    %53 = vector.shape_cast %52 : vector<8xf32> to vector<1x1x8xf32>
    %54 = vector.broadcast %53 : vector<1x1x8xf32> to vector<16x16x8xf32>
    %55 = arith.mulf %50, %54 : vector<16x16x8xf32>
    %56 = arith.addf %49, %55 : vector<16x16x8xf32>
    %57 = vector.extract_strided_slice %20 {offsets = [1, 2, 0], sizes = [16, 16, 8], strides = [1, 1, 1]} : vector<18x24x8xf32> to vector<16x16x8xf32>
    %c5 = arith.constant 5 : index
    %c0_21 = arith.constant 0 : index
    %58 = vector.load %arg5[%c5, %c0_21] : memref<9x8xf32, #tpu.memory_space<vmem>>, vector<1x8xf32>
    %59 = vector.shape_cast %58 : vector<1x8xf32> to vector<8xf32>
    %60 = vector.shape_cast %59 : vector<8xf32> to vector<1x1x8xf32>
    %61 = vector.broadcast %60 : vector<1x1x8xf32> to vector<16x16x8xf32>
    %62 = arith.mulf %57, %61 : vector<16x16x8xf32>
    %63 = arith.addf %56, %62 : vector<16x16x8xf32>
    %64 = vector.extract_strided_slice %20 {offsets = [2, 0, 0], sizes = [16, 16, 8], strides = [1, 1, 1]} : vector<18x24x8xf32> to vector<16x16x8xf32>
    %c6 = arith.constant 6 : index
    %c0_22 = arith.constant 0 : index
    %65 = vector.load %arg5[%c6, %c0_22] : memref<9x8xf32, #tpu.memory_space<vmem>>, vector<1x8xf32>
    %66 = vector.shape_cast %65 : vector<1x8xf32> to vector<8xf32>
    %67 = vector.shape_cast %66 : vector<8xf32> to vector<1x1x8xf32>
    %68 = vector.broadcast %67 : vector<1x1x8xf32> to vector<16x16x8xf32>
    %69 = arith.mulf %64, %68 : vector<16x16x8xf32>
    %70 = arith.addf %63, %69 : vector<16x16x8xf32>
    %71 = vector.extract_strided_slice %20 {offsets = [2, 1, 0], sizes = [16, 16, 8], strides = [1, 1, 1]} : vector<18x24x8xf32> to vector<16x16x8xf32>
    %c7 = arith.constant 7 : index
    %c0_23 = arith.constant 0 : index
    %72 = vector.load %arg5[%c7, %c0_23] : memref<9x8xf32, #tpu.memory_space<vmem>>, vector<1x8xf32>
    %73 = vector.shape_cast %72 : vector<1x8xf32> to vector<8xf32>
    %74 = vector.shape_cast %73 : vector<8xf32> to vector<1x1x8xf32>
    %75 = vector.broadcast %74 : vector<1x1x8xf32> to vector<16x16x8xf32>
    %76 = arith.mulf %71, %75 : vector<16x16x8xf32>
    %77 = arith.addf %70, %76 : vector<16x16x8xf32>
    %78 = vector.extract_strided_slice %20 {offsets = [2, 2, 0], sizes = [16, 16, 8], strides = [1, 1, 1]} : vector<18x24x8xf32> to vector<16x16x8xf32>
    %c8 = arith.constant 8 : index
    %c0_24 = arith.constant 0 : index
    %79 = vector.load %arg5[%c8, %c0_24] : memref<9x8xf32, #tpu.memory_space<vmem>>, vector<1x8xf32>
    %80 = vector.shape_cast %79 : vector<1x8xf32> to vector<8xf32>
    %81 = vector.shape_cast %80 : vector<8xf32> to vector<1x1x8xf32>
    %82 = vector.broadcast %81 : vector<1x1x8xf32> to vector<16x16x8xf32>
    %83 = arith.mulf %78, %82 : vector<16x16x8xf32>
    %84 = arith.addf %77, %83 : vector<16x16x8xf32>
    %c0_25 = arith.constant 0 : index
    %c0_26 = arith.constant 0 : index
    %85 = vector.load %arg6[%c0_25, %c0_26] : memref<1x8xf32, #tpu.memory_space<vmem>>, vector<1x8xf32>
    %86 = vector.shape_cast %85 : vector<1x8xf32> to vector<1x1x8xf32>
    %87 = vector.broadcast %86 : vector<1x1x8xf32> to vector<16x16x8xf32>
    %88 = arith.addf %84, %87 : vector<16x16x8xf32>
    %89 = vector.shape_cast %88 : vector<16x16x8xf32> to vector<256x8xf32>
    %cst_27 = arith.constant dense<0.000000e+00> : vector<8xf32>
    %90 = vector.multi_reduction <add>, %89, %cst_27 [0] : vector<256x8xf32> to vector<8xf32>
    %91 = vector.shape_cast %90 : vector<8xf32> to vector<1x8xf32>
    %cst_28 = arith.constant 3.906250e-03 : f32
    %92 = vector.broadcast %cst_28 : f32 to vector<1x8xf32>
    %93 = arith.mulf %91, %92 : vector<1x8xf32>
    %c0_29 = arith.constant 0 : index
    %c0_30 = arith.constant 0 : index
    %94 = vector.load %arg7[%c0_29, %c0_30] : memref<8x2xf32, #tpu.memory_space<vmem>>, vector<8x2xf32>
    %cst_31 = arith.constant dense<0.000000e+00> : vector<1x2xf32>
    %95 = tpu.matmul %93, %94, %cst_31 {dimension_numbers = #tpu.dot_dimension_numbers<[1], [0], [0], [1], [0, 0, 1, 1], [], []>, precision = #tpu.contract_precision<fp32>} : vector<1x8xf32>, vector<8x2xf32>, vector<1x2xf32> -> vector<1x2xf32>
    %c0_32 = arith.constant 0 : index
    %c0_33 = arith.constant 0 : index
    %96 = vector.load %arg8[%c0_32, %c0_33] : memref<1x2xf32, #tpu.memory_space<vmem>>, vector<1x2xf32>
    %97 = arith.addf %95, %96 : vector<1x2xf32>
    %cst_34 = arith.constant 0.000000e+00 : f32
    %98 = vector.broadcast %cst_34 : f32 to vector<1x2xf32>
    %99 = arith.maximumf %97, %98 : vector<1x2xf32>
    %c0_35 = arith.constant 0 : index
    %c0_36 = arith.constant 0 : index
    %100 = vector.load %arg9[%c0_35, %c0_36] : memref<2x8xf32, #tpu.memory_space<vmem>>, vector<2x8xf32>
    %cst_37 = arith.constant dense<0.000000e+00> : vector<1x8xf32>
    %101 = tpu.matmul %99, %100, %cst_37 {dimension_numbers = #tpu.dot_dimension_numbers<[1], [0], [0], [1], [0, 0, 1, 1], [], []>, precision = #tpu.contract_precision<fp32>} : vector<1x2xf32>, vector<2x8xf32>, vector<1x8xf32> -> vector<1x8xf32>
    %c0_38 = arith.constant 0 : index
    %c0_39 = arith.constant 0 : index
    %102 = vector.load %arg10[%c0_38, %c0_39] : memref<1x8xf32, #tpu.memory_space<vmem>>, vector<1x8xf32>
    %103 = arith.addf %101, %102 : vector<1x8xf32>
    %cst_40 = arith.constant 3.000000e+00 : f32
    %104 = vector.broadcast %cst_40 : f32 to vector<1x8xf32>
    %105 = arith.addf %103, %104 : vector<1x8xf32>
    %cst_41 = arith.constant 0.000000e+00 : f32
    %cst_42 = arith.constant 6.000000e+00 : f32
    %106 = vector.broadcast %cst_41 : f32 to vector<1x8xf32>
    %107 = arith.maximumf %106, %105 : vector<1x8xf32>
    %108 = vector.broadcast %cst_42 : f32 to vector<1x8xf32>
    %109 = arith.minimumf %108, %107 : vector<1x8xf32>
    %cst_43 = arith.constant 0.166666672 : f32
    %110 = vector.broadcast %cst_43 : f32 to vector<1x8xf32>
    %111 = arith.mulf %109, %110 : vector<1x8xf32>
    %112 = vector.broadcast %111 : vector<1x8xf32> to vector<256x8xf32>
    %113 = arith.mulf %89, %112 : vector<256x8xf32>
    %c0_44 = arith.constant 0 : index
    %c0_45 = arith.constant 0 : index
    %114 = vector.load %arg11[%c0_44, %c0_45] : memref<8x4xf32, #tpu.memory_space<vmem>>, vector<8x4xf32>
    %cst_46 = arith.constant dense<0.000000e+00> : vector<256x4xf32>
    %115 = tpu.matmul %113, %114, %cst_46 {dimension_numbers = #tpu.dot_dimension_numbers<[1], [0], [0], [1], [0, 0, 1, 1], [], []>, precision = #tpu.contract_precision<fp32>} : vector<256x8xf32>, vector<8x4xf32>, vector<256x4xf32> -> vector<256x4xf32>
    %c0_47 = arith.constant 0 : index
    %c0_48 = arith.constant 0 : index
    %116 = vector.load %arg12[%c0_47, %c0_48] : memref<1x4xf32, #tpu.memory_space<vmem>>, vector<1x4xf32>
    %117 = vector.broadcast %116 : vector<1x4xf32> to vector<256x4xf32>
    %118 = arith.addf %115, %117 : vector<256x4xf32>
    %cst_49 = arith.constant 3.000000e+00 : f32
    %119 = vector.broadcast %cst_49 : f32 to vector<256x4xf32>
    %120 = arith.addf %118, %119 : vector<256x4xf32>
    %cst_50 = arith.constant 0.000000e+00 : f32
    %cst_51 = arith.constant 6.000000e+00 : f32
    %121 = vector.broadcast %cst_50 : f32 to vector<256x4xf32>
    %122 = arith.maximumf %121, %120 : vector<256x4xf32>
    %123 = vector.broadcast %cst_51 : f32 to vector<256x4xf32>
    %124 = arith.minimumf %123, %122 : vector<256x4xf32>
    %cst_52 = arith.constant 0.166666672 : f32
    %125 = vector.broadcast %cst_52 : f32 to vector<256x4xf32>
    %126 = arith.mulf %124, %125 : vector<256x4xf32>
    %127 = arith.mulf %118, %126 : vector<256x4xf32>
    %128 = vector.extract_strided_slice %1 {offsets = [1, 1, 0], sizes = [16, 16, 4], strides = [1, 1, 1]} : vector<18x24x4xf32> to vector<16x16x4xf32>
    %129 = vector.shape_cast %128 : vector<16x16x4xf32> to vector<256x4xf32>
    %130 = arith.addf %127, %129 : vector<256x4xf32>
    %131 = vector.shape_cast %130 : vector<256x4xf32> to vector<16x16x4xf32>
    %c0_53 = arith.constant 0 : index
    %c0_54 = arith.constant 0 : index
    %c0_55 = arith.constant 0 : index
    %c0_56 = arith.constant 0 : index
    %132 = vector.load %arg13[%c0_53, %c0_54, %c0_55, %c0_56] : memref<1x16x16x4xf32, #tpu.memory_space<vmem>>, vector<1x16x16x4xf32>
    %133 = vector.shape_cast %132 : vector<1x16x16x4xf32> to vector<16x16x4xf32>
    %134 = vector.shape_cast %131 : vector<16x16x4xf32> to vector<1x16x16x4xf32>
    tpu.vector_store %arg13[%c0_53, %c0_54, %c0_55, %c0_56], %134 {strides = array<i32>} : memref<1x16x16x4xf32, #tpu.memory_space<vmem>>, vector<1x16x16x4xf32>,
    return
  }
  func.func @transform_0(%arg0: i32) -> (i32, i32, i32) {
    %c0_i32 = arith.constant 0 : i32
    %c0_i32_0 = arith.constant 0 : i32
    %c0_i32_1 = arith.constant 0 : i32
    %c0_i32_2 = arith.constant 0 : i32
    return %c0_i32, %c0_i32_0, %c0_i32_1 : i32, i32, i32
  }
  func.func @transform_1(%arg0: i32) -> (i32, i32, i32, i32) {
    %c0_i32 = arith.constant 0 : i32
    %c0_i32_0 = arith.constant 0 : i32
    %c0_i32_1 = arith.constant 0 : i32
    %c0_i32_2 = arith.constant 0 : i32
    return %arg0, %c0_i32, %c0_i32_0, %c0_i32_1 : i32, i32, i32, i32
  }
  func.func @transform_2(%arg0: i32) -> (i32, i32) {
    %c0_i32 = arith.constant 0 : i32
    %c0_i32_0 = arith.constant 0 : i32
    %c0_i32_1 = arith.constant 0 : i32
    return %c0_i32, %c0_i32_0 : i32, i32
  }
  func.func @transform_3(%arg0: i32) -> (i32, i32) {
    %c0_i32 = arith.constant 0 : i32
    %c0_i32_0 = arith.constant 0 : i32
    %c0_i32_1 = arith.constant 0 : i32
    return %c0_i32, %c0_i32_0 : i32, i32
  }
  func.func @transform_4(%arg0: i32) -> (i32, i32) {
    %c0_i32 = arith.constant 0 : i32
    %c0_i32_0 = arith.constant 0 : i32
    %c0_i32_1 = arith.constant 0 : i32
    return %c0_i32, %c0_i32_0 : i32, i32
  }
  func.func @transform_5(%arg0: i32) -> (i32, i32) {
    %c0_i32 = arith.constant 0 : i32
    %c0_i32_0 = arith.constant 0 : i32
    %c0_i32_1 = arith.constant 0 : i32
    return %c0_i32, %c0_i32_0 : i32, i32
  }
  func.func @transform_6(%arg0: i32) -> (i32, i32) {
    %c0_i32 = arith.constant 0 : i32
    %c0_i32_0 = arith.constant 0 : i32
    %c0_i32_1 = arith.constant 0 : i32
    return %c0_i32, %c0_i32_0 : i32, i32
  }
  func.func @transform_7(%arg0: i32) -> (i32, i32) {
    %c0_i32 = arith.constant 0 : i32
    %c0_i32_0 = arith.constant 0 : i32
    %c0_i32_1 = arith.constant 0 : i32
    return %c0_i32, %c0_i32_0 : i32, i32
  }
  func.func @transform_8(%arg0: i32) -> (i32, i32) {
    %c0_i32 = arith.constant 0 : i32
    %c0_i32_0 = arith.constant 0 : i32
    %c0_i32_1 = arith.constant 0 : i32
    return %c0_i32, %c0_i32_0 : i32, i32
  }
  func.func @transform_9(%arg0: i32) -> (i32, i32) {
    %c0_i32 = arith.constant 0 : i32
    %c0_i32_0 = arith.constant 0 : i32
    %c0_i32_1 = arith.constant 0 : i32
    return %c0_i32, %c0_i32_0 : i32, i32
  }
  func.func @transform_10(%arg0: i32) -> (i32, i32) {
    %c0_i32 = arith.constant 0 : i32
    %c0_i32_0 = arith.constant 0 : i32
    %c0_i32_1 = arith.constant 0 : i32
    return %c0_i32, %c0_i32_0 : i32, i32
  }
  func.func @transform_11(%arg0: i32) -> (i32, i32) {
    %c0_i32 = arith.constant 0 : i32
    %c0_i32_0 = arith.constant 0 : i32
    %c0_i32_1 = arith.constant 0 : i32
    return %c0_i32, %c0_i32_0 : i32, i32
  }
  func.func @transform_12(%arg0: i32) -> (i32, i32, i32, i32) {
    %c0_i32 = arith.constant 0 : i32
    %c0_i32_0 = arith.constant 0 : i32
    %c0_i32_1 = arith.constant 0 : i32
    %c0_i32_2 = arith.constant 0 : i32
    return %arg0, %c0_i32, %c0_i32_0, %c0_i32_1 : i32, i32, i32, i32
  }
}

</mosaic_0001>

<llo_original>
// kernel: tpu_custom_call.1
$region0: #{tpu_custom_call.1}
  #allocation0 [shape = 'u32[]', space=smem, size = 0x4, offset = 0x4, fixed_abs, tag = 'smem constant byte address 0x4 - core index']
  #allocation1 [shape = 'u32[72,128]{1,0:T(1,128)}', space=vmem, size = 0x9000, scoped, tag = 'internal scratch']
  %s0 = inlined_call_operand.vmem [shape: f32[18,24,1], index: 0, kind: input, shape index: {}]
  %s1 = inlined_call_operand.vmem [shape: f32[2,18,24,4], index: 1, kind: input, shape index: {}]
  %s2 = inlined_call_operand.vmem [shape: f32[4,8], index: 2, kind: input, shape index: {}]
  %s3 = inlined_call_operand.vmem [shape: f32[1,8], index: 3, kind: input, shape index: {}]
  %s4 = inlined_call_operand.vmem [shape: f32[9,8], index: 4, kind: input, shape index: {}]
  %s5 = inlined_call_operand.vmem [shape: f32[1,8], index: 5, kind: input, shape index: {}]
  %s6 = inlined_call_operand.vmem [shape: f32[8,2], index: 6, kind: input, shape index: {}]
  %s7 = inlined_call_operand.vmem [shape: f32[1,2], index: 7, kind: input, shape index: {}]
  %s8 = inlined_call_operand.vmem [shape: f32[2,8], index: 8, kind: input, shape index: {}]
  %s9 = inlined_call_operand.vmem [shape: f32[1,8], index: 9, kind: input, shape index: {}]
  %s10 = inlined_call_operand.vmem [shape: f32[8,4], index: 10, kind: input, shape index: {}]
  %s11 = inlined_call_operand.vmem [shape: f32[1,4], index: 11, kind: input, shape index: {}]
  %s12 = inlined_call_operand.vmem [shape: f32[2,16,16,4], index: 12, kind: output, shape index: {}]
  %s13 = sld [smem:[#allocation0]]
  $region81: #{tpu_custom_call.1} parent=0
    _
  %s15 = ssub.s32 1, %s13
  %s16 = scalar_select 0, %s15, %s13
  loop: start=0, step=1, limit=4
  $region2: #{tpu_custom_call.1} parent=0 // loop_pre_header
    _
  $region3: #{tpu_custom_call.1} parent=0 // loop_header
    %s18 = sphi 0, %s22
    %p19 = scmp.ge.s32.totalorder %s18, 4
    %s26 = sphi 0, %s26
    %s28 = sphi 0, %s26
    %s29 = sphi 0, %s28
    %s43 = sphi 0, %s29
    %s49 = sphi 0, %s51
    %s52 = sphi 0, %s49
    %s53 = sphi 0, %s52
    %s69 = sphi 0, %s53
    %s73 = sphi 0, %s73
    %s75 = sphi 0, %s73
    %s76 = sphi 0, %s75
    %s90 = sphi 0, %s76
    %s94 = sphi 0, %s94
    %s96 = sphi 0, %s94
    %s97 = sphi 0, %s96
    %s111 = sphi 0, %s97
    %s115 = sphi 0, %s115
    %s117 = sphi 0, %s115
    %s118 = sphi 0, %s117
    %s132 = sphi 0, %s118
    %s136 = sphi 0, %s136
    %s138 = sphi 0, %s136
    %s139 = sphi 0, %s138
    %s153 = sphi 0, %s139
    %s157 = sphi 0, %s157
    %s159 = sphi 0, %s157
    %s160 = sphi 0, %s159
    %s174 = sphi 0, %s160
    %s178 = sphi 0, %s178
    %s180 = sphi 0, %s178
    %s181 = sphi 0, %s180
    %s195 = sphi 0, %s181
    %s199 = sphi 0, %s199
    %s201 = sphi 0, %s199
    %s202 = sphi 0, %s201
    %s216 = sphi 0, %s202
    %s220 = sphi 0, %s220
    %s222 = sphi 0, %s220
    %s223 = sphi 0, %s222
    %s237 = sphi 0, %s223
    %s241 = sphi 0, %s241
    %s243 = sphi 0, %s241
    %s244 = sphi 0, %s243
    %s258 = sphi 0, %s244
    %s262 = sphi 0, %s262
    %s264 = sphi 0, %s262
    %s265 = sphi 0, %s264
    %s279 = sphi 0, %s265
    %s285 = sphi 0, %s287
    %s288 = sphi 0, %s285
    %s289 = sphi 0, %s288
    %s305 = sphi 0, %s289
  $region4: #{tpu_custom_call.1} parent=0 // loop_header_branch
    %21 = sbr.rel (%p19) target = $region8
  $region5: #{tpu_custom_call.1} parent=0 // loop_body
    %s23 = ssub.s32 %s18, 1
    %s24 = ssub.s32 %s18, 2
    %s25 = sadd.s32 %s18, 1
    %s27 = sadd.s32 %s26, 1
    %p30 = scmp.eq.s32.totalorder %s18, 1
    %p31 = scmp.ne.s32.totalorder %s26, %s28
    %p32 = scmp.eq.s32.totalorder %s18, 0
    %p33 = por %p31, %p32
    %p34 = scmp.ne.s32.totalorder %s26, %s28
    %p35 = scmp.eq.s32.totalorder %s23, 1
    %p36 = por %p34, %p35
    %p37 = scmp.ne.s32.totalorder %s28, %s29
    %p38 = scmp.eq.s32.totalorder %s23, 0
    %p39 = por %p37, %p38
    %p40 = scmp.ne.s32.totalorder %s28, %s29
    %p41 = scmp.eq.s32.totalorder %s24, 1
    %p42 = por %p40, %p41
    %p44 = scmp.ne.s32.totalorder %s29, %s43
    %p45 = scmp.eq.s32.totalorder %s24, 0
    %p46 = por %p44, %p45
    %s47 = ssub.s32 %s18, %s25
    %p48 = scmp.eq.s32.totalorder %s47, 0
    %s50 = sadd.s32 %s49, 1
    %s51 = scalar_select %p48, %s49, %s50
    %p54 = pneg %p48
    %p55 = scmp.eq.s32.totalorder %s18, 1
    %p56 = por %p54, %p55
    %p57 = scmp.ne.s32.totalorder %s49, %s52
    %p58 = scmp.eq.s32.totalorder %s18, 0
    %p59 = por %p57, %p58
    %p60 = scmp.ne.s32.totalorder %s49, %s52
    %p61 = scmp.eq.s32.totalorder %s23, 1
    %p62 = por %p60, %p61
    %p63 = scmp.ne.s32.totalorder %s52, %s53
    %p64 = scmp.eq.s32.totalorder %s23, 0
    %p65 = por %p63, %p64
    %p66 = scmp.ne.s32.totalorder %s52, %s53
    %p67 = scmp.eq.s32.totalorder %s24, 1
    %p68 = por %p66, %p67
    %p70 = scmp.ne.s32.totalorder %s53, %s69
    %p71 = scmp.eq.s32.totalorder %s24, 0
    %p72 = por %p70, %p71
    %s74 = sadd.s32 %s73, 1
    %p77 = scmp.eq.s32.totalorder %s18, 1
    %p78 = scmp.ne.s32.totalorder %s73, %s75
    %p79 = scmp.eq.s32.totalorder %s18, 0
    %p80 = por %p78, %p79
    %p81 = scmp.ne.s32.totalorder %s73, %s75
    %p82 = scmp.eq.s32.totalorder %s23, 1
    %p83 = por %p81, %p82
    %p84 = scmp.ne.s32.totalorder %s75, %s76
    %p85 = scmp.eq.s32.totalorder %s23, 0
    %p86 = por %p84, %p85
    %p87 = scmp.ne.s32.totalorder %s75, %s76
    %p88 = scmp.eq.s32.totalorder %s24, 1
    %p89 = por %p87, %p88
    %p91 = scmp.ne.s32.totalorder %s76, %s90
    %p92 = scmp.eq.s32.totalorder %s24, 0
    %p93 = por %p91, %p92
    %s95 = sadd.s32 %s94, 1
    %p98 = scmp.eq.s32.totalorder %s18, 1
    %p99 = scmp.ne.s32.totalorder %s94, %s96
    %p100 = scmp.eq.s32.totalorder %s18, 0
    %p101 = por %p99, %p100
    %p102 = scmp.ne.s32.totalorder %s94, %s96
    %p103 = scmp.eq.s32.totalorder %s23, 1
    %p104 = por %p102, %p103
    %p105 = scmp.ne.s32.totalorder %s96, %s97
    %p106 = scmp.eq.s32.totalorder %s23, 0
    %p107 = por %p105, %p106
    %p108 = scmp.ne.s32.totalorder %s96, %s97
    %p109 = scmp.eq.s32.totalorder %s24, 1
    %p110 = por %p108, %p109
    %p112 = scmp.ne.s32.totalorder %s97, %s111
    %p113 = scmp.eq.s32.totalorder %s24, 0
    %p114 = por %p112, %p113
    %s116 = sadd.s32 %s115, 1
    %p119 = scmp.eq.s32.totalorder %s18, 1
    %p120 = scmp.ne.s32.totalorder %s115, %s117
    %p121 = scmp.eq.s32.totalorder %s18, 0
    %p122 = por %p120, %p121
    %p123 = scmp.ne.s32.totalorder %s115, %s117
    %p124 = scmp.eq.s32.totalorder %s23, 1
    %p125 = por %p123, %p124
    %p126 = scmp.ne.s32.totalorder %s117, %s118
    %p127 = scmp.eq.s32.totalorder %s23, 0
    %p128 = por %p126, %p127
    %p129 = scmp.ne.s32.totalorder %s117, %s118
    %p130 = scmp.eq.s32.totalorder %s24, 1
    %p131 = por %p129, %p130
    %p133 = scmp.ne.s32.totalorder %s118, %s132
    %p134 = scmp.eq.s32.totalorder %s24, 0
    %p135 = por %p133, %p134
    %s137 = sadd.s32 %s136, 1
    %p140 = scmp.eq.s32.totalorder %s18, 1
    %p141 = scmp.ne.s32.totalorder %s136, %s138
    %p142 = scmp.eq.s32.totalorder %s18, 0
    %p143 = por %p141, %p142
    %p144 = scmp.ne.s32.totalorder %s136, %s138
    %p145 = scmp.eq.s32.totalorder %s23, 1
    %p146 = por %p144, %p145
    %p147 = scmp.ne.s32.totalorder %s138, %s139
    %p148 = scmp.eq.s32.totalorder %s23, 0
    %p149 = por %p147, %p148
    %p150 = scmp.ne.s32.totalorder %s138, %s139
    %p151 = scmp.eq.s32.totalorder %s24, 1
    %p152 = por %p150, %p151
    %p154 = scmp.ne.s32.totalorder %s139, %s153
    %p155 = scmp.eq.s32.totalorder %s24, 0
    %p156 = por %p154, %p155
    %s158 = sadd.s32 %s157, 1
    %p161 = scmp.eq.s32.totalorder %s18, 1
    %p162 = scmp.ne.s32.totalorder %s157, %s159
    %p163 = scmp.eq.s32.totalorder %s18, 0
    %p164 = por %p162, %p163
    %p165 = scmp.ne.s32.totalorder %s157, %s159
    %p166 = scmp.eq.s32.totalorder %s23, 1
    %p167 = por %p165, %p166
    %p168 = scmp.ne.s32.totalorder %s159, %s160
    %p169 = scmp.eq.s32.totalorder %s23, 0
    %p170 = por %p168, %p169
    %p171 = scmp.ne.s32.totalorder %s159, %s160
    %p172 = scmp.eq.s32.totalorder %s24, 1
    %p173 = por %p171, %p172
    %p175 = scmp.ne.s32.totalorder %s160, %s174
    %p176 = scmp.eq.s32.totalorder %s24, 0
    %p177 = por %p175, %p176
    %s179 = sadd.s32 %s178, 1
    %p182 = scmp.eq.s32.totalorder %s18, 1
    %p183 = scmp.ne.s32.totalorder %s178, %s180
    %p184 = scmp.eq.s32.totalorder %s18, 0
    %p185 = por %p183, %p184
    %p186 = scmp.ne.s32.totalorder %s178, %s180
    %p187 = scmp.eq.s32.totalorder %s23, 1
    %p188 = por %p186, %p187
    %p189 = scmp.ne.s32.totalorder %s180, %s181
    %p190 = scmp.eq.s32.totalorder %s23, 0
    %p191 = por %p189, %p190
    %p192 = scmp.ne.s32.totalorder %s180, %s181
    %p193 = scmp.eq.s32.totalorder %s24, 1
    %p194 = por %p192, %p193
    %p196 = scmp.ne.s32.totalorder %s181, %s195
    %p197 = scmp.eq.s32.totalorder %s24, 0
    %p198 = por %p196, %p197
    %s200 = sadd.s32 %s199, 1
    %p203 = scmp.eq.s32.totalorder %s18, 1
    %p204 = scmp.ne.s32.totalorder %s199, %s201
    %p205 = scmp.eq.s32.totalorder %s18, 0
    %p206 = por %p204, %p205
    %p207 = scmp.ne.s32.totalorder %s199, %s201
    %p208 = scmp.eq.s32.totalorder %s23, 1
    %p209 = por %p207, %p208
    %p210 = scmp.ne.s32.totalorder %s201, %s202
    %p211 = scmp.eq.s32.totalorder %s23, 0
    %p212 = por %p210, %p211
    %p213 = scmp.ne.s32.totalorder %s201, %s202
    %p214 = scmp.eq.s32.totalorder %s24, 1
    %p215 = por %p213, %p214
    %p217 = scmp.ne.s32.totalorder %s202, %s216
    %p218 = scmp.eq.s32.totalorder %s24, 0
    %p219 = por %p217, %p218
    %s221 = sadd.s32 %s220, 1
    %p224 = scmp.eq.s32.totalorder %s18, 1
    %p225 = scmp.ne.s32.totalorder %s220, %s222
    %p226 = scmp.eq.s32.totalorder %s18, 0
    %p227 = por %p225, %p226
    %p228 = scmp.ne.s32.totalorder %s220, %s222
    %p229 = scmp.eq.s32.totalorder %s23, 1
    %p230 = por %p228, %p229
    %p231 = scmp.ne.s32.totalorder %s222, %s223
    %p232 = scmp.eq.s32.totalorder %s23, 0
    %p233 = por %p231, %p232
    %p234 = scmp.ne.s32.totalorder %s222, %s223
    %p235 = scmp.eq.s32.totalorder %s24, 1
    %p236 = por %p234, %p235
    %p238 = scmp.ne.s32.totalorder %s223, %s237
    %p239 = scmp.eq.s32.totalorder %s24, 0
    %p240 = por %p238, %p239
    %s242 = sadd.s32 %s241, 1
    %p245 = scmp.eq.s32.totalorder %s18, 1
    %p246 = scmp.ne.s32.totalorder %s241, %s243
    %p247 = scmp.eq.s32.totalorder %s18, 0
    %p248 = por %p246, %p247
    %p249 = scmp.ne.s32.totalorder %s241, %s243
    %p250 = scmp.eq.s32.totalorder %s23, 1
    %p251 = por %p249, %p250
    %p252 = scmp.ne.s32.totalorder %s243, %s244
    %p253 = scmp.eq.s32.totalorder %s23, 0
    %p254 = por %p252, %p253
    %p255 = scmp.ne.s32.totalorder %s243, %s244
    %p256 = scmp.eq.s32.totalorder %s24, 1
    %p257 = por %p255, %p256
    %p259 = scmp.ne.s32.totalorder %s244, %s258
    %p260 = scmp.eq.s32.totalorder %s24, 0
    %p261 = por %p259, %p260
    %s263 = sadd.s32 %s262, 1
    %p266 = scmp.eq.s32.totalorder %s18, 1
    %p267 = scmp.ne.s32.totalorder %s262, %s264
    %p268 = scmp.eq.s32.totalorder %s18, 0
    %p269 = por %p267, %p268
    %p270 = scmp.ne.s32.totalorder %s262, %s264
    %p271 = scmp.eq.s32.totalorder %s23, 1
    %p272 = por %p270, %p271
    %p273 = scmp.ne.s32.totalorder %s264, %s265
    %p274 = scmp.eq.s32.totalorder %s23, 0
    %p275 = por %p273, %p274
    %p276 = scmp.ne.s32.totalorder %s264, %s265
    %p277 = scmp.eq.s32.totalorder %s24, 1
    %p278 = por %p276, %p277
    %p280 = scmp.ne.s32.totalorder %s265, %s279
    %p281 = scmp.eq.s32.totalorder %s24, 0
    %p282 = por %p280, %p281
    %s283 = ssub.s32 %s18, %s25
    %p284 = scmp.eq.s32.totalorder %s283, 0
    %s286 = sadd.s32 %s285, 1
    %s287 = scalar_select %p284, %s285, %s286
    %p290 = pneg %p284
    %p291 = scmp.eq.s32.totalorder %s18, 1
    %p292 = por %p290, %p291
    %p293 = scmp.ne.s32.totalorder %s285, %s288
    %p294 = scmp.eq.s32.totalorder %s18, 0
    %p295 = por %p293, %p294
    %p296 = scmp.ne.s32.totalorder %s285, %s288
    %p297 = scmp.eq.s32.totalorder %s23, 1
    %p298 = por %p296, %p297
    %p299 = scmp.ne.s32.totalorder %s288, %s289
    %p300 = scmp.eq.s32.totalorder %s23, 0
    %p301 = por %p299, %p300
    %p302 = scmp.ne.s32.totalorder %s288, %s289
    %p303 = scmp.eq.s32.totalorder %s24, 1
    %p304 = por %p302, %p303
    %p306 = scmp.ne.s32.totalorder %s289, %s305
    %p307 = scmp.eq.s32.totalorder %s24, 0
    %p308 = por %p306, %p307
    %p309 = scmp.le.s32.totalorder 1, %s18
    %p310 = scmp.lt.s32.totalorder %s18, 3
    %p311 = pnand %p309, %p310
    %p312 = pneg %p311
    // Predicated region
    $region9: #{tpu_custom_call.1} parent=5 // pred_check
      _
    $region10: #{tpu_custom_call.1} parent=5 // pred_check_branch
      %314 = sbr.rel (%p311) target = $region12
    $region11: #{tpu_custom_call.1} parent=5 // pred_region
      %s315 = ssub.s32 %s18, 1
      // Predicated region
      $region13: #{tpu_custom_call.1} parent=11 // pred_check
        %p316 = pneg %p39
      $region14: #{tpu_custom_call.1} parent=11 // pred_check_branch
        %318 = sbr.rel (%p316) target = $region16
      $region15: #{tpu_custom_call.1} parent=11 // pred_region
        _
      $region16: #{tpu_custom_call.1} parent=11 // pred_fallthru
        _
      // Predicated region
      $region17: #{tpu_custom_call.1} parent=11 // pred_check
        %p319 = pneg %p86
      $region18: #{tpu_custom_call.1} parent=11 // pred_check_branch
        %321 = sbr.rel (%p319) target = $region20
      $region19: #{tpu_custom_call.1} parent=11 // pred_region
        _
      $region20: #{tpu_custom_call.1} parent=11 // pred_fallthru
        _
      // Predicated region
      $region21: #{tpu_custom_call.1} parent=11 // pred_check
        %p322 = pneg %p107
      $region22: #{tpu_custom_call.1} parent=11 // pred_check_branch
        %324 = sbr.rel (%p322) target = $region24
      $region23: #{tpu_custom_call.1} parent=11 // pred_region
        _
      $region24: #{tpu_custom_call.1} parent=11 // pred_fallthru
        _
      // Predicated region
      $region25: #{tpu_custom_call.1} parent=11 // pred_check
        %p325 = pneg %p128
      $region26: #{tpu_custom_call.1} parent=11 // pred_check_branch
        %327 = sbr.rel (%p325) target = $region28
      $region27: #{tpu_custom_call.1} parent=11 // pred_region
        _
      $region28: #{tpu_custom_call.1} parent=11 // pred_fallthru
        _
      // Predicated region
      $region29: #{tpu_custom_call.1} parent=11 // pred_check
        %p328 = pneg %p149
      $region30: #{tpu_custom_call.1} parent=11 // pred_check_branch
        %330 = sbr.rel (%p328) target = $region32
      $region31: #{tpu_custom_call.1} parent=11 // pred_region
        _
      $region32: #{tpu_custom_call.1} parent=11 // pred_fallthru
        _
      // Predicated region
      $region33: #{tpu_custom_call.1} parent=11 // pred_check
        %p331 = pneg %p170
      $region34: #{tpu_custom_call.1} parent=11 // pred_check_branch
        %333 = sbr.rel (%p331) target = $region36
      $region35: #{tpu_custom_call.1} parent=11 // pred_region
        _
      $region36: #{tpu_custom_call.1} parent=11 // pred_fallthru
        _
      // Predicated region
      $region37: #{tpu_custom_call.1} parent=11 // pred_check
        %p334 = pneg %p191
      $region38: #{tpu_custom_call.1} parent=11 // pred_check_branch
        %336 = sbr.rel (%p334) target = $region40
      $region39: #{tpu_custom_call.1} parent=11 // pred_region
        _
      $region40: #{tpu_custom_call.1} parent=11 // pred_fallthru
        _
      // Predicated region
      $region41: #{tpu_custom_call.1} parent=11 // pred_check
        %p337 = pneg %p212
      $region42: #{tpu_custom_call.1} parent=11 // pred_check_branch
        %339 = sbr.rel (%p337) target = $region44
      $region43: #{tpu_custom_call.1} parent=11 // pred_region
        _
      $region44: #{tpu_custom_call.1} parent=11 // pred_fallthru
        _
      // Predicated region
      $region45: #{tpu_custom_call.1} parent=11 // pred_check
        %p340 = pneg %p233
      $region46: #{tpu_custom_call.1} parent=11 // pred_check_branch
        %342 = sbr.rel (%p340) target = $region48
      $region47: #{tpu_custom_call.1} parent=11 // pred_region
        _
      $region48: #{tpu_custom_call.1} parent=11 // pred_fallthru
        _
      // Predicated region
      $region49: #{tpu_custom_call.1} parent=11 // pred_check
        %p343 = pneg %p254
      $region50: #{tpu_custom_call.1} parent=11 // pred_check_branch
        %345 = sbr.rel (%p343) target = $region52
      $region51: #{tpu_custom_call.1} parent=11 // pred_region
        _
      $region52: #{tpu_custom_call.1} parent=11 // pred_fallthru
        _
      // Predicated region
      $region53: #{tpu_custom_call.1} parent=11 // pred_check
        %p346 = pneg %p275
      $region54: #{tpu_custom_call.1} parent=11 // pred_check_branch
        %348 = sbr.rel (%p346) target = $region56
      $region55: #{tpu_custom_call.1} parent=11 // pred_region
        _
      $region56: #{tpu_custom_call.1} parent=11 // pred_fallthru
        _
    $region12: #{tpu_custom_call.1} parent=5 // pred_fallthru
      _
    %p349 = scmp.lt.s32.totalorder %s18, 2
    // Predicated region
    $region57: #{tpu_custom_call.1} parent=5 // pred_check
      %p350 = pneg %p349
    $region58: #{tpu_custom_call.1} parent=5 // pred_check_branch
      %352 = sbr.rel (%p350) target = $region60
    $region59: #{tpu_custom_call.1} parent=5 // pred_region
      // Predicated region
      $region61: #{tpu_custom_call.1} parent=59 // pred_check
        %p353 = pneg %p59
      $region62: #{tpu_custom_call.1} parent=59 // pred_check_branch
        %355 = sbr.rel (%p353) target = $region64
      $region63: #{tpu_custom_call.1} parent=59 // pred_region
        %p356 = scmp.lt.s32.totalorder %s18, 1
        %s357 = scalar_select %p356, %s18, 1
        %s358 = smul.addr %s357, 54
        %s359 = smul.addr %s358, 8
        %s360 = scalar_lea.vmem %s1, %s359
      $region64: #{tpu_custom_call.1} parent=59 // pred_fallthru
        _
    $region60: #{tpu_custom_call.1} parent=5 // pred_fallthru
      _
    %p361 = scmp.le.s32.totalorder 1, %s18
    %p362 = scmp.lt.s32.totalorder %s18, 3
    %p363 = pnand %p361, %p362
    %p364 = pneg %p363
    // Predicated region
    $region65: #{tpu_custom_call.1} parent=5 // pred_check
      _
    $region66: #{tpu_custom_call.1} parent=5 // pred_check_branch
      %366 = sbr.rel (%p363) target = $region68
    $region67: #{tpu_custom_call.1} parent=5 // pred_region
      %s367 = ssub.s32 %s18, 1
      %p368 = pneg %p39
      %p369 = pneg %p36
      %p370 = scmp.lt.s32.totalorder %s23, 1
      %s371 = scalar_select %p370, %s23, 1
      %s372 = smul.addr %s371, 54
      %s373 = smul.addr %s372, 8
      %s374 = scalar_lea.vmem %s1, %s373
      %p375 = pneg %p65
      %p376 = pneg %p62
      %p377 = pneg %p86
      %p378 = pneg %p83
      %p379 = pneg %p107
      %p380 = pneg %p104
      %p381 = pneg %p128
      %p382 = pneg %p125
      %p383 = pneg %p149
      %p384 = pneg %p146
      %p385 = pneg %p170
      %p386 = pneg %p167
      %p387 = pneg %p191
      %p388 = pneg %p188
      %p389 = pneg %p212
      %p390 = pneg %p209
      %p391 = pneg %p233
      %p392 = pneg %p230
      %p393 = pneg %p254
      %p394 = pneg %p251
      %p395 = pneg %p275
      %p396 = pneg %p272
      %p397 = pneg %p301
      %p398 = pneg %p298
      %p399 = scmp.lt.s32.totalorder %s23, 1
      %s400 = scalar_select %p399, %s23, 1
      %s401 = smul.addr %s400, 32
      %s402 = smul.addr %s401, 8
      %s403 = scalar_lea.vmem %s12, %s402
      %p404 = scmp.lt.s32.totalorder %s23, 1
      %s405 = scalar_select %p404, %s23, 1
      %s406 = smul.addr %s405, 54
      %s407 = smul.addr %s406, 8
      %s408 = scalar_lea.vmem %s1, %s407
      %p409 = scmp.lt.s32.totalorder %s23, 1
      %s410 = scalar_select %p409, %s23, 1
      %s411 = smul.addr %s410, 32
      %s412 = smul.addr %s411, 8
      %s413 = scalar_lea.vmem %s12, %s412
      %v414 = vld [vmem:[%s408] sm:$0xff]
      %v415 = vld [vmem:[%s408 + $0x8] sm:$0xff]
      %v416 = vld [vmem:[%s408 + $0x10] sm:$0xff]
      %v417 = vld [vmem:[%s408 + $0x18] sm:$0xff]
      %v418 = vld [vmem:[%s408 + $0x20] sm:$0xff]
      %v419 = vld [vmem:[%s408 + $0x28] sm:$0xff]
      %v420 = vld [vmem:[%s408 + $0x30] sm:$0xff]
      %v421 = vld [vmem:[%s408 + $0x38] sm:$0xff]
      %v422 = vld [vmem:[%s408 + $0x40] sm:$0xff]
      %v423 = vld [vmem:[%s408 + $0x48] sm:$0xff]
      %v424 = vld [vmem:[%s408 + $0x50] sm:$0xff]
      %v425 = vld [vmem:[%s408 + $0x58] sm:$0xff]
      %v426 = vld [vmem:[%s408 + $0x60] sm:$0xff]
      %v427 = vld [vmem:[%s408 + $0x68] sm:$0xff]
      %v428 = vld [vmem:[%s408 + $0x70] sm:$0xff]
      %v429 = vld [vmem:[%s408 + $0x78] sm:$0xff]
      %v430 = vld [vmem:[%s408 + $0x80] sm:$0xff]
      %v431 = vld [vmem:[%s408 + $0x88] sm:$0xff]
      %v432 = vld [vmem:[%s408 + $0x90] sm:$0xff]
      %v433 = vld [vmem:[%s408 + $0x98] sm:$0xff]
      %v434 = vld [vmem:[%s408 + $0xa0] sm:$0xff]
      %v435 = vld [vmem:[%s408 + $0xa8] sm:$0xff]
      %v436 = vld [vmem:[%s408 + $0xb0] sm:$0xff]
      %v437 = vld [vmem:[%s408 + $0xb8] sm:$0xff]
      %v438 = vld [vmem:[%s408 + $0xc0] sm:$0xff]
      %v439 = vld [vmem:[%s408 + $0xc8] sm:$0xff]
      %v440 = vld [vmem:[%s408 + $0xd0] sm:$0xff]
      %v441 = vld [vmem:[%s408 + $0xd8] sm:$0xff]
      %v442 = vld [vmem:[%s408 + $0xe0] sm:$0xff]
      %v443 = vld [vmem:[%s408 + $0xe8] sm:$0xff]
      %v444 = vld [vmem:[%s408 + $0xf0] sm:$0xff]
      %v445 = vld [vmem:[%s408 + $0xf8] sm:$0xff]
      %v446 = vld [vmem:[%s408 + $0x100] sm:$0xff]
      %v447 = vld [vmem:[%s408 + $0x108] sm:$0xff]
      %v448 = vld [vmem:[%s408 + $0x110] sm:$0xff]
      %v449 = vld [vmem:[%s408 + $0x118] sm:$0xff]
      %v450 = vld [vmem:[%s408 + $0x120] sm:$0xff]
      %v451 = vld [vmem:[%s408 + $0x128] sm:$0xff]
      %v452 = vld [vmem:[%s408 + $0x130] sm:$0xff]
      %v453 = vld [vmem:[%s408 + $0x138] sm:$0xff]
      %v454 = vld [vmem:[%s408 + $0x140] sm:$0xff]
      %v455 = vld [vmem:[%s408 + $0x148] sm:$0xff]
      %v456 = vld [vmem:[%s408 + $0x150] sm:$0xff]
      %v457 = vld [vmem:[%s408 + $0x158] sm:$0xff]
      %v458 = vld [vmem:[%s408 + $0x160] sm:$0xff]
      %v459 = vld [vmem:[%s408 + $0x168] sm:$0xff]
      %v460 = vld [vmem:[%s408 + $0x170] sm:$0xff]
      %v461 = vld [vmem:[%s408 + $0x178] sm:$0xff]
      %v462 = vld [vmem:[%s408 + $0x180] sm:$0xff]
      %v463 = vld [vmem:[%s408 + $0x188] sm:$0xff]
      %v464 = vld [vmem:[%s408 + $0x190] sm:$0xff]
      %v465 = vld [vmem:[%s408 + $0x198] sm:$0xff]
      %v466 = vld [vmem:[%s408 + $0x1a0] sm:$0xff]
      %v467 = vld [vmem:[%s408 + $0x1a8] sm:$0xff]
      %v468 = vld [vmem:[%s2] sm:$0xf]
      %v469 = vld [vmem:[%s3] sm:$0x1]
      %v471 = vperm.slane %v469, 0
      %vm473 = vcmask 31744
      %v475 = vsel %vm473, %v414, 0
      %v478 = vsel %vm473, %v415, 0
      %v481 = vsel %vm473, %v416, 0
      %v484 = vsel %vm473, %v417, 0
      %v487 = vsel %vm473, %v418, 0
      %v490 = vsel %vm473, %v419, 0
      %v493 = vsel %vm473, %v420, 0
      %v496 = vsel %vm473, %v421, 0
      %v499 = vsel %vm473, %v422, 0
      %v502 = vsel %vm473, %v423, 0
      %v505 = vsel %vm473, %v424, 0
      %v508 = vsel %vm473, %v425, 0
      %v511 = vsel %vm473, %v426, 0
      %v514 = vsel %vm473, %v427, 0
      %v517 = vsel %vm473, %v428, 0
      %v520 = vsel %vm473, %v429, 0
      %v523 = vsel %vm473, %v430, 0
      %v526 = vsel %vm473, %v431, 0
      %v529 = vsel %vm473, %v432, 0
      %v532 = vsel %vm473, %v433, 0
      %v535 = vsel %vm473, %v434, 0
      %v538 = vsel %vm473, %v435, 0
      %v541 = vsel %vm473, %v436, 0
      %v544 = vsel %vm473, %v437, 0
      %v547 = vsel %vm473, %v438, 0
      %v550 = vsel %vm473, %v439, 0
      %v553 = vsel %vm473, %v440, 0
      %v556 = vsel %vm473, %v441, 0
      %v559 = vsel %vm473, %v442, 0
      %v562 = vsel %vm473, %v443, 0
      %v565 = vsel %vm473, %v444, 0
      %v568 = vsel %vm473, %v445, 0
      %v571 = vsel %vm473, %v446, 0
      %v574 = vsel %vm473, %v447, 0
      %v577 = vsel %vm473, %v448, 0
      %v580 = vsel %vm473, %v449, 0
      %v583 = vsel %vm473, %v450, 0
      %v586 = vsel %vm473, %v451, 0
      %v589 = vsel %vm473, %v452, 0
      %v592 = vsel %vm473, %v453, 0
      %v595 = vsel %vm473, %v454, 0
      %v598 = vsel %vm473, %v455, 0
      %v601 = vsel %vm473, %v456, 0
      %v604 = vsel %vm473, %v457, 0
      %v607 = vsel %vm473, %v458, 0
      %v610 = vsel %vm473, %v459, 0
      %v613 = vsel %vm473, %v460, 0
      %v616 = vsel %vm473, %v461, 0
      %v619 = vsel %vm473, %v462, 0
      %v622 = vsel %vm473, %v463, 0
      %v625 = vsel %vm473, %v464, 0
      %v628 = vsel %vm473, %v465, 0
      %v631 = vsel %vm473, %v466, 0
      %v634 = vsel %vm473, %v467, 0
      %vm636 = vcmask 1043456
      %v638 = vsel %vm636, %v468, 0
      %640 = vmatpush.msra.mxu0 0.0
      %641 = vmatpush.msra.mxu0 0.0
      %642 = vmatpush.msra.mxu0 0.0
      %643 = vmatpush.msra.mxu0 0.0
      %644 = vmatpush.msra.mxu0 0.0
      %645 = vmatpush.msra.mxu0 0.0
      %646 = vmatpush.msra.mxu0 0.0
      %647 = vmatpush.msra.mxu0 0.0
      %648 = vmatpush.msra.mxu0 0.0
      %649 = vmatpush.msra.mxu0 0.0
      %650 = vmatpush.msra.mxu0 0.0
      %651 = vmatpush.msra.mxu0 0.0
      %652 = vmatpush.msra.mxu0 0.0
      %653 = vmatpush.msra.mxu0 0.0
      %654 = vmatpush.msra.mxu0 0.0
      %v655 = vand.u32 %v638, 4294901760
      %656 = vmatpush.msra.mxu0 %v655
      %v657 = vand.u32 %v475, 4294901760
      %v658 = vsub.f32 %v475, %v657
      %v659 = vand.u32 %v658, 4294901760
      %v660 = vsub.f32 %v658, %v659
      %v661 = vand.u32 %v660, 4294901760
      %662 = vmatmul.f32.gmra.mxu0 %v661
      %v663 = vpop.f32.mrf.mxu0
      %v664 = vadd.f32 %v471, %v663
      %v665 = vand.u32 %v478, 4294901760
      %v666 = vsub.f32 %v478, %v665
      %v667 = vand.u32 %v666, 4294901760
      %v668 = vsub.f32 %v666, %v667
      %v669 = vand.u32 %v668, 4294901760
      %670 = vmatmul.f32.gmra.mxu0 %v669
      %v671 = vpop.f32.mrf.mxu0
      %v672 = vadd.f32 %v471, %v671
      %v673 = vand.u32 %v481, 4294901760
      %v674 = vsub.f32 %v481, %v673
      %v675 = vand.u32 %v674, 4294901760
      %v676 = vsub.f32 %v674, %v675
      %v677 = vand.u32 %v676, 4294901760
      %678 = vmatmul.f32.gmra.mxu0 %v677
      %v679 = vpop.f32.mrf.mxu0
      %v680 = vadd.f32 %v471, %v679
      %v681 = vand.u32 %v484, 4294901760
      %v682 = vsub.f32 %v484, %v681
      %v683 = vand.u32 %v682, 4294901760
      %v684 = vsub.f32 %v682, %v683
      %v685 = vand.u32 %v684, 4294901760
      %686 = vmatmul.f32.gmra.mxu0 %v685
      %v687 = vpop.f32.mrf.mxu0
      %v688 = vadd.f32 %v471, %v687
      %v689 = vand.u32 %v487, 4294901760
      %v690 = vsub.f32 %v487, %v689
      %v691 = vand.u32 %v690, 4294901760
      %v692 = vsub.f32 %v690, %v691
      %v693 = vand.u32 %v692, 4294901760
      %694 = vmatmul.f32.gmra.mxu0 %v693
      %v695 = vpop.f32.mrf.mxu0
      %v696 = vadd.f32 %v471, %v695
      %v697 = vand.u32 %v490, 4294901760
      %v698 = vsub.f32 %v490, %v697
      %v699 = vand.u32 %v698, 4294901760
      %v700 = vsub.f32 %v698, %v699
      %v701 = vand.u32 %v700, 4294901760
      %702 = vmatmul.f32.gmra.mxu0 %v701
      %v703 = vpop.f32.mrf.mxu0
      %v704 = vadd.f32 %v471, %v703
      %v705 = vand.u32 %v493, 4294901760
      %v706 = vsub.f32 %v493, %v705
      %v707 = vand.u32 %v706, 4294901760
      %v708 = vsub.f32 %v706, %v707
      %v709 = vand.u32 %v708, 4294901760
      %710 = vmatmul.f32.gmra.mxu0 %v709
      %v711 = vpop.f32.mrf.mxu0
      %v712 = vadd.f32 %v471, %v711
      %v713 = vand.u32 %v496, 4294901760
      %v714 = vsub.f32 %v496, %v713
      %v715 = vand.u32 %v714, 4294901760
      %v716 = vsub.f32 %v714, %v715
      %v717 = vand.u32 %v716, 4294901760
      %718 = vmatmul.f32.gmra.mxu0 %v717
      %v719 = vpop.f32.mrf.mxu0
      %v720 = vadd.f32 %v471, %v719
      %v721 = vand.u32 %v499, 4294901760
      %v722 = vsub.f32 %v499, %v721
      %v723 = vand.u32 %v722, 4294901760
      %v724 = vsub.f32 %v722, %v723
      %v725 = vand.u32 %v724, 4294901760
      %726 = vmatmul.f32.gmra.mxu0 %v725
      %v727 = vpop.f32.mrf.mxu0
      %v728 = vadd.f32 %v471, %v727
      %v729 = vand.u32 %v502, 4294901760
      %v730 = vsub.f32 %v502, %v729
      %v731 = vand.u32 %v730, 4294901760
      %v732 = vsub.f32 %v730, %v731
      %v733 = vand.u32 %v732, 4294901760
      %734 = vmatmul.f32.gmra.mxu0 %v733
      %v735 = vpop.f32.mrf.mxu0
      %v736 = vadd.f32 %v471, %v735
      %v737 = vand.u32 %v505, 4294901760
      %v738 = vsub.f32 %v505, %v737
      %v739 = vand.u32 %v738, 4294901760
      %v740 = vsub.f32 %v738, %v739
      %v741 = vand.u32 %v740, 4294901760
      %742 = vmatmul.f32.gmra.mxu0 %v741
      %v743 = vpop.f32.mrf.mxu0
      %v744 = vadd.f32 %v471, %v743
      %v745 = vand.u32 %v508, 4294901760
      %v746 = vsub.f32 %v508, %v745
      %v747 = vand.u32 %v746, 4294901760
      %v748 = vsub.f32 %v746, %v747
      %v749 = vand.u32 %v748, 4294901760
      %750 = vmatmul.f32.gmra.mxu0 %v749
      %v751 = vpop.f32.mrf.mxu0
      %v752 = vadd.f32 %v471, %v751
      %v753 = vand.u32 %v511, 4294901760
      %v754 = vsub.f32 %v511, %v753
      %v755 = vand.u32 %v754, 4294901760
      %v756 = vsub.f32 %v754, %v755
      %v757 = vand.u32 %v756, 4294901760
      %758 = vmatmul.f32.gmra.mxu0 %v757
      %v759 = vpop.f32.mrf.mxu0
      %v760 = vadd.f32 %v471, %v759
      %v761 = vand.u32 %v514, 4294901760
      %v762 = vsub.f32 %v514, %v761
      %v763 = vand.u32 %v762, 4294901760
      %v764 = vsub.f32 %v762, %v763
      %v765 = vand.u32 %v764, 4294901760
      %766 = vmatmul.f32.gmra.mxu0 %v765
      %v767 = vpop.f32.mrf.mxu0
      %v768 = vadd.f32 %v471, %v767
      %v769 = vand.u32 %v517, 4294901760
      %v770 = vsub.f32 %v517, %v769
      %v771 = vand.u32 %v770, 4294901760
      %v772 = vsub.f32 %v770, %v771
      %v773 = vand.u32 %v772, 4294901760
      %774 = vmatmul.f32.gmra.mxu0 %v773
      %v775 = vpop.f32.mrf.mxu0
      %v776 = vadd.f32 %v471, %v775
      %v777 = vand.u32 %v520, 4294901760
      %v778 = vsub.f32 %v520, %v777
      %v779 = vand.u32 %v778, 4294901760
      %v780 = vsub.f32 %v778, %v779
      %v781 = vand.u32 %v780, 4294901760
      %782 = vmatmul.f32.gmra.mxu0 %v781
      %v783 = vpop.f32.mrf.mxu0
      %v784 = vadd.f32 %v471, %v783
      %v785 = vand.u32 %v523, 4294901760
      %v786 = vsub.f32 %v523, %v785
      %v787 = vand.u32 %v786, 4294901760
      %v788 = vsub.f32 %v786, %v787
      %v789 = vand.u32 %v788, 4294901760
      %790 = vmatmul.f32.gmra.mxu0 %v789
      %v791 = vpop.f32.mrf.mxu0
      %v792 = vadd.f32 %v471, %v791
      %v793 = vand.u32 %v526, 4294901760
      %v794 = vsub.f32 %v526, %v793
      %v795 = vand.u32 %v794, 4294901760
      %v796 = vsub.f32 %v794, %v795
      %v797 = vand.u32 %v796, 4294901760
      %798 = vmatmul.f32.gmra.mxu0 %v797
      %v799 = vpop.f32.mrf.mxu0
      %v800 = vadd.f32 %v471, %v799
      %v801 = vand.u32 %v529, 4294901760
      %v802 = vsub.f32 %v529, %v801
      %v803 = vand.u32 %v802, 4294901760
      %v804 = vsub.f32 %v802, %v803
      %v805 = vand.u32 %v804, 4294901760
      %806 = vmatmul.f32.gmra.mxu0 %v805
      %v807 = vpop.f32.mrf.mxu0
      %v808 = vadd.f32 %v471, %v807
      %v809 = vand.u32 %v532, 4294901760
      %v810 = vsub.f32 %v532, %v809
      %v811 = vand.u32 %v810, 4294901760
      %v812 = vsub.f32 %v810, %v811
      %v813 = vand.u32 %v812, 4294901760
      %814 = vmatmul.f32.gmra.mxu0 %v813
      %v815 = vpop.f32.mrf.mxu0
      %v816 = vadd.f32 %v471, %v815
      %v817 = vand.u32 %v535, 4294901760
      %v818 = vsub.f32 %v535, %v817
      %v819 = vand.u32 %v818, 4294901760
      %v820 = vsub.f32 %v818, %v819
      %v821 = vand.u32 %v820, 4294901760
      %822 = vmatmul.f32.gmra.mxu0 %v821
      %v823 = vpop.f32.mrf.mxu0
      %v824 = vadd.f32 %v471, %v823
      %v825 = vand.u32 %v538, 4294901760
      %v826 = vsub.f32 %v538, %v825
      %v827 = vand.u32 %v826, 4294901760
      %v828 = vsub.f32 %v826, %v827
      %v829 = vand.u32 %v828, 4294901760
      %830 = vmatmul.f32.gmra.mxu0 %v829
      %v831 = vpop.f32.mrf.mxu0
      %v832 = vadd.f32 %v471, %v831
      %v833 = vand.u32 %v541, 4294901760
      %v834 = vsub.f32 %v541, %v833
      %v835 = vand.u32 %v834, 4294901760
      %v836 = vsub.f32 %v834, %v835
      %v837 = vand.u32 %v836, 4294901760
      %838 = vmatmul.f32.gmra.mxu0 %v837
      %v839 = vpop.f32.mrf.mxu0
      %v840 = vadd.f32 %v471, %v839
      %v841 = vand.u32 %v544, 4294901760
      %v842 = vsub.f32 %v544, %v841
      %v843 = vand.u32 %v842, 4294901760
      %v844 = vsub.f32 %v842, %v843
      %v845 = vand.u32 %v844, 4294901760
      %846 = vmatmul.f32.gmra.mxu0 %v845
      %v847 = vpop.f32.mrf.mxu0
      %v848 = vadd.f32 %v471, %v847
      %v849 = vand.u32 %v547, 4294901760
      %v850 = vsub.f32 %v547, %v849
      %v851 = vand.u32 %v850, 4294901760
      %v852 = vsub.f32 %v850, %v851
      %v853 = vand.u32 %v852, 4294901760
      %854 = vmatmul.f32.gmra.mxu0 %v853
      %v855 = vpop.f32.mrf.mxu0
      %v856 = vadd.f32 %v471, %v855
      %v857 = vand.u32 %v550, 4294901760
      %v858 = vsub.f32 %v550, %v857
      %v859 = vand.u32 %v858, 4294901760
      %v860 = vsub.f32 %v858, %v859
      %v861 = vand.u32 %v860, 4294901760
      %862 = vmatmul.f32.gmra.mxu0 %v861
      %v863 = vpop.f32.mrf.mxu0
      %v864 = vadd.f32 %v471, %v863
      %v865 = vand.u32 %v553, 4294901760
      %v866 = vsub.f32 %v553, %v865
      %v867 = vand.u32 %v866, 4294901760
      %v868 = vsub.f32 %v866, %v867
      %v869 = vand.u32 %v868, 4294901760
      %870 = vmatmul.f32.gmra.mxu0 %v869
      %v871 = vpop.f32.mrf.mxu0
      %v872 = vadd.f32 %v471, %v871
      %v873 = vand.u32 %v556, 4294901760
      %v874 = vsub.f32 %v556, %v873
      %v875 = vand.u32 %v874, 4294901760
      %v876 = vsub.f32 %v874, %v875
      %v877 = vand.u32 %v876, 4294901760
      %878 = vmatmul.f32.gmra.mxu0 %v877
      %v879 = vpop.f32.mrf.mxu0
      %v880 = vadd.f32 %v471, %v879
      %v881 = vand.u32 %v559, 4294901760
      %v882 = vsub.f32 %v559, %v881
      %v883 = vand.u32 %v882, 4294901760
      %v884 = vsub.f32 %v882, %v883
      %v885 = vand.u32 %v884, 4294901760
      %886 = vmatmul.f32.gmra.mxu0 %v885
      %v887 = vpop.f32.mrf.mxu0
      %v888 = vadd.f32 %v471, %v887
      %v889 = vand.u32 %v562, 4294901760
      %v890 = vsub.f32 %v562, %v889
      %v891 = vand.u32 %v890, 4294901760
      %v892 = vsub.f32 %v890, %v891
      %v893 = vand.u32 %v892, 4294901760
      %894 = vmatmul.f32.gmra.mxu0 %v893
      %v895 = vpop.f32.mrf.mxu0
      %v896 = vadd.f32 %v471, %v895
      %v897 = vand.u32 %v565, 4294901760
      %v898 = vsub.f32 %v565, %v897
      %v899 = vand.u32 %v898, 4294901760
      %v900 = vsub.f32 %v898, %v899
      %v901 = vand.u32 %v900, 4294901760
      %902 = vmatmul.f32.gmra.mxu0 %v901
      %v903 = vpop.f32.mrf.mxu0
      %v904 = vadd.f32 %v471, %v903
      %v905 = vand.u32 %v568, 4294901760
      %v906 = vsub.f32 %v568, %v905
      %v907 = vand.u32 %v906, 4294901760
      %v908 = vsub.f32 %v906, %v907
      %v909 = vand.u32 %v908, 4294901760
      %910 = vmatmul.f32.gmra.mxu0 %v909
      %v911 = vpop.f32.mrf.mxu0
      %v912 = vadd.f32 %v471, %v911
      %v913 = vand.u32 %v571, 4294901760
      %v914 = vsub.f32 %v571, %v913
      %v915 = vand.u32 %v914, 4294901760
      %v916 = vsub.f32 %v914, %v915
      %v917 = vand.u32 %v916, 4294901760
      %918 = vmatmul.f32.gmra.mxu0 %v917
      %v919 = vpop.f32.mrf.mxu0
      %v920 = vadd.f32 %v471, %v919
      %v921 = vand.u32 %v574, 4294901760
      %v922 = vsub.f32 %v574, %v921
      %v923 = vand.u32 %v922, 4294901760
      %v924 = vsub.f32 %v922, %v923
      %v925 = vand.u32 %v924, 4294901760
      %926 = vmatmul.f32.gmra.mxu0 %v925
      %v927 = vpop.f32.mrf.mxu0
      %v928 = vadd.f32 %v471, %v927
      %v929 = vand.u32 %v577, 4294901760
      %v930 = vsub.f32 %v577, %v929
      %v931 = vand.u32 %v930, 4294901760
      %v932 = vsub.f32 %v930, %v931
      %v933 = vand.u32 %v932, 4294901760
      %934 = vmatmul.f32.gmra.mxu0 %v933
      %v935 = vpop.f32.mrf.mxu0
      %v936 = vadd.f32 %v471, %v935
      %v937 = vand.u32 %v580, 4294901760
      %v938 = vsub.f32 %v580, %v937
      %v939 = vand.u32 %v938, 4294901760
      %v940 = vsub.f32 %v938, %v939
      %v941 = vand.u32 %v940, 4294901760
      %942 = vmatmul.f32.gmra.mxu0 %v941
      %v943 = vpop.f32.mrf.mxu0
      %v944 = vadd.f32 %v471, %v943
      %v945 = vand.u32 %v583, 4294901760
      %v946 = vsub.f32 %v583, %v945
      %v947 = vand.u32 %v946, 4294901760
      %v948 = vsub.f32 %v946, %v947
      %v949 = vand.u32 %v948, 4294901760
      %950 = vmatmul.f32.gmra.mxu0 %v949
      %v951 = vpop.f32.mrf.mxu0
      %v952 = vadd.f32 %v471, %v951
      %v953 = vand.u32 %v586, 4294901760
      %v954 = vsub.f32 %v586, %v953
      %v955 = vand.u32 %v954, 4294901760
      %v956 = vsub.f32 %v954, %v955
      %v957 = vand.u32 %v956, 4294901760
      %958 = vmatmul.f32.gmra.mxu0 %v957
      %v959 = vpop.f32.mrf.mxu0
      %v960 = vadd.f32 %v471, %v959
      %v961 = vand.u32 %v589, 4294901760
      %v962 = vsub.f32 %v589, %v961
      %v963 = vand.u32 %v962, 4294901760
      %v964 = vsub.f32 %v962, %v963
      %v965 = vand.u32 %v964, 4294901760
      %966 = vmatmul.f32.gmra.mxu0 %v965
      %v967 = vpop.f32.mrf.mxu0
      %v968 = vadd.f32 %v471, %v967
      %v969 = vand.u32 %v592, 4294901760
      %v970 = vsub.f32 %v592, %v969
      %v971 = vand.u32 %v970, 4294901760
      %v972 = vsub.f32 %v970, %v971
      %v973 = vand.u32 %v972, 4294901760
      %974 = vmatmul.f32.gmra.mxu0 %v973
      %v975 = vpop.f32.mrf.mxu0
      %v976 = vadd.f32 %v471, %v975
      %v977 = vand.u32 %v595, 4294901760
      %v978 = vsub.f32 %v595, %v977
      %v979 = vand.u32 %v978, 4294901760
      %v980 = vsub.f32 %v978, %v979
      %v981 = vand.u32 %v980, 4294901760
      %982 = vmatmul.f32.gmra.mxu0 %v981
      %v983 = vpop.f32.mrf.mxu0
      %v984 = vadd.f32 %v471, %v983
      %v985 = vand.u32 %v598, 4294901760
      %v986 = vsub.f32 %v598, %v985
      %v987 = vand.u32 %v986, 4294901760
      %v988 = vsub.f32 %v986, %v987
      %v989 = vand.u32 %v988, 4294901760
      %990 = vmatmul.f32.gmra.mxu0 %v989
      %v991 = vpop.f32.mrf.mxu0
      %v992 = vadd.f32 %v471, %v991
      %v993 = vand.u32 %v601, 4294901760
      %v994 = vsub.f32 %v601, %v993
      %v995 = vand.u32 %v994, 4294901760
      %v996 = vsub.f32 %v994, %v995
      %v997 = vand.u32 %v996, 4294901760
      %998 = vmatmul.f32.gmra.mxu0 %v997
      %v999 = vpop.f32.mrf.mxu0
      %v1000 = vadd.f32 %v471, %v999
      %v1001 = vand.u32 %v604, 4294901760
      %v1002 = vsub.f32 %v604, %v1001
      %v1003 = vand.u32 %v1002, 4294901760
      %v1004 = vsub.f32 %v1002, %v1003
      %v1005 = vand.u32 %v1004, 4294901760
      %1006 = vmatmul.f32.gmra.mxu0 %v1005
      %v1007 = vpop.f32.mrf.mxu0
      %v1008 = vadd.f32 %v471, %v1007
      %v1009 = vand.u32 %v607, 4294901760
      %v1010 = vsub.f32 %v607, %v1009
      %v1011 = vand.u32 %v1010, 4294901760
      %v1012 = vsub.f32 %v1010, %v1011
      %v1013 = vand.u32 %v1012, 4294901760
      %1014 = vmatmul.f32.gmra.mxu0 %v1013
      %v1015 = vpop.f32.mrf.mxu0
      %v1016 = vadd.f32 %v471, %v1015
      %v1017 = vand.u32 %v610, 4294901760
      %v1018 = vsub.f32 %v610, %v1017
      %v1019 = vand.u32 %v1018, 4294901760
      %v1020 = vsub.f32 %v1018, %v1019
      %v1021 = vand.u32 %v1020, 4294901760
      %1022 = vmatmul.f32.gmra.mxu0 %v1021
      %v1023 = vpop.f32.mrf.mxu0
      %v1024 = vadd.f32 %v471, %v1023
      %v1025 = vand.u32 %v613, 4294901760
      %v1026 = vsub.f32 %v613, %v1025
      %v1027 = vand.u32 %v1026, 4294901760
      %v1028 = vsub.f32 %v1026, %v1027
      %v1029 = vand.u32 %v1028, 4294901760
      %1030 = vmatmul.f32.gmra.mxu0 %v1029
      %v1031 = vpop.f32.mrf.mxu0
      %v1032 = vadd.f32 %v471, %v1031
      %v1033 = vand.u32 %v616, 4294901760
      %v1034 = vsub.f32 %v616, %v1033
      %v1035 = vand.u32 %v1034, 4294901760
      %v1036 = vsub.f32 %v1034, %v1035
      %v1037 = vand.u32 %v1036, 4294901760
      %1038 = vmatmul.f32.gmra.mxu0 %v1037
      %v1039 = vpop.f32.mrf.mxu0
      %v1040 = vadd.f32 %v471, %v1039
      %v1041 = vand.u32 %v619, 4294901760
      %v1042 = vsub.f32 %v619, %v1041
      %v1043 = vand.u32 %v1042, 4294901760
      %v1044 = vsub.f32 %v1042, %v1043
      %v1045 = vand.u32 %v1044, 4294901760
      %1046 = vmatmul.f32.gmra.mxu0 %v1045
      %v1047 = vpop.f32.mrf.mxu0
      %v1048 = vadd.f32 %v471, %v1047
      %v1049 = vand.u32 %v622, 4294901760
      %v1050 = vsub.f32 %v622, %v1049
      %v1051 = vand.u32 %v1050, 4294901760
      %v1052 = vsub.f32 %v1050, %v1051
      %v1053 = vand.u32 %v1052, 4294901760
      %1054 = vmatmul.f32.gmra.mxu0 %v1053
      %v1055 = vpop.f32.mrf.mxu0
      %v1056 = vadd.f32 %v471, %v1055
      %v1057 = vand.u32 %v625, 4294901760
      %v1058 = vsub.f32 %v625, %v1057
      %v1059 = vand.u32 %v1058, 4294901760
      %v1060 = vsub.f32 %v1058, %v1059
      %v1061 = vand.u32 %v1060, 4294901760
      %1062 = vmatmul.f32.gmra.mxu0 %v1061
      %v1063 = vpop.f32.mrf.mxu0
      %v1064 = vadd.f32 %v471, %v1063
      %v1065 = vand.u32 %v628, 4294901760
      %v1066 = vsub.f32 %v628, %v1065
      %v1067 = vand.u32 %v1066, 4294901760
      %v1068 = vsub.f32 %v1066, %v1067
      %v1069 = vand.u32 %v1068, 4294901760
      %1070 = vmatmul.f32.gmra.mxu0 %v1069
      %v1071 = vpop.f32.mrf.mxu0
      %v1072 = vadd.f32 %v471, %v1071
      %v1073 = vand.u32 %v631, 4294901760
      %v1074 = vsub.f32 %v631, %v1073
      %v1075 = vand.u32 %v1074, 4294901760
      %v1076 = vsub.f32 %v1074, %v1075
      %v1077 = vand.u32 %v1076, 4294901760
      %1078 = vmatmul.f32.gmra.mxu0 %v1077
      %v1079 = vpop.f32.mrf.mxu0
      %v1080 = vadd.f32 %v471, %v1079
      %v1081 = vand.u32 %v634, 4294901760
      %v1082 = vsub.f32 %v634, %v1081
      %v1083 = vand.u32 %v1082, 4294901760
      %v1084 = vsub.f32 %v1082, %v1083
      %v1085 = vand.u32 %v1084, 4294901760
      %1086 = vmatmul.f32.gmra.mxu0 %v1085
      %v1087 = vpop.f32.mrf.mxu0
      %v1088 = vadd.f32 %v471, %v1087
      %1089 = vdwg.mxu0
      %1090 = vmatpush.msra.mxu0 0.0
      %1091 = vmatpush.msra.mxu0 0.0
      %1092 = vmatpush.msra.mxu0 0.0
      %1093 = vmatpush.msra.mxu0 0.0
      %1094 = vmatpush.msra.mxu0 0.0
      %1095 = vmatpush.msra.mxu0 0.0
      %1096 = vmatpush.msra.mxu0 0.0
      %1097 = vmatpush.msra.mxu0 0.0
      %1098 = vmatpush.msra.mxu0 0.0
      %1099 = vmatpush.msra.mxu0 0.0
      %1100 = vmatpush.msra.mxu0 0.0
      %1101 = vmatpush.msra.mxu0 0.0
      %1102 = vmatpush.msra.mxu0 0.0
      %1103 = vmatpush.msra.mxu0 0.0
      %1104 = vmatpush.msra.mxu0 0.0
      %v1105 = vand.u32 %v638, 4294901760
      %v1106 = vsub.f32 %v638, %v1105
      %v1107 = vand.u32 %v1106, 4294901760
      %v1108 = vsub.f32 %v1106, %v1107
      %v1109 = vand.u32 %v1108, 4294901760
      %1110 = vmatpush.msra.mxu0 %v1109
      %v1111 = vand.u32 %v475, 4294901760
      %1112 = vmatmul.f32.gmra.mxu0 %v1111
      %v1113 = vpop.f32.mrf.mxu0
      %v1114 = vadd.f32 %v664, %v1113
      %v1115 = vand.u32 %v478, 4294901760
      %1116 = vmatmul.f32.gmra.mxu0 %v1115
      %v1117 = vpop.f32.mrf.mxu0
      %v1118 = vadd.f32 %v672, %v1117
      %v1119 = vand.u32 %v481, 4294901760
      %1120 = vmatmul.f32.gmra.mxu0 %v1119
      %v1121 = vpop.f32.mrf.mxu0
      %v1122 = vadd.f32 %v680, %v1121
      %v1123 = vand.u32 %v484, 4294901760
      %1124 = vmatmul.f32.gmra.mxu0 %v1123
      %v1125 = vpop.f32.mrf.mxu0
      %v1126 = vadd.f32 %v688, %v1125
      %v1127 = vand.u32 %v487, 4294901760
      %1128 = vmatmul.f32.gmra.mxu0 %v1127
      %v1129 = vpop.f32.mrf.mxu0
      %v1130 = vadd.f32 %v696, %v1129
      %v1131 = vand.u32 %v490, 4294901760
      %1132 = vmatmul.f32.gmra.mxu0 %v1131
      %v1133 = vpop.f32.mrf.mxu0
      %v1134 = vadd.f32 %v704, %v1133
      %v1135 = vand.u32 %v493, 4294901760
      %1136 = vmatmul.f32.gmra.mxu0 %v1135
      %v1137 = vpop.f32.mrf.mxu0
      %v1138 = vadd.f32 %v712, %v1137
      %v1139 = vand.u32 %v496, 4294901760
      %1140 = vmatmul.f32.gmra.mxu0 %v1139
      %v1141 = vpop.f32.mrf.mxu0
      %v1142 = vadd.f32 %v720, %v1141
      %v1143 = vand.u32 %v499, 4294901760
      %1144 = vmatmul.f32.gmra.mxu0 %v1143
      %v1145 = vpop.f32.mrf.mxu0
      %v1146 = vadd.f32 %v728, %v1145
      %v1147 = vand.u32 %v502, 4294901760
      %1148 = vmatmul.f32.gmra.mxu0 %v1147
      %v1149 = vpop.f32.mrf.mxu0
      %v1150 = vadd.f32 %v736, %v1149
      %v1151 = vand.u32 %v505, 4294901760
      %1152 = vmatmul.f32.gmra.mxu0 %v1151
      %v1153 = vpop.f32.mrf.mxu0
      %v1154 = vadd.f32 %v744, %v1153
      %v1155 = vand.u32 %v508, 4294901760
      %1156 = vmatmul.f32.gmra.mxu0 %v1155
      %v1157 = vpop.f32.mrf.mxu0
      %v1158 = vadd.f32 %v752, %v1157
      %v1159 = vand.u32 %v511, 4294901760
      %1160 = vmatmul.f32.gmra.mxu0 %v1159
      %v1161 = vpop.f32.mrf.mxu0
      %v1162 = vadd.f32 %v760, %v1161
      %v1163 = vand.u32 %v514, 4294901760
      %1164 = vmatmul.f32.gmra.mxu0 %v1163
      %v1165 = vpop.f32.mrf.mxu0
      %v1166 = vadd.f32 %v768, %v1165
      %v1167 = vand.u32 %v517, 4294901760
      %1168 = vmatmul.f32.gmra.mxu0 %v1167
      %v1169 = vpop.f32.mrf.mxu0
      %v1170 = vadd.f32 %v776, %v1169
      %v1171 = vand.u32 %v520, 4294901760
      %1172 = vmatmul.f32.gmra.mxu0 %v1171
      %v1173 = vpop.f32.mrf.mxu0
      %v1174 = vadd.f32 %v784, %v1173
      %v1175 = vand.u32 %v523, 4294901760
      %1176 = vmatmul.f32.gmra.mxu0 %v1175
      %v1177 = vpop.f32.mrf.mxu0
      %v1178 = vadd.f32 %v792, %v1177
      %v1179 = vand.u32 %v526, 4294901760
      %1180 = vmatmul.f32.gmra.mxu0 %v1179
      %v1181 = vpop.f32.mrf.mxu0
      %v1182 = vadd.f32 %v800, %v1181
      %v1183 = vand.u32 %v529, 4294901760
      %1184 = vmatmul.f32.gmra.mxu0 %v1183
      %v1185 = vpop.f32.mrf.mxu0
      %v1186 = vadd.f32 %v808, %v1185
      %v1187 = vand.u32 %v532, 4294901760
      %1188 = vmatmul.f32.gmra.mxu0 %v1187
      %v1189 = vpop.f32.mrf.mxu0
      %v1190 = vadd.f32 %v816, %v1189
      %v1191 = vand.u32 %v535, 4294901760
      %1192 = vmatmul.f32.gmra.mxu0 %v1191
      %v1193 = vpop.f32.mrf.mxu0
      %v1194 = vadd.f32 %v824, %v1193
      %v1195 = vand.u32 %v538, 4294901760
      %1196 = vmatmul.f32.gmra.mxu0 %v1195
      %v1197 = vpop.f32.mrf.mxu0
      %v1198 = vadd.f32 %v832, %v1197
      %v1199 = vand.u32 %v541, 4294901760
      %1200 = vmatmul.f32.gmra.mxu0 %v1199
      %v1201 = vpop.f32.mrf.mxu0
      %v1202 = vadd.f32 %v840, %v1201
      %v1203 = vand.u32 %v544, 4294901760
      %1204 = vmatmul.f32.gmra.mxu0 %v1203
      %v1205 = vpop.f32.mrf.mxu0
      %v1206 = vadd.f32 %v848, %v1205
      %v1207 = vand.u32 %v547, 4294901760
      %1208 = vmatmul.f32.gmra.mxu0 %v1207
      %v1209 = vpop.f32.mrf.mxu0
      %v1210 = vadd.f32 %v856, %v1209
      %v1211 = vand.u32 %v550, 4294901760
      %1212 = vmatmul.f32.gmra.mxu0 %v1211
      %v1213 = vpop.f32.mrf.mxu0
      %v1214 = vadd.f32 %v864, %v1213
      %v1215 = vand.u32 %v553, 4294901760
      %1216 = vmatmul.f32.gmra.mxu0 %v1215
      %v1217 = vpop.f32.mrf.mxu0
      %v1218 = vadd.f32 %v872, %v1217
      %v1219 = vand.u32 %v556, 4294901760
      %1220 = vmatmul.f32.gmra.mxu0 %v1219
      %v1221 = vpop.f32.mrf.mxu0
      %v1222 = vadd.f32 %v880, %v1221
      %v1223 = vand.u32 %v559, 4294901760
      %1224 = vmatmul.f32.gmra.mxu0 %v1223
      %v1225 = vpop.f32.mrf.mxu0
      %v1226 = vadd.f32 %v888, %v1225
      %v1227 = vand.u32 %v562, 4294901760
      %1228 = vmatmul.f32.gmra.mxu0 %v1227
      %v1229 = vpop.f32.mrf.mxu0
      %v1230 = vadd.f32 %v896, %v1229
      %v1231 = vand.u32 %v565, 4294901760
      %1232 = vmatmul.f32.gmra.mxu0 %v1231
      %v1233 = vpop.f32.mrf.mxu0
      %v1234 = vadd.f32 %v904, %v1233
      %v1235 = vand.u32 %v568, 4294901760
      %1236 = vmatmul.f32.gmra.mxu0 %v1235
      %v1237 = vpop.f32.mrf.mxu0
      %v1238 = vadd.f32 %v912, %v1237
      %v1239 = vand.u32 %v571, 4294901760
      %1240 = vmatmul.f32.gmra.mxu0 %v1239
      %v1241 = vpop.f32.mrf.mxu0
      %v1242 = vadd.f32 %v920, %v1241
      %v1243 = vand.u32 %v574, 4294901760
      %1244 = vmatmul.f32.gmra.mxu0 %v1243
      %v1245 = vpop.f32.mrf.mxu0
      %v1246 = vadd.f32 %v928, %v1245
      %v1247 = vand.u32 %v577, 4294901760
      %1248 = vmatmul.f32.gmra.mxu0 %v1247
      %v1249 = vpop.f32.mrf.mxu0
      %v1250 = vadd.f32 %v936, %v1249
      %v1251 = vand.u32 %v580, 4294901760
      %1252 = vmatmul.f32.gmra.mxu0 %v1251
      %v1253 = vpop.f32.mrf.mxu0
      %v1254 = vadd.f32 %v944, %v1253
      %v1255 = vand.u32 %v583, 4294901760
      %1256 = vmatmul.f32.gmra.mxu0 %v1255
      %v1257 = vpop.f32.mrf.mxu0
      %v1258 = vadd.f32 %v952, %v1257
      %v1259 = vand.u32 %v586, 4294901760
      %1260 = vmatmul.f32.gmra.mxu0 %v1259
      %v1261 = vpop.f32.mrf.mxu0
      %v1262 = vadd.f32 %v960, %v1261
      %v1263 = vand.u32 %v589, 4294901760
      %1264 = vmatmul.f32.gmra.mxu0 %v1263
      %v1265 = vpop.f32.mrf.mxu0
      %v1266 = vadd.f32 %v968, %v1265
      %v1267 = vand.u32 %v592, 4294901760
      %1268 = vmatmul.f32.gmra.mxu0 %v1267
      %v1269 = vpop.f32.mrf.mxu0
      %v1270 = vadd.f32 %v976, %v1269
      %v1271 = vand.u32 %v595, 4294901760
      %1272 = vmatmul.f32.gmra.mxu0 %v1271
      %v1273 = vpop.f32.mrf.mxu0
      %v1274 = vadd.f32 %v984, %v1273
      %v1275 = vand.u32 %v598, 4294901760
      %1276 = vmatmul.f32.gmra.mxu0 %v1275
      %v1277 = vpop.f32.mrf.mxu0
      %v1278 = vadd.f32 %v992, %v1277
      %v1279 = vand.u32 %v601, 4294901760
      %1280 = vmatmul.f32.gmra.mxu0 %v1279
      %v1281 = vpop.f32.mrf.mxu0
      %v1282 = vadd.f32 %v1000, %v1281
      %v1283 = vand.u32 %v604, 4294901760
      %1284 = vmatmul.f32.gmra.mxu0 %v1283
      %v1285 = vpop.f32.mrf.mxu0
      %v1286 = vadd.f32 %v1008, %v1285
      %v1287 = vand.u32 %v607, 4294901760
      %1288 = vmatmul.f32.gmra.mxu0 %v1287
      %v1289 = vpop.f32.mrf.mxu0
      %v1290 = vadd.f32 %v1016, %v1289
      %v1291 = vand.u32 %v610, 4294901760
      %1292 = vmatmul.f32.gmra.mxu0 %v1291
      %v1293 = vpop.f32.mrf.mxu0
      %v1294 = vadd.f32 %v1024, %v1293
      %v1295 = vand.u32 %v613, 4294901760
      %1296 = vmatmul.f32.gmra.mxu0 %v1295
      %v1297 = vpop.f32.mrf.mxu0
      %v1298 = vadd.f32 %v1032, %v1297
      %v1299 = vand.u32 %v616, 4294901760
      %1300 = vmatmul.f32.gmra.mxu0 %v1299
      %v1301 = vpop.f32.mrf.mxu0
      %v1302 = vadd.f32 %v1040, %v1301
      %v1303 = vand.u32 %v619, 4294901760
      %1304 = vmatmul.f32.gmra.mxu0 %v1303
      %v1305 = vpop.f32.mrf.mxu0
      %v1306 = vadd.f32 %v1048, %v1305
      %v1307 = vand.u32 %v622, 4294901760
      %1308 = vmatmul.f32.gmra.mxu0 %v1307
      %v1309 = vpop.f32.mrf.mxu0
      %v1310 = vadd.f32 %v1056, %v1309
      %v1311 = vand.u32 %v625, 4294901760
      %1312 = vmatmul.f32.gmra.mxu0 %v1311
      %v1313 = vpop.f32.mrf.mxu0
      %v1314 = vadd.f32 %v1064, %v1313
      %v1315 = vand.u32 %v628, 4294901760
      %1316 = vmatmul.f32.gmra.mxu0 %v1315
      %v1317 = vpop.f32.mrf.mxu0
      %v1318 = vadd.f32 %v1072, %v1317
      %v1319 = vand.u32 %v631, 4294901760
      %1320 = vmatmul.f32.gmra.mxu0 %v1319
      %v1321 = vpop.f32.mrf.mxu0
      %v1322 = vadd.f32 %v1080, %v1321
      %v1323 = vand.u32 %v634, 4294901760
      %1324 = vmatmul.f32.gmra.mxu0 %v1323
      %v1325 = vpop.f32.mrf.mxu0
      %v1326 = vadd.f32 %v1088, %v1325
      %1327 = vdwg.mxu0
      %1328 = vmatpush.msra.mxu0 0.0
      %1329 = vmatpush.msra.mxu0 0.0
      %1330 = vmatpush.msra.mxu0 0.0
      %1331 = vmatpush.msra.mxu0 0.0
      %1332 = vmatpush.msra.mxu0 0.0
      %1333 = vmatpush.msra.mxu0 0.0
      %1334 = vmatpush.msra.mxu0 0.0
      %1335 = vmatpush.msra.mxu0 0.0
      %1336 = vmatpush.msra.mxu0 0.0
      %1337 = vmatpush.msra.mxu0 0.0
      %1338 = vmatpush.msra.mxu0 0.0
      %1339 = vmatpush.msra.mxu0 0.0
      %1340 = vmatpush.msra.mxu0 0.0
      %1341 = vmatpush.msra.mxu0 0.0
      %1342 = vmatpush.msra.mxu0 0.0
      %v1343 = vand.u32 %v638, 4294901760
      %v1344 = vsub.f32 %v638, %v1343
      %1345 = vmatpush.msra.mxu0 %v1344
      %v1346 = vand.u32 %v475, 4294901760
      %v1347 = vsub.f32 %v475, %v1346
      %1348 = vmatmul.f32.gmra.mxu0 %v1347
      %v1349 = vpop.f32.mrf.mxu0
      %v1350 = vadd.f32 %v1114, %v1349
      %v1351 = vand.u32 %v478, 4294901760
      %v1352 = vsub.f32 %v478, %v1351
      %1353 = vmatmul.f32.gmra.mxu0 %v1352
      %v1354 = vpop.f32.mrf.mxu0
      %v1355 = vadd.f32 %v1118, %v1354
      %v1356 = vand.u32 %v481, 4294901760
      %v1357 = vsub.f32 %v481, %v1356
      %1358 = vmatmul.f32.gmra.mxu0 %v1357
      %v1359 = vpop.f32.mrf.mxu0
      %v1360 = vadd.f32 %v1122, %v1359
      %v1361 = vand.u32 %v484, 4294901760
      %v1362 = vsub.f32 %v484, %v1361
      %1363 = vmatmul.f32.gmra.mxu0 %v1362
      %v1364 = vpop.f32.mrf.mxu0
      %v1365 = vadd.f32 %v1126, %v1364
      %v1366 = vand.u32 %v487, 4294901760
      %v1367 = vsub.f32 %v487, %v1366
      %1368 = vmatmul.f32.gmra.mxu0 %v1367
      %v1369 = vpop.f32.mrf.mxu0
      %v1370 = vadd.f32 %v1130, %v1369
      %v1371 = vand.u32 %v490, 4294901760
      %v1372 = vsub.f32 %v490, %v1371
      %1373 = vmatmul.f32.gmra.mxu0 %v1372
      %v1374 = vpop.f32.mrf.mxu0
      %v1375 = vadd.f32 %v1134, %v1374
      %v1376 = vand.u32 %v493, 4294901760
      %v1377 = vsub.f32 %v493, %v1376
      %1378 = vmatmul.f32.gmra.mxu0 %v1377
      %v1379 = vpop.f32.mrf.mxu0
      %v1380 = vadd.f32 %v1138, %v1379
      %v1381 = vand.u32 %v496, 4294901760
      %v1382 = vsub.f32 %v496, %v1381
      %1383 = vmatmul.f32.gmra.mxu0 %v1382
      %v1384 = vpop.f32.mrf.mxu0
      %v1385 = vadd.f32 %v1142, %v1384
      %v1386 = vand.u32 %v499, 4294901760
      %v1387 = vsub.f32 %v499, %v1386
      %1388 = vmatmul.f32.gmra.mxu0 %v1387
      %v1389 = vpop.f32.mrf.mxu0
      %v1390 = vadd.f32 %v1146, %v1389
      %v1391 = vand.u32 %v502, 4294901760
      %v1392 = vsub.f32 %v502, %v1391
      %1393 = vmatmul.f32.gmra.mxu0 %v1392
      %v1394 = vpop.f32.mrf.mxu0
      %v1395 = vadd.f32 %v1150, %v1394
      %v1396 = vand.u32 %v505, 4294901760
      %v1397 = vsub.f32 %v505, %v1396
      %1398 = vmatmul.f32.gmra.mxu0 %v1397
      %v1399 = vpop.f32.mrf.mxu0
      %v1400 = vadd.f32 %v1154, %v1399
      %v1401 = vand.u32 %v508, 4294901760
      %v1402 = vsub.f32 %v508, %v1401
      %1403 = vmatmul.f32.gmra.mxu0 %v1402
      %v1404 = vpop.f32.mrf.mxu0
      %v1405 = vadd.f32 %v1158, %v1404
      %v1406 = vand.u32 %v511, 4294901760
      %v1407 = vsub.f32 %v511, %v1406
      %1408 = vmatmul.f32.gmra.mxu0 %v1407
      %v1409 = vpop.f32.mrf.mxu0
      %v1410 = vadd.f32 %v1162, %v1409
      %v1411 = vand.u32 %v514, 4294901760
      %v1412 = vsub.f32 %v514, %v1411
      %1413 = vmatmul.f32.gmra.mxu0 %v1412
      %v1414 = vpop.f32.mrf.mxu0
      %v1415 = vadd.f32 %v1166, %v1414
      %v1416 = vand.u32 %v517, 4294901760
      %v1417 = vsub.f32 %v517, %v1416
      %1418 = vmatmul.f32.gmra.mxu0 %v1417
      %v1419 = vpop.f32.mrf.mxu0
      %v1420 = vadd.f32 %v1170, %v1419
      %v1421 = vand.u32 %v520, 4294901760
      %v1422 = vsub.f32 %v520, %v1421
      %1423 = vmatmul.f32.gmra.mxu0 %v1422
      %v1424 = vpop.f32.mrf.mxu0
      %v1425 = vadd.f32 %v1174, %v1424
      %v1426 = vand.u32 %v523, 4294901760
      %v1427 = vsub.f32 %v523, %v1426
      %1428 = vmatmul.f32.gmra.mxu0 %v1427
      %v1429 = vpop.f32.mrf.mxu0
      %v1430 = vadd.f32 %v1178, %v1429
      %v1431 = vand.u32 %v526, 4294901760
      %v1432 = vsub.f32 %v526, %v1431
      %1433 = vmatmul.f32.gmra.mxu0 %v1432
      %v1434 = vpop.f32.mrf.mxu0
      %v1435 = vadd.f32 %v1182, %v1434
      %v1436 = vand.u32 %v529, 4294901760
      %v1437 = vsub.f32 %v529, %v1436
      %1438 = vmatmul.f32.gmra.mxu0 %v1437
      %v1439 = vpop.f32.mrf.mxu0
      %v1440 = vadd.f32 %v1186, %v1439
      %v1441 = vand.u32 %v532, 4294901760
      %v1442 = vsub.f32 %v532, %v1441
      %1443 = vmatmul.f32.gmra.mxu0 %v1442
      %v1444 = vpop.f32.mrf.mxu0
      %v1445 = vadd.f32 %v1190, %v1444
      %v1446 = vand.u32 %v535, 4294901760
      %v1447 = vsub.f32 %v535, %v1446
      %1448 = vmatmul.f32.gmra.mxu0 %v1447
      %v1449 = vpop.f32.mrf.mxu0
      %v1450 = vadd.f32 %v1194, %v1449
      %v1451 = vand.u32 %v538, 4294901760
      %v1452 = vsub.f32 %v538, %v1451
      %1453 = vmatmul.f32.gmra.mxu0 %v1452
      %v1454 = vpop.f32.mrf.mxu0
      %v1455 = vadd.f32 %v1198, %v1454
      %v1456 = vand.u32 %v541, 4294901760
      %v1457 = vsub.f32 %v541, %v1456
      %1458 = vmatmul.f32.gmra.mxu0 %v1457
      %v1459 = vpop.f32.mrf.mxu0
      %v1460 = vadd.f32 %v1202, %v1459
      %v1461 = vand.u32 %v544, 4294901760
      %v1462 = vsub.f32 %v544, %v1461
      %1463 = vmatmul.f32.gmra.mxu0 %v1462
      %v1464 = vpop.f32.mrf.mxu0
      %v1465 = vadd.f32 %v1206, %v1464
      %v1466 = vand.u32 %v547, 4294901760
      %v1467 = vsub.f32 %v547, %v1466
      %1468 = vmatmul.f32.gmra.mxu0 %v1467
      %v1469 = vpop.f32.mrf.mxu0
      %v1470 = vadd.f32 %v1210, %v1469
      %v1471 = vand.u32 %v550, 4294901760
      %v1472 = vsub.f32 %v550, %v1471
      %1473 = vmatmul.f32.gmra.mxu0 %v1472
      %v1474 = vpop.f32.mrf.mxu0
      %v1475 = vadd.f32 %v1214, %v1474
      %v1476 = vand.u32 %v553, 4294901760
      %v1477 = vsub.f32 %v553, %v1476
      %1478 = vmatmul.f32.gmra.mxu0 %v1477
      %v1479 = vpop.f32.mrf.mxu0
      %v1480 = vadd.f32 %v1218, %v1479
      %v1481 = vand.u32 %v556, 4294901760
      %v1482 = vsub.f32 %v556, %v1481
      %1483 = vmatmul.f32.gmra.mxu0 %v1482
      %v1484 = vpop.f32.mrf.mxu0
      %v1485 = vadd.f32 %v1222, %v1484
      %v1486 = vand.u32 %v559, 4294901760
      %v1487 = vsub.f32 %v559, %v1486
      %1488 = vmatmul.f32.gmra.mxu0 %v1487
      %v1489 = vpop.f32.mrf.mxu0
      %v1490 = vadd.f32 %v1226, %v1489
      %v1491 = vand.u32 %v562, 4294901760
      %v1492 = vsub.f32 %v562, %v1491
      %1493 = vmatmul.f32.gmra.mxu0 %v1492
      %v1494 = vpop.f32.mrf.mxu0
      %v1495 = vadd.f32 %v1230, %v1494
      %v1496 = vand.u32 %v565, 4294901760
      %v1497 = vsub.f32 %v565, %v1496
      %1498 = vmatmul.f32.gmra.mxu0 %v1497
      %v1499 = vpop.f32.mrf.mxu0
      %v1500 = vadd.f32 %v1234, %v1499
      %v1501 = vand.u32 %v568, 4294901760
      %v1502 = vsub.f32 %v568, %v1501
      %1503 = vmatmul.f32.gmra.mxu0 %v1502
      %v1504 = vpop.f32.mrf.mxu0
      %v1505 = vadd.f32 %v1238, %v1504
      %v1506 = vand.u32 %v571, 4294901760
      %v1507 = vsub.f32 %v571, %v1506
      %1508 = vmatmul.f32.gmra.mxu0 %v1507
      %v1509 = vpop.f32.mrf.mxu0
      %v1510 = vadd.f32 %v1242, %v1509
      %v1511 = vand.u32 %v574, 4294901760
      %v1512 = vsub.f32 %v574, %v1511
      %1513 = vmatmul.f32.gmra.mxu0 %v1512
      %v1514 = vpop.f32.mrf.mxu0
      %v1515 = vadd.f32 %v1246, %v1514
      %v1516 = vand.u32 %v577, 4294901760
      %v1517 = vsub.f32 %v577, %v1516
      %1518 = vmatmul.f32.gmra.mxu0 %v1517
      %v1519 = vpop.f32.mrf.mxu0
      %v1520 = vadd.f32 %v1250, %v1519
      %v1521 = vand.u32 %v580, 4294901760
      %v1522 = vsub.f32 %v580, %v1521
      %1523 = vmatmul.f32.gmra.mxu0 %v1522
      %v1524 = vpop.f32.mrf.mxu0
      %v1525 = vadd.f32 %v1254, %v1524
      %v1526 = vand.u32 %v583, 4294901760
      %v1527 = vsub.f32 %v583, %v1526
      %1528 = vmatmul.f32.gmra.mxu0 %v1527
      %v1529 = vpop.f32.mrf.mxu0
      %v1530 = vadd.f32 %v1258, %v1529
      %v1531 = vand.u32 %v586, 4294901760
      %v1532 = vsub.f32 %v586, %v1531
      %1533 = vmatmul.f32.gmra.mxu0 %v1532
      %v1534 = vpop.f32.mrf.mxu0
      %v1535 = vadd.f32 %v1262, %v1534
      %v1536 = vand.u32 %v589, 4294901760
      %v1537 = vsub.f32 %v589, %v1536
      %1538 = vmatmul.f32.gmra.mxu0 %v1537
      %v1539 = vpop.f32.mrf.mxu0
      %v1540 = vadd.f32 %v1266, %v1539
      %v1541 = vand.u32 %v592, 4294901760
      %v1542 = vsub.f32 %v592, %v1541
      %1543 = vmatmul.f32.gmra.mxu0 %v1542
      %v1544 = vpop.f32.mrf.mxu0
      %v1545 = vadd.f32 %v1270, %v1544
      %v1546 = vand.u32 %v595, 4294901760
      %v1547 = vsub.f32 %v595, %v1546
      %1548 = vmatmul.f32.gmra.mxu0 %v1547
      %v1549 = vpop.f32.mrf.mxu0
      %v1550 = vadd.f32 %v1274, %v1549
      %v1551 = vand.u32 %v598, 4294901760
      %v1552 = vsub.f32 %v598, %v1551
      %1553 = vmatmul.f32.gmra.mxu0 %v1552
      %v1554 = vpop.f32.mrf.mxu0
      %v1555 = vadd.f32 %v1278, %v1554
      %v1556 = vand.u32 %v601, 4294901760
      %v1557 = vsub.f32 %v601, %v1556
      %1558 = vmatmul.f32.gmra.mxu0 %v1557
      %v1559 = vpop.f32.mrf.mxu0
      %v1560 = vadd.f32 %v1282, %v1559
      %v1561 = vand.u32 %v604, 4294901760
      %v1562 = vsub.f32 %v604, %v1561
      %1563 = vmatmul.f32.gmra.mxu0 %v1562
      %v1564 = vpop.f32.mrf.mxu0
      %v1565 = vadd.f32 %v1286, %v1564
      %v1566 = vand.u32 %v607, 4294901760
      %v1567 = vsub.f32 %v607, %v1566
      %1568 = vmatmul.f32.gmra.mxu0 %v1567
      %v1569 = vpop.f32.mrf.mxu0
      %v1570 = vadd.f32 %v1290, %v1569
      %v1571 = vand.u32 %v610, 4294901760
      %v1572 = vsub.f32 %v610, %v1571
      %1573 = vmatmul.f32.gmra.mxu0 %v1572
      %v1574 = vpop.f32.mrf.mxu0
      %v1575 = vadd.f32 %v1294, %v1574
      %v1576 = vand.u32 %v613, 4294901760
      %v1577 = vsub.f32 %v613, %v1576
      %1578 = vmatmul.f32.gmra.mxu0 %v1577
      %v1579 = vpop.f32.mrf.mxu0
      %v1580 = vadd.f32 %v1298, %v1579
      %v1581 = vand.u32 %v616, 4294901760
      %v1582 = vsub.f32 %v616, %v1581
      %1583 = vmatmul.f32.gmra.mxu0 %v1582
      %v1584 = vpop.f32.mrf.mxu0
      %v1585 = vadd.f32 %v1302, %v1584
      %v1586 = vand.u32 %v619, 4294901760
      %v1587 = vsub.f32 %v619, %v1586
      %1588 = vmatmul.f32.gmra.mxu0 %v1587
      %v1589 = vpop.f32.mrf.mxu0
      %v1590 = vadd.f32 %v1306, %v1589
      %v1591 = vand.u32 %v622, 4294901760
      %v1592 = vsub.f32 %v622, %v1591
      %1593 = vmatmul.f32.gmra.mxu0 %v1592
      %v1594 = vpop.f32.mrf.mxu0
      %v1595 = vadd.f32 %v1310, %v1594
      %v1596 = vand.u32 %v625, 4294901760
      %v1597 = vsub.f32 %v625, %v1596
      %1598 = vmatmul.f32.gmra.mxu0 %v1597
      %v1599 = vpop.f32.mrf.mxu0
      %v1600 = vadd.f32 %v1314, %v1599
      %v1601 = vand.u32 %v628, 4294901760
      %v1602 = vsub.f32 %v628, %v1601
      %1603 = vmatmul.f32.gmra.mxu0 %v1602
      %v1604 = vpop.f32.mrf.mxu0
      %v1605 = vadd.f32 %v1318, %v1604
      %v1606 = vand.u32 %v631, 4294901760
      %v1607 = vsub.f32 %v631, %v1606
      %1608 = vmatmul.f32.gmra.mxu0 %v1607
      %v1609 = vpop.f32.mrf.mxu0
      %v1610 = vadd.f32 %v1322, %v1609
      %v1611 = vand.u32 %v634, 4294901760
      %v1612 = vsub.f32 %v634, %v1611
      %1613 = vmatmul.f32.gmra.mxu0 %v1612
      %v1614 = vpop.f32.mrf.mxu0
      %v1615 = vadd.f32 %v1326, %v1614
      %1616 = vdwg.mxu0
      %1617 = vmatpush.msra.mxu0 0.0
      %1618 = vmatpush.msra.mxu0 0.0
      %1619 = vmatpush.msra.mxu0 0.0
      %1620 = vmatpush.msra.mxu0 0.0
      %1621 = vmatpush.msra.mxu0 0.0
      %1622 = vmatpush.msra.mxu0 0.0
      %1623 = vmatpush.msra.mxu0 0.0
      %1624 = vmatpush.msra.mxu0 0.0
      %1625 = vmatpush.msra.mxu0 0.0
      %1626 = vmatpush.msra.mxu0 0.0
      %1627 = vmatpush.msra.mxu0 0.0
      %1628 = vmatpush.msra.mxu0 0.0
      %1629 = vmatpush.msra.mxu0 0.0
      %1630 = vmatpush.msra.mxu0 0.0
      %1631 = vmatpush.msra.mxu0 0.0
      %v1632 = vand.u32 %v638, 4294901760
      %1633 = vmatpush.msra.mxu0 %v1632
      %v1634 = vand.u32 %v475, 4294901760
      %v1635 = vsub.f32 %v475, %v1634
      %v1636 = vand.u32 %v1635, 4294901760
      %1637 = vmatmul.f32.gmra.mxu0 %v1636
      %v1638 = vpop.f32.mrf.mxu0
      %v1639 = vadd.f32 %v1350, %v1638
      %v1640 = vand.u32 %v478, 4294901760
      %v1641 = vsub.f32 %v478, %v1640
      %v1642 = vand.u32 %v1641, 4294901760
      %1643 = vmatmul.f32.gmra.mxu0 %v1642
      %v1644 = vpop.f32.mrf.mxu0
      %v1645 = vadd.f32 %v1355, %v1644
      %v1646 = vand.u32 %v481, 4294901760
      %v1647 = vsub.f32 %v481, %v1646
      %v1648 = vand.u32 %v1647, 4294901760
      %1649 = vmatmul.f32.gmra.mxu0 %v1648
      %v1650 = vpop.f32.mrf.mxu0
      %v1651 = vadd.f32 %v1360, %v1650
      %v1652 = vand.u32 %v484, 4294901760
      %v1653 = vsub.f32 %v484, %v1652
      %v1654 = vand.u32 %v1653, 4294901760
      %1655 = vmatmul.f32.gmra.mxu0 %v1654
      %v1656 = vpop.f32.mrf.mxu0
      %v1657 = vadd.f32 %v1365, %v1656
      %v1658 = vand.u32 %v487, 4294901760
      %v1659 = vsub.f32 %v487, %v1658
      %v1660 = vand.u32 %v1659, 4294901760
      %1661 = vmatmul.f32.gmra.mxu0 %v1660
      %v1662 = vpop.f32.mrf.mxu0
      %v1663 = vadd.f32 %v1370, %v1662
      %v1664 = vand.u32 %v490, 4294901760
      %v1665 = vsub.f32 %v490, %v1664
      %v1666 = vand.u32 %v1665, 4294901760
      %1667 = vmatmul.f32.gmra.mxu0 %v1666
      %v1668 = vpop.f32.mrf.mxu0
      %v1669 = vadd.f32 %v1375, %v1668
      %v1670 = vand.u32 %v493, 4294901760
      %v1671 = vsub.f32 %v493, %v1670
      %v1672 = vand.u32 %v1671, 4294901760
      %1673 = vmatmul.f32.gmra.mxu0 %v1672
      %v1674 = vpop.f32.mrf.mxu0
      %v1675 = vadd.f32 %v1380, %v1674
      %v1676 = vand.u32 %v496, 4294901760
      %v1677 = vsub.f32 %v496, %v1676
      %v1678 = vand.u32 %v1677, 4294901760
      %1679 = vmatmul.f32.gmra.mxu0 %v1678
      %v1680 = vpop.f32.mrf.mxu0
      %v1681 = vadd.f32 %v1385, %v1680
      %v1682 = vand.u32 %v499, 4294901760
      %v1683 = vsub.f32 %v499, %v1682
      %v1684 = vand.u32 %v1683, 4294901760
      %1685 = vmatmul.f32.gmra.mxu0 %v1684
      %v1686 = vpop.f32.mrf.mxu0
      %v1687 = vadd.f32 %v1390, %v1686
      %v1688 = vand.u32 %v502, 4294901760
      %v1689 = vsub.f32 %v502, %v1688
      %v1690 = vand.u32 %v1689, 4294901760
      %1691 = vmatmul.f32.gmra.mxu0 %v1690
      %v1692 = vpop.f32.mrf.mxu0
      %v1693 = vadd.f32 %v1395, %v1692
      %v1694 = vand.u32 %v505, 4294901760
      %v1695 = vsub.f32 %v505, %v1694
      %v1696 = vand.u32 %v1695, 4294901760
      %1697 = vmatmul.f32.gmra.mxu0 %v1696
      %v1698 = vpop.f32.mrf.mxu0
      %v1699 = vadd.f32 %v1400, %v1698
      %v1700 = vand.u32 %v508, 4294901760
      %v1701 = vsub.f32 %v508, %v1700
      %v1702 = vand.u32 %v1701, 4294901760
      %1703 = vmatmul.f32.gmra.mxu0 %v1702
      %v1704 = vpop.f32.mrf.mxu0
      %v1705 = vadd.f32 %v1405, %v1704
      %v1706 = vand.u32 %v511, 4294901760
      %v1707 = vsub.f32 %v511, %v1706
      %v1708 = vand.u32 %v1707, 4294901760
      %1709 = vmatmul.f32.gmra.mxu0 %v1708
      %v1710 = vpop.f32.mrf.mxu0
      %v1711 = vadd.f32 %v1410, %v1710
      %v1712 = vand.u32 %v514, 4294901760
      %v1713 = vsub.f32 %v514, %v1712
      %v1714 = vand.u32 %v1713, 4294901760
      %1715 = vmatmul.f32.gmra.mxu0 %v1714
      %v1716 = vpop.f32.mrf.mxu0
      %v1717 = vadd.f32 %v1415, %v1716
      %v1718 = vand.u32 %v517, 4294901760
      %v1719 = vsub.f32 %v517, %v1718
      %v1720 = vand.u32 %v1719, 4294901760
      %1721 = vmatmul.f32.gmra.mxu0 %v1720
      %v1722 = vpop.f32.mrf.mxu0
      %v1723 = vadd.f32 %v1420, %v1722
      %v1724 = vand.u32 %v520, 4294901760
      %v1725 = vsub.f32 %v520, %v1724
      %v1726 = vand.u32 %v1725, 4294901760
      %1727 = vmatmul.f32.gmra.mxu0 %v1726
      %v1728 = vpop.f32.mrf.mxu0
      %v1729 = vadd.f32 %v1425, %v1728
      %v1730 = vand.u32 %v523, 4294901760
      %v1731 = vsub.f32 %v523, %v1730
      %v1732 = vand.u32 %v1731, 4294901760
      %1733 = vmatmul.f32.gmra.mxu0 %v1732
      %v1734 = vpop.f32.mrf.mxu0
      %v1735 = vadd.f32 %v1430, %v1734
      %v1736 = vand.u32 %v526, 4294901760
      %v1737 = vsub.f32 %v526, %v1736
      %v1738 = vand.u32 %v1737, 4294901760
      %1739 = vmatmul.f32.gmra.mxu0 %v1738
      %v1740 = vpop.f32.mrf.mxu0
      %v1741 = vadd.f32 %v1435, %v1740
      %v1742 = vand.u32 %v529, 4294901760
      %v1743 = vsub.f32 %v529, %v1742
      %v1744 = vand.u32 %v1743, 4294901760
      %1745 = vmatmul.f32.gmra.mxu0 %v1744
      %v1746 = vpop.f32.mrf.mxu0
      %v1747 = vadd.f32 %v1440, %v1746
      %v1748 = vand.u32 %v532, 4294901760
      %v1749 = vsub.f32 %v532, %v1748
      %v1750 = vand.u32 %v1749, 4294901760
      %1751 = vmatmul.f32.gmra.mxu0 %v1750
      %v1752 = vpop.f32.mrf.mxu0
      %v1753 = vadd.f32 %v1445, %v1752
      %v1754 = vand.u32 %v535, 4294901760
      %v1755 = vsub.f32 %v535, %v1754
      %v1756 = vand.u32 %v1755, 4294901760
      %1757 = vmatmul.f32.gmra.mxu0 %v1756
      %v1758 = vpop.f32.mrf.mxu0
      %v1759 = vadd.f32 %v1450, %v1758
      %v1760 = vand.u32 %v538, 4294901760
      %v1761 = vsub.f32 %v538, %v1760
      %v1762 = vand.u32 %v1761, 4294901760
      %1763 = vmatmul.f32.gmra.mxu0 %v1762
      %v1764 = vpop.f32.mrf.mxu0
      %v1765 = vadd.f32 %v1455, %v1764
      %v1766 = vand.u32 %v541, 4294901760
      %v1767 = vsub.f32 %v541, %v1766
      %v1768 = vand.u32 %v1767, 4294901760
      %1769 = vmatmul.f32.gmra.mxu0 %v1768
      %v1770 = vpop.f32.mrf.mxu0
      %v1771 = vadd.f32 %v1460, %v1770
      %v1772 = vand.u32 %v544, 4294901760
      %v1773 = vsub.f32 %v544, %v1772
      %v1774 = vand.u32 %v1773, 4294901760
      %1775 = vmatmul.f32.gmra.mxu0 %v1774
      %v1776 = vpop.f32.mrf.mxu0
      %v1777 = vadd.f32 %v1465, %v1776
      %v1778 = vand.u32 %v547, 4294901760
      %v1779 = vsub.f32 %v547, %v1778
      %v1780 = vand.u32 %v1779, 4294901760
      %1781 = vmatmul.f32.gmra.mxu0 %v1780
      %v1782 = vpop.f32.mrf.mxu0
      %v1783 = vadd.f32 %v1470, %v1782
      %v1784 = vand.u32 %v550, 4294901760
      %v1785 = vsub.f32 %v550, %v1784
      %v1786 = vand.u32 %v1785, 4294901760
      %1787 = vmatmul.f32.gmra.mxu0 %v1786
      %v1788 = vpop.f32.mrf.mxu0
      %v1789 = vadd.f32 %v1475, %v1788
      %v1790 = vand.u32 %v553, 4294901760
      %v1791 = vsub.f32 %v553, %v1790
      %v1792 = vand.u32 %v1791, 4294901760
      %1793 = vmatmul.f32.gmra.mxu0 %v1792
      %v1794 = vpop.f32.mrf.mxu0
      %v1795 = vadd.f32 %v1480, %v1794
      %v1796 = vand.u32 %v556, 4294901760
      %v1797 = vsub.f32 %v556, %v1796
      %v1798 = vand.u32 %v1797, 4294901760
      %1799 = vmatmul.f32.gmra.mxu0 %v1798
      %v1800 = vpop.f32.mrf.mxu0
      %v1801 = vadd.f32 %v1485, %v1800
      %v1802 = vand.u32 %v559, 4294901760
      %v1803 = vsub.f32 %v559, %v1802
      %v1804 = vand.u32 %v1803, 4294901760
      %1805 = vmatmul.f32.gmra.mxu0 %v1804
      %v1806 = vpop.f32.mrf.mxu0
      %v1807 = vadd.f32 %v1490, %v1806
      %v1808 = vand.u32 %v562, 4294901760
      %v1809 = vsub.f32 %v562, %v1808
      %v1810 = vand.u32 %v1809, 4294901760
      %1811 = vmatmul.f32.gmra.mxu0 %v1810
      %v1812 = vpop.f32.mrf.mxu0
      %v1813 = vadd.f32 %v1495, %v1812
      %v1814 = vand.u32 %v565, 4294901760
      %v1815 = vsub.f32 %v565, %v1814
      %v1816 = vand.u32 %v1815, 4294901760
      %1817 = vmatmul.f32.gmra.mxu0 %v1816
      %v1818 = vpop.f32.mrf.mxu0
      %v1819 = vadd.f32 %v1500, %v1818
      %v1820 = vand.u32 %v568, 4294901760
      %v1821 = vsub.f32 %v568, %v1820
      %v1822 = vand.u32 %v1821, 4294901760
      %1823 = vmatmul.f32.gmra.mxu0 %v1822
      %v1824 = vpop.f32.mrf.mxu0
      %v1825 = vadd.f32 %v1505, %v1824
      %v1826 = vand.u32 %v571, 4294901760
      %v1827 = vsub.f32 %v571, %v1826
      %v1828 = vand.u32 %v1827, 4294901760
      %1829 = vmatmul.f32.gmra.mxu0 %v1828
      %v1830 = vpop.f32.mrf.mxu0
      %v1831 = vadd.f32 %v1510, %v1830
      %v1832 = vand.u32 %v574, 4294901760
      %v1833 = vsub.f32 %v574, %v1832
      %v1834 = vand.u32 %v1833, 4294901760
      %1835 = vmatmul.f32.gmra.mxu0 %v1834
      %v1836 = vpop.f32.mrf.mxu0
      %v1837 = vadd.f32 %v1515, %v1836
      %v1838 = vand.u32 %v577, 4294901760
      %v1839 = vsub.f32 %v577, %v1838
      %v1840 = vand.u32 %v1839, 4294901760
      %1841 = vmatmul.f32.gmra.mxu0 %v1840
      %v1842 = vpop.f32.mrf.mxu0
      %v1843 = vadd.f32 %v1520, %v1842
      %v1844 = vand.u32 %v580, 4294901760
      %v1845 = vsub.f32 %v580, %v1844
      %v1846 = vand.u32 %v1845, 4294901760
      %1847 = vmatmul.f32.gmra.mxu0 %v1846
      %v1848 = vpop.f32.mrf.mxu0
      %v1849 = vadd.f32 %v1525, %v1848
      %v1850 = vand.u32 %v583, 4294901760
      %v1851 = vsub.f32 %v583, %v1850
      %v1852 = vand.u32 %v1851, 4294901760
      %1853 = vmatmul.f32.gmra.mxu0 %v1852
      %v1854 = vpop.f32.mrf.mxu0
      %v1855 = vadd.f32 %v1530, %v1854
      %v1856 = vand.u32 %v586, 4294901760
      %v1857 = vsub.f32 %v586, %v1856
      %v1858 = vand.u32 %v1857, 4294901760
      %1859 = vmatmul.f32.gmra.mxu0 %v1858
      %v1860 = vpop.f32.mrf.mxu0
      %v1861 = vadd.f32 %v1535, %v1860
      %v1862 = vand.u32 %v589, 4294901760
      %v1863 = vsub.f32 %v589, %v1862
      %v1864 = vand.u32 %v1863, 4294901760
      %1865 = vmatmul.f32.gmra.mxu0 %v1864
      %v1866 = vpop.f32.mrf.mxu0
      %v1867 = vadd.f32 %v1540, %v1866
      %v1868 = vand.u32 %v592, 4294901760
      %v1869 = vsub.f32 %v592, %v1868
      %v1870 = vand.u32 %v1869, 4294901760
      %1871 = vmatmul.f32.gmra.mxu0 %v1870
      %v1872 = vpop.f32.mrf.mxu0
      %v1873 = vadd.f32 %v1545, %v1872
      %v1874 = vand.u32 %v595, 4294901760
      %v1875 = vsub.f32 %v595, %v1874
      %v1876 = vand.u32 %v1875, 4294901760
      %1877 = vmatmul.f32.gmra.mxu0 %v1876
      %v1878 = vpop.f32.mrf.mxu0
      %v1879 = vadd.f32 %v1550, %v1878
      %v1880 = vand.u32 %v598, 4294901760
      %v1881 = vsub.f32 %v598, %v1880
      %v1882 = vand.u32 %v1881, 4294901760
      %1883 = vmatmul.f32.gmra.mxu0 %v1882
      %v1884 = vpop.f32.mrf.mxu0
      %v1885 = vadd.f32 %v1555, %v1884
      %v1886 = vand.u32 %v601, 4294901760
      %v1887 = vsub.f32 %v601, %v1886
      %v1888 = vand.u32 %v1887, 4294901760
      %1889 = vmatmul.f32.gmra.mxu0 %v1888
      %v1890 = vpop.f32.mrf.mxu0
      %v1891 = vadd.f32 %v1560, %v1890
      %v1892 = vand.u32 %v604, 4294901760
      %v1893 = vsub.f32 %v604, %v1892
      %v1894 = vand.u32 %v1893, 4294901760
      %1895 = vmatmul.f32.gmra.mxu0 %v1894
      %v1896 = vpop.f32.mrf.mxu0
      %v1897 = vadd.f32 %v1565, %v1896
      %v1898 = vand.u32 %v607, 4294901760
      %v1899 = vsub.f32 %v607, %v1898
      %v1900 = vand.u32 %v1899, 4294901760
      %1901 = vmatmul.f32.gmra.mxu0 %v1900
      %v1902 = vpop.f32.mrf.mxu0
      %v1903 = vadd.f32 %v1570, %v1902
      %v1904 = vand.u32 %v610, 4294901760
      %v1905 = vsub.f32 %v610, %v1904
      %v1906 = vand.u32 %v1905, 4294901760
      %1907 = vmatmul.f32.gmra.mxu0 %v1906
      %v1908 = vpop.f32.mrf.mxu0
      %v1909 = vadd.f32 %v1575, %v1908
      %v1910 = vand.u32 %v613, 4294901760
      %v1911 = vsub.f32 %v613, %v1910
      %v1912 = vand.u32 %v1911, 4294901760
      %1913 = vmatmul.f32.gmra.mxu0 %v1912
      %v1914 = vpop.f32.mrf.mxu0
      %v1915 = vadd.f32 %v1580, %v1914
      %v1916 = vand.u32 %v616, 4294901760
      %v1917 = vsub.f32 %v616, %v1916
      %v1918 = vand.u32 %v1917, 4294901760
      %1919 = vmatmul.f32.gmra.mxu0 %v1918
      %v1920 = vpop.f32.mrf.mxu0
      %v1921 = vadd.f32 %v1585, %v1920
      %v1922 = vand.u32 %v619, 4294901760
      %v1923 = vsub.f32 %v619, %v1922
      %v1924 = vand.u32 %v1923, 4294901760
      %1925 = vmatmul.f32.gmra.mxu0 %v1924
      %v1926 = vpop.f32.mrf.mxu0
      %v1927 = vadd.f32 %v1590, %v1926
      %v1928 = vand.u32 %v622, 4294901760
      %v1929 = vsub.f32 %v622, %v1928
      %v1930 = vand.u32 %v1929, 4294901760
      %1931 = vmatmul.f32.gmra.mxu0 %v1930
      %v1932 = vpop.f32.mrf.mxu0
      %v1933 = vadd.f32 %v1595, %v1932
      %v1934 = vand.u32 %v625, 4294901760
      %v1935 = vsub.f32 %v625, %v1934
      %v1936 = vand.u32 %v1935, 4294901760
      %1937 = vmatmul.f32.gmra.mxu0 %v1936
      %v1938 = vpop.f32.mrf.mxu0
      %v1939 = vadd.f32 %v1600, %v1938
      %v1940 = vand.u32 %v628, 4294901760
      %v1941 = vsub.f32 %v628, %v1940
      %v1942 = vand.u32 %v1941, 4294901760
      %1943 = vmatmul.f32.gmra.mxu0 %v1942
      %v1944 = vpop.f32.mrf.mxu0
      %v1945 = vadd.f32 %v1605, %v1944
      %v1946 = vand.u32 %v631, 4294901760
      %v1947 = vsub.f32 %v631, %v1946
      %v1948 = vand.u32 %v1947, 4294901760
      %1949 = vmatmul.f32.gmra.mxu0 %v1948
      %v1950 = vpop.f32.mrf.mxu0
      %v1951 = vadd.f32 %v1610, %v1950
      %v1952 = vand.u32 %v634, 4294901760
      %v1953 = vsub.f32 %v634, %v1952
      %v1954 = vand.u32 %v1953, 4294901760
      %1955 = vmatmul.f32.gmra.mxu0 %v1954
      %v1956 = vpop.f32.mrf.mxu0
      %v1957 = vadd.f32 %v1615, %v1956
      %1958 = vdwg.mxu0
      %1959 = vmatpush.msra.mxu0 0.0
      %1960 = vmatpush.msra.mxu0 0.0
      %1961 = vmatpush.msra.mxu0 0.0
      %1962 = vmatpush.msra.mxu0 0.0
      %1963 = vmatpush.msra.mxu0 0.0
      %1964 = vmatpush.msra.mxu0 0.0
      %1965 = vmatpush.msra.mxu0 0.0
      %1966 = vmatpush.msra.mxu0 0.0
      %1967 = vmatpush.msra.mxu0 0.0
      %1968 = vmatpush.msra.mxu0 0.0
      %1969 = vmatpush.msra.mxu0 0.0
      %1970 = vmatpush.msra.mxu0 0.0
      %1971 = vmatpush.msra.mxu0 0.0
      %1972 = vmatpush.msra.mxu0 0.0
      %1973 = vmatpush.msra.mxu0 0.0
      %v1974 = vand.u32 %v638, 4294901760
      %v1975 = vsub.f32 %v638, %v1974
      %v1976 = vand.u32 %v1975, 4294901760
      %1977 = vmatpush.msra.mxu0 %v1976
      %v1978 = vand.u32 %v475, 4294901760
      %1979 = vmatmul.f32.gmra.mxu0 %v1978
      %v1980 = vpop.f32.mrf.mxu0
      %v1981 = vadd.f32 %v1639, %v1980
      %v1982 = vand.u32 %v478, 4294901760
      %1983 = vmatmul.f32.gmra.mxu0 %v1982
      %v1984 = vpop.f32.mrf.mxu0
      %v1985 = vadd.f32 %v1645, %v1984
      %v1986 = vand.u32 %v481, 4294901760
      %1987 = vmatmul.f32.gmra.mxu0 %v1986
      %v1988 = vpop.f32.mrf.mxu0
      %v1989 = vadd.f32 %v1651, %v1988
      %v1990 = vand.u32 %v484, 4294901760
      %1991 = vmatmul.f32.gmra.mxu0 %v1990
      %v1992 = vpop.f32.mrf.mxu0
      %v1993 = vadd.f32 %v1657, %v1992
      %v1994 = vand.u32 %v487, 4294901760
      %1995 = vmatmul.f32.gmra.mxu0 %v1994
      %v1996 = vpop.f32.mrf.mxu0
      %v1997 = vadd.f32 %v1663, %v1996
      %v1998 = vand.u32 %v490, 4294901760
      %1999 = vmatmul.f32.gmra.mxu0 %v1998
      %v2000 = vpop.f32.mrf.mxu0
      %v2001 = vadd.f32 %v1669, %v2000
      %v2002 = vand.u32 %v493, 4294901760
      %2003 = vmatmul.f32.gmra.mxu0 %v2002
      %v2004 = vpop.f32.mrf.mxu0
      %v2005 = vadd.f32 %v1675, %v2004
      %v2006 = vand.u32 %v496, 4294901760
      %2007 = vmatmul.f32.gmra.mxu0 %v2006
      %v2008 = vpop.f32.mrf.mxu0
      %v2009 = vadd.f32 %v1681, %v2008
      %v2010 = vand.u32 %v499, 4294901760
      %2011 = vmatmul.f32.gmra.mxu0 %v2010
      %v2012 = vpop.f32.mrf.mxu0
      %v2013 = vadd.f32 %v1687, %v2012
      %v2014 = vand.u32 %v502, 4294901760
      %2015 = vmatmul.f32.gmra.mxu0 %v2014
      %v2016 = vpop.f32.mrf.mxu0
      %v2017 = vadd.f32 %v1693, %v2016
      %v2018 = vand.u32 %v505, 4294901760
      %2019 = vmatmul.f32.gmra.mxu0 %v2018
      %v2020 = vpop.f32.mrf.mxu0
      %v2021 = vadd.f32 %v1699, %v2020
      %v2022 = vand.u32 %v508, 4294901760
      %2023 = vmatmul.f32.gmra.mxu0 %v2022
      %v2024 = vpop.f32.mrf.mxu0
      %v2025 = vadd.f32 %v1705, %v2024
      %v2026 = vand.u32 %v511, 4294901760
      %2027 = vmatmul.f32.gmra.mxu0 %v2026
      %v2028 = vpop.f32.mrf.mxu0
      %v2029 = vadd.f32 %v1711, %v2028
      %v2030 = vand.u32 %v514, 4294901760
      %2031 = vmatmul.f32.gmra.mxu0 %v2030
      %v2032 = vpop.f32.mrf.mxu0
      %v2033 = vadd.f32 %v1717, %v2032
      %v2034 = vand.u32 %v517, 4294901760
      %2035 = vmatmul.f32.gmra.mxu0 %v2034
      %v2036 = vpop.f32.mrf.mxu0
      %v2037 = vadd.f32 %v1723, %v2036
      %v2038 = vand.u32 %v520, 4294901760
      %2039 = vmatmul.f32.gmra.mxu0 %v2038
      %v2040 = vpop.f32.mrf.mxu0
      %v2041 = vadd.f32 %v1729, %v2040
      %v2042 = vand.u32 %v523, 4294901760
      %2043 = vmatmul.f32.gmra.mxu0 %v2042
      %v2044 = vpop.f32.mrf.mxu0
      %v2045 = vadd.f32 %v1735, %v2044
      %v2046 = vand.u32 %v526, 4294901760
      %2047 = vmatmul.f32.gmra.mxu0 %v2046
      %v2048 = vpop.f32.mrf.mxu0
      %v2049 = vadd.f32 %v1741, %v2048
      %v2050 = vand.u32 %v529, 4294901760
      %2051 = vmatmul.f32.gmra.mxu0 %v2050
      %v2052 = vpop.f32.mrf.mxu0
      %v2053 = vadd.f32 %v1747, %v2052
      %v2054 = vand.u32 %v532, 4294901760
      %2055 = vmatmul.f32.gmra.mxu0 %v2054
      %v2056 = vpop.f32.mrf.mxu0
      %v2057 = vadd.f32 %v1753, %v2056
      %v2058 = vand.u32 %v535, 4294901760
      %2059 = vmatmul.f32.gmra.mxu0 %v2058
      %v2060 = vpop.f32.mrf.mxu0
      %v2061 = vadd.f32 %v1759, %v2060
      %v2062 = vand.u32 %v538, 4294901760
      %2063 = vmatmul.f32.gmra.mxu0 %v2062
      %v2064 = vpop.f32.mrf.mxu0
      %v2065 = vadd.f32 %v1765, %v2064
      %v2066 = vand.u32 %v541, 4294901760
      %2067 = vmatmul.f32.gmra.mxu0 %v2066
      %v2068 = vpop.f32.mrf.mxu0
      %v2069 = vadd.f32 %v1771, %v2068
      %v2070 = vand.u32 %v544, 4294901760
      %2071 = vmatmul.f32.gmra.mxu0 %v2070
      %v2072 = vpop.f32.mrf.mxu0
      %v2073 = vadd.f32 %v1777, %v2072
      %v2074 = vand.u32 %v547, 4294901760
      %2075 = vmatmul.f32.gmra.mxu0 %v2074
      %v2076 = vpop.f32.mrf.mxu0
      %v2077 = vadd.f32 %v1783, %v2076
      %v2078 = vand.u32 %v550, 4294901760
      %2079 = vmatmul.f32.gmra.mxu0 %v2078
      %v2080 = vpop.f32.mrf.mxu0
      %v2081 = vadd.f32 %v1789, %v2080
      %v2082 = vand.u32 %v553, 4294901760
      %2083 = vmatmul.f32.gmra.mxu0 %v2082
      %v2084 = vpop.f32.mrf.mxu0
      %v2085 = vadd.f32 %v1795, %v2084
      %v2086 = vand.u32 %v556, 4294901760
      %2087 = vmatmul.f32.gmra.mxu0 %v2086
      %v2088 = vpop.f32.mrf.mxu0
      %v2089 = vadd.f32 %v1801, %v2088
      %v2090 = vand.u32 %v559, 4294901760
      %2091 = vmatmul.f32.gmra.mxu0 %v2090
      %v2092 = vpop.f32.mrf.mxu0
      %v2093 = vadd.f32 %v1807, %v2092
      %v2094 = vand.u32 %v562, 4294901760
      %2095 = vmatmul.f32.gmra.mxu0 %v2094
      %v2096 = vpop.f32.mrf.mxu0
      %v2097 = vadd.f32 %v1813, %v2096
      %v2098 = vand.u32 %v565, 4294901760
      %2099 = vmatmul.f32.gmra.mxu0 %v2098
      %v2100 = vpop.f32.mrf.mxu0
      %v2101 = vadd.f32 %v1819, %v2100
      %v2102 = vand.u32 %v568, 4294901760
      %2103 = vmatmul.f32.gmra.mxu0 %v2102
      %v2104 = vpop.f32.mrf.mxu0
      %v2105 = vadd.f32 %v1825, %v2104
      %v2106 = vand.u32 %v571, 4294901760
      %2107 = vmatmul.f32.gmra.mxu0 %v2106
      %v2108 = vpop.f32.mrf.mxu0
      %v2109 = vadd.f32 %v1831, %v2108
      %v2110 = vand.u32 %v574, 4294901760
      %2111 = vmatmul.f32.gmra.mxu0 %v2110
      %v2112 = vpop.f32.mrf.mxu0
      %v2113 = vadd.f32 %v1837, %v2112
      %v2114 = vand.u32 %v577, 4294901760
      %2115 = vmatmul.f32.gmra.mxu0 %v2114
      %v2116 = vpop.f32.mrf.mxu0
      %v2117 = vadd.f32 %v1843, %v2116
      %v2118 = vand.u32 %v580, 4294901760
      %2119 = vmatmul.f32.gmra.mxu0 %v2118
      %v2120 = vpop.f32.mrf.mxu0
      %v2121 = vadd.f32 %v1849, %v2120
      %v2122 = vand.u32 %v583, 4294901760
      %2123 = vmatmul.f32.gmra.mxu0 %v2122
      %v2124 = vpop.f32.mrf.mxu0
      %v2125 = vadd.f32 %v1855, %v2124
      %v2126 = vand.u32 %v586, 4294901760
      %2127 = vmatmul.f32.gmra.mxu0 %v2126
      %v2128 = vpop.f32.mrf.mxu0
      %v2129 = vadd.f32 %v1861, %v2128
      %v2130 = vand.u32 %v589, 4294901760
      %2131 = vmatmul.f32.gmra.mxu0 %v2130
      %v2132 = vpop.f32.mrf.mxu0
      %v2133 = vadd.f32 %v1867, %v2132
      %v2134 = vand.u32 %v592, 4294901760
      %2135 = vmatmul.f32.gmra.mxu0 %v2134
      %v2136 = vpop.f32.mrf.mxu0
      %v2137 = vadd.f32 %v1873, %v2136
      %v2138 = vand.u32 %v595, 4294901760
      %2139 = vmatmul.f32.gmra.mxu0 %v2138
      %v2140 = vpop.f32.mrf.mxu0
      %v2141 = vadd.f32 %v1879, %v2140
      %v2142 = vand.u32 %v598, 4294901760
      %2143 = vmatmul.f32.gmra.mxu0 %v2142
      %v2144 = vpop.f32.mrf.mxu0
      %v2145 = vadd.f32 %v1885, %v2144
      %v2146 = vand.u32 %v601, 4294901760
      %2147 = vmatmul.f32.gmra.mxu0 %v2146
      %v2148 = vpop.f32.mrf.mxu0
      %v2149 = vadd.f32 %v1891, %v2148
      %v2150 = vand.u32 %v604, 4294901760
      %2151 = vmatmul.f32.gmra.mxu0 %v2150
      %v2152 = vpop.f32.mrf.mxu0
      %v2153 = vadd.f32 %v1897, %v2152
      %v2154 = vand.u32 %v607, 4294901760
      %2155 = vmatmul.f32.gmra.mxu0 %v2154
      %v2156 = vpop.f32.mrf.mxu0
      %v2157 = vadd.f32 %v1903, %v2156
      %v2158 = vand.u32 %v610, 4294901760
      %2159 = vmatmul.f32.gmra.mxu0 %v2158
      %v2160 = vpop.f32.mrf.mxu0
      %v2161 = vadd.f32 %v1909, %v2160
      %v2162 = vand.u32 %v613, 4294901760
      %2163 = vmatmul.f32.gmra.mxu0 %v2162
      %v2164 = vpop.f32.mrf.mxu0
      %v2165 = vadd.f32 %v1915, %v2164
      %v2166 = vand.u32 %v616, 4294901760
      %2167 = vmatmul.f32.gmra.mxu0 %v2166
      %v2168 = vpop.f32.mrf.mxu0
      %v2169 = vadd.f32 %v1921, %v2168
      %v2170 = vand.u32 %v619, 4294901760
      %2171 = vmatmul.f32.gmra.mxu0 %v2170
      %v2172 = vpop.f32.mrf.mxu0
      %v2173 = vadd.f32 %v1927, %v2172
      %v2174 = vand.u32 %v622, 4294901760
      %2175 = vmatmul.f32.gmra.mxu0 %v2174
      %v2176 = vpop.f32.mrf.mxu0
      %v2177 = vadd.f32 %v1933, %v2176
      %v2178 = vand.u32 %v625, 4294901760
      %2179 = vmatmul.f32.gmra.mxu0 %v2178
      %v2180 = vpop.f32.mrf.mxu0
      %v2181 = vadd.f32 %v1939, %v2180
      %v2182 = vand.u32 %v628, 4294901760
      %2183 = vmatmul.f32.gmra.mxu0 %v2182
      %v2184 = vpop.f32.mrf.mxu0
      %v2185 = vadd.f32 %v1945, %v2184
      %v2186 = vand.u32 %v631, 4294901760
      %2187 = vmatmul.f32.gmra.mxu0 %v2186
      %v2188 = vpop.f32.mrf.mxu0
      %v2189 = vadd.f32 %v1951, %v2188
      %v2190 = vand.u32 %v634, 4294901760
      %2191 = vmatmul.f32.gmra.mxu0 %v2190
      %v2192 = vpop.f32.mrf.mxu0
      %v2193 = vadd.f32 %v1957, %v2192
      %2194 = vdwg.mxu0
      %2195 = vmatpush.msra.mxu0 0.0
      %2196 = vmatpush.msra.mxu0 0.0
      %2197 = vmatpush.msra.mxu0 0.0
      %2198 = vmatpush.msra.mxu0 0.0
      %2199 = vmatpush.msra.mxu0 0.0
      %2200 = vmatpush.msra.mxu0 0.0
      %2201 = vmatpush.msra.mxu0 0.0
      %2202 = vmatpush.msra.mxu0 0.0
      %2203 = vmatpush.msra.mxu0 0.0
      %2204 = vmatpush.msra.mxu0 0.0
      %2205 = vmatpush.msra.mxu0 0.0
      %2206 = vmatpush.msra.mxu0 0.0
      %2207 = vmatpush.msra.mxu0 0.0
      %2208 = vmatpush.msra.mxu0 0.0
      %2209 = vmatpush.msra.mxu0 0.0
      %v2210 = vand.u32 %v638, 4294901760
      %2211 = vmatpush.msra.mxu0 %v2210
      %v2212 = vand.u32 %v475, 4294901760
      %2213 = vmatmul.f32.gmra.mxu0 %v2212
      %v2214 = vpop.f32.mrf.mxu0
      %v2215 = vadd.f32 %v1981, %v2214
      %v2216 = vand.u32 %v478, 4294901760
      %2217 = vmatmul.f32.gmra.mxu0 %v2216
      %v2218 = vpop.f32.mrf.mxu0
      %v2219 = vadd.f32 %v1985, %v2218
      %v2220 = vand.u32 %v481, 4294901760
      %2221 = vmatmul.f32.gmra.mxu0 %v2220
      %v2222 = vpop.f32.mrf.mxu0
      %v2223 = vadd.f32 %v1989, %v2222
      %v2224 = vand.u32 %v484, 4294901760
      %2225 = vmatmul.f32.gmra.mxu0 %v2224
      %v2226 = vpop.f32.mrf.mxu0
      %v2227 = vadd.f32 %v1993, %v2226
      %v2228 = vand.u32 %v487, 4294901760
      %2229 = vmatmul.f32.gmra.mxu0 %v2228
      %v2230 = vpop.f32.mrf.mxu0
      %v2231 = vadd.f32 %v1997, %v2230
      %v2232 = vand.u32 %v490, 4294901760
      %2233 = vmatmul.f32.gmra.mxu0 %v2232
      %v2234 = vpop.f32.mrf.mxu0
      %v2235 = vadd.f32 %v2001, %v2234
      %v2236 = vand.u32 %v493, 4294901760
      %2237 = vmatmul.f32.gmra.mxu0 %v2236
      %v2238 = vpop.f32.mrf.mxu0
      %v2239 = vadd.f32 %v2005, %v2238
      %v2240 = vand.u32 %v496, 4294901760
      %2241 = vmatmul.f32.gmra.mxu0 %v2240
      %v2242 = vpop.f32.mrf.mxu0
      %v2243 = vadd.f32 %v2009, %v2242
      %v2244 = vand.u32 %v499, 4294901760
      %2245 = vmatmul.f32.gmra.mxu0 %v2244
      %v2246 = vpop.f32.mrf.mxu0
      %v2247 = vadd.f32 %v2013, %v2246
      %v2248 = vand.u32 %v502, 4294901760
      %2249 = vmatmul.f32.gmra.mxu0 %v2248
      %v2250 = vpop.f32.mrf.mxu0
      %v2251 = vadd.f32 %v2017, %v2250
      %v2252 = vand.u32 %v505, 4294901760
      %2253 = vmatmul.f32.gmra.mxu0 %v2252
      %v2254 = vpop.f32.mrf.mxu0
      %v2255 = vadd.f32 %v2021, %v2254
      %v2256 = vand.u32 %v508, 4294901760
      %2257 = vmatmul.f32.gmra.mxu0 %v2256
      %v2258 = vpop.f32.mrf.mxu0
      %v2259 = vadd.f32 %v2025, %v2258
      %v2260 = vand.u32 %v511, 4294901760
      %2261 = vmatmul.f32.gmra.mxu0 %v2260
      %v2262 = vpop.f32.mrf.mxu0
      %v2263 = vadd.f32 %v2029, %v2262
      %v2264 = vand.u32 %v514, 4294901760
      %2265 = vmatmul.f32.gmra.mxu0 %v2264
      %v2266 = vpop.f32.mrf.mxu0
      %v2267 = vadd.f32 %v2033, %v2266
      %v2268 = vand.u32 %v517, 4294901760
      %2269 = vmatmul.f32.gmra.mxu0 %v2268
      %v2270 = vpop.f32.mrf.mxu0
      %v2271 = vadd.f32 %v2037, %v2270
      %v2272 = vand.u32 %v520, 4294901760
      %2273 = vmatmul.f32.gmra.mxu0 %v2272
      %v2274 = vpop.f32.mrf.mxu0
      %v2275 = vadd.f32 %v2041, %v2274
      %v2276 = vand.u32 %v523, 4294901760
      %2277 = vmatmul.f32.gmra.mxu0 %v2276
      %v2278 = vpop.f32.mrf.mxu0
      %v2279 = vadd.f32 %v2045, %v2278
      %v2280 = vand.u32 %v526, 4294901760
      %2281 = vmatmul.f32.gmra.mxu0 %v2280
      %v2282 = vpop.f32.mrf.mxu0
      %v2283 = vadd.f32 %v2049, %v2282
      %v2284 = vand.u32 %v529, 4294901760
      %2285 = vmatmul.f32.gmra.mxu0 %v2284
      %v2286 = vpop.f32.mrf.mxu0
      %v2287 = vadd.f32 %v2053, %v2286
      %v2288 = vand.u32 %v532, 4294901760
      %2289 = vmatmul.f32.gmra.mxu0 %v2288
      %v2290 = vpop.f32.mrf.mxu0
      %v2291 = vadd.f32 %v2057, %v2290
      %v2292 = vand.u32 %v535, 4294901760
      %2293 = vmatmul.f32.gmra.mxu0 %v2292
      %v2294 = vpop.f32.mrf.mxu0
      %v2295 = vadd.f32 %v2061, %v2294
      %v2296 = vand.u32 %v538, 4294901760
      %2297 = vmatmul.f32.gmra.mxu0 %v2296
      %v2298 = vpop.f32.mrf.mxu0
      %v2299 = vadd.f32 %v2065, %v2298
      %v2300 = vand.u32 %v541, 4294901760
      %2301 = vmatmul.f32.gmra.mxu0 %v2300
      %v2302 = vpop.f32.mrf.mxu0
      %v2303 = vadd.f32 %v2069, %v2302
      %v2304 = vand.u32 %v544, 4294901760
      %2305 = vmatmul.f32.gmra.mxu0 %v2304
      %v2306 = vpop.f32.mrf.mxu0
      %v2307 = vadd.f32 %v2073, %v2306
      %v2308 = vand.u32 %v547, 4294901760
      %2309 = vmatmul.f32.gmra.mxu0 %v2308
      %v2310 = vpop.f32.mrf.mxu0
      %v2311 = vadd.f32 %v2077, %v2310
      %v2312 = vand.u32 %v550, 4294901760
      %2313 = vmatmul.f32.gmra.mxu0 %v2312
      %v2314 = vpop.f32.mrf.mxu0
      %v2315 = vadd.f32 %v2081, %v2314
      %v2316 = vand.u32 %v553, 4294901760
      %2317 = vmatmul.f32.gmra.mxu0 %v2316
      %v2318 = vpop.f32.mrf.mxu0
      %v2319 = vadd.f32 %v2085, %v2318
      %v2320 = vand.u32 %v556, 4294901760
      %2321 = vmatmul.f32.gmra.mxu0 %v2320
      %v2322 = vpop.f32.mrf.mxu0
      %v2323 = vadd.f32 %v2089, %v2322
      %v2324 = vand.u32 %v559, 4294901760
      %2325 = vmatmul.f32.gmra.mxu0 %v2324
      %v2326 = vpop.f32.mrf.mxu0
      %v2327 = vadd.f32 %v2093, %v2326
      %v2328 = vand.u32 %v562, 4294901760
      %2329 = vmatmul.f32.gmra.mxu0 %v2328
      %v2330 = vpop.f32.mrf.mxu0
      %v2331 = vadd.f32 %v2097, %v2330
      %v2332 = vand.u32 %v565, 4294901760
      %2333 = vmatmul.f32.gmra.mxu0 %v2332
      %v2334 = vpop.f32.mrf.mxu0
      %v2335 = vadd.f32 %v2101, %v2334
      %v2336 = vand.u32 %v568, 4294901760
      %2337 = vmatmul.f32.gmra.mxu0 %v2336
      %v2338 = vpop.f32.mrf.mxu0
      %v2339 = vadd.f32 %v2105, %v2338
      %v2340 = vand.u32 %v571, 4294901760
      %2341 = vmatmul.f32.gmra.mxu0 %v2340
      %v2342 = vpop.f32.mrf.mxu0
      %v2343 = vadd.f32 %v2109, %v2342
      %v2344 = vand.u32 %v574, 4294901760
      %2345 = vmatmul.f32.gmra.mxu0 %v2344
      %v2346 = vpop.f32.mrf.mxu0
      %v2347 = vadd.f32 %v2113, %v2346
      %v2348 = vand.u32 %v577, 4294901760
      %2349 = vmatmul.f32.gmra.mxu0 %v2348
      %v2350 = vpop.f32.mrf.mxu0
      %v2351 = vadd.f32 %v2117, %v2350
      %v2352 = vand.u32 %v580, 4294901760
      %2353 = vmatmul.f32.gmra.mxu0 %v2352
      %v2354 = vpop.f32.mrf.mxu0
      %v2355 = vadd.f32 %v2121, %v2354
      %v2356 = vand.u32 %v583, 4294901760
      %2357 = vmatmul.f32.gmra.mxu0 %v2356
      %v2358 = vpop.f32.mrf.mxu0
      %v2359 = vadd.f32 %v2125, %v2358
      %v2360 = vand.u32 %v586, 4294901760
      %2361 = vmatmul.f32.gmra.mxu0 %v2360
      %v2362 = vpop.f32.mrf.mxu0
      %v2363 = vadd.f32 %v2129, %v2362
      %v2364 = vand.u32 %v589, 4294901760
      %2365 = vmatmul.f32.gmra.mxu0 %v2364
      %v2366 = vpop.f32.mrf.mxu0
      %v2367 = vadd.f32 %v2133, %v2366
      %v2368 = vand.u32 %v592, 4294901760
      %2369 = vmatmul.f32.gmra.mxu0 %v2368
      %v2370 = vpop.f32.mrf.mxu0
      %v2371 = vadd.f32 %v2137, %v2370
      %v2372 = vand.u32 %v595, 4294901760
      %2373 = vmatmul.f32.gmra.mxu0 %v2372
      %v2374 = vpop.f32.mrf.mxu0
      %v2375 = vadd.f32 %v2141, %v2374
      %v2376 = vand.u32 %v598, 4294901760
      %2377 = vmatmul.f32.gmra.mxu0 %v2376
      %v2378 = vpop.f32.mrf.mxu0
      %v2379 = vadd.f32 %v2145, %v2378
      %v2380 = vand.u32 %v601, 4294901760
      %2381 = vmatmul.f32.gmra.mxu0 %v2380
      %v2382 = vpop.f32.mrf.mxu0
      %v2383 = vadd.f32 %v2149, %v2382
      %v2384 = vand.u32 %v604, 4294901760
      %2385 = vmatmul.f32.gmra.mxu0 %v2384
      %v2386 = vpop.f32.mrf.mxu0
      %v2387 = vadd.f32 %v2153, %v2386
      %v2388 = vand.u32 %v607, 4294901760
      %2389 = vmatmul.f32.gmra.mxu0 %v2388
      %v2390 = vpop.f32.mrf.mxu0
      %v2391 = vadd.f32 %v2157, %v2390
      %v2392 = vand.u32 %v610, 4294901760
      %2393 = vmatmul.f32.gmra.mxu0 %v2392
      %v2394 = vpop.f32.mrf.mxu0
      %v2395 = vadd.f32 %v2161, %v2394
      %v2396 = vand.u32 %v613, 4294901760
      %2397 = vmatmul.f32.gmra.mxu0 %v2396
      %v2398 = vpop.f32.mrf.mxu0
      %v2399 = vadd.f32 %v2165, %v2398
      %v2400 = vand.u32 %v616, 4294901760
      %2401 = vmatmul.f32.gmra.mxu0 %v2400
      %v2402 = vpop.f32.mrf.mxu0
      %v2403 = vadd.f32 %v2169, %v2402
      %v2404 = vand.u32 %v619, 4294901760
      %2405 = vmatmul.f32.gmra.mxu0 %v2404
      %v2406 = vpop.f32.mrf.mxu0
      %v2407 = vadd.f32 %v2173, %v2406
      %v2408 = vand.u32 %v622, 4294901760
      %2409 = vmatmul.f32.gmra.mxu0 %v2408
      %v2410 = vpop.f32.mrf.mxu0
      %v2411 = vadd.f32 %v2177, %v2410
      %v2412 = vand.u32 %v625, 4294901760
      %2413 = vmatmul.f32.gmra.mxu0 %v2412
      %v2414 = vpop.f32.mrf.mxu0
      %v2415 = vadd.f32 %v2181, %v2414
      %v2416 = vand.u32 %v628, 4294901760
      %2417 = vmatmul.f32.gmra.mxu0 %v2416
      %v2418 = vpop.f32.mrf.mxu0
      %v2419 = vadd.f32 %v2185, %v2418
      %v2420 = vand.u32 %v631, 4294901760
      %2421 = vmatmul.f32.gmra.mxu0 %v2420
      %v2422 = vpop.f32.mrf.mxu0
      %v2423 = vadd.f32 %v2189, %v2422
      %v2424 = vand.u32 %v634, 4294901760
      %2425 = vmatmul.f32.gmra.mxu0 %v2424
      %v2426 = vpop.f32.mrf.mxu0
      %v2427 = vadd.f32 %v2193, %v2426
      %2428 = vdwg.mxu0
      %v2429 = vadd.f32 %v2215, 3.0
      %v2430 = vadd.f32 %v2219, 3.0
      %v2431 = vadd.f32 %v2223, 3.0
      %v2432 = vadd.f32 %v2227, 3.0
      %v2433 = vadd.f32 %v2231, 3.0
      %v2434 = vadd.f32 %v2235, 3.0
      %v2435 = vadd.f32 %v2239, 3.0
      %v2436 = vadd.f32 %v2243, 3.0
      %v2437 = vadd.f32 %v2247, 3.0
      %v2438 = vadd.f32 %v2251, 3.0
      %v2439 = vadd.f32 %v2255, 3.0
      %v2440 = vadd.f32 %v2259, 3.0
      %v2441 = vadd.f32 %v2263, 3.0
      %v2442 = vadd.f32 %v2267, 3.0
      %v2443 = vadd.f32 %v2271, 3.0
      %v2444 = vadd.f32 %v2275, 3.0
      %v2445 = vadd.f32 %v2279, 3.0
      %v2446 = vadd.f32 %v2283, 3.0
      %v2447 = vadd.f32 %v2287, 3.0
      %v2448 = vadd.f32 %v2291, 3.0
      %v2449 = vadd.f32 %v2295, 3.0
      %v2450 = vadd.f32 %v2299, 3.0
      %v2451 = vadd.f32 %v2303, 3.0
      %v2452 = vadd.f32 %v2307, 3.0
      %v2453 = vadd.f32 %v2311, 3.0
      %v2454 = vadd.f32 %v2315, 3.0
      %v2455 = vadd.f32 %v2319, 3.0
      %v2456 = vadd.f32 %v2323, 3.0
      %v2457 = vadd.f32 %v2327, 3.0
      %v2458 = vadd.f32 %v2331, 3.0
      %v2459 = vadd.f32 %v2335, 3.0
      %v2460 = vadd.f32 %v2339, 3.0
      %v2461 = vadd.f32 %v2343, 3.0
      %v2462 = vadd.f32 %v2347, 3.0
      %v2463 = vadd.f32 %v2351, 3.0
      %v2464 = vadd.f32 %v2355, 3.0
      %v2465 = vadd.f32 %v2359, 3.0
      %v2466 = vadd.f32 %v2363, 3.0
      %v2467 = vadd.f32 %v2367, 3.0
      %v2468 = vadd.f32 %v2371, 3.0
      %v2469 = vadd.f32 %v2375, 3.0
      %v2470 = vadd.f32 %v2379, 3.0
      %v2471 = vadd.f32 %v2383, 3.0
      %v2472 = vadd.f32 %v2387, 3.0
      %v2473 = vadd.f32 %v2391, 3.0
      %v2474 = vadd.f32 %v2395, 3.0
      %v2475 = vadd.f32 %v2399, 3.0
      %v2476 = vadd.f32 %v2403, 3.0
      %v2477 = vadd.f32 %v2407, 3.0
      %v2478 = vadd.f32 %v2411, 3.0
      %v2479 = vadd.f32 %v2415, 3.0
      %v2480 = vadd.f32 %v2419, 3.0
      %v2481 = vadd.f32 %v2423, 3.0
      %v2482 = vadd.f32 %v2427, 3.0
      %v2483 = vmax.f32 %v2429, 0.0
      %v2484 = vmax.f32 %v2430, 0.0
      %v2485 = vmax.f32 %v2431, 0.0
      %v2486 = vmax.f32 %v2432, 0.0
      %v2487 = vmax.f32 %v2433, 0.0
      %v2488 = vmax.f32 %v2434, 0.0
      %v2489 = vmax.f32 %v2435, 0.0
      %v2490 = vmax.f32 %v2436, 0.0
      %v2491 = vmax.f32 %v2437, 0.0
      %v2492 = vmax.f32 %v2438, 0.0
      %v2493 = vmax.f32 %v2439, 0.0
      %v2494 = vmax.f32 %v2440, 0.0
      %v2495 = vmax.f32 %v2441, 0.0
      %v2496 = vmax.f32 %v2442, 0.0
      %v2497 = vmax.f32 %v2443, 0.0
      %v2498 = vmax.f32 %v2444, 0.0
      %v2499 = vmax.f32 %v2445, 0.0
      %v2500 = vmax.f32 %v2446, 0.0
      %v2501 = vmax.f32 %v2447, 0.0
      %v2502 = vmax.f32 %v2448, 0.0
      %v2503 = vmax.f32 %v2449, 0.0
      %v2504 = vmax.f32 %v2450, 0.0
      %v2505 = vmax.f32 %v2451, 0.0
      %v2506 = vmax.f32 %v2452, 0.0
      %v2507 = vmax.f32 %v2453, 0.0
      %v2508 = vmax.f32 %v2454, 0.0
      %v2509 = vmax.f32 %v2455, 0.0
      %v2510 = vmax.f32 %v2456, 0.0
      %v2511 = vmax.f32 %v2457, 0.0
      %v2512 = vmax.f32 %v2458, 0.0
      %v2513 = vmax.f32 %v2459, 0.0
      %v2514 = vmax.f32 %v2460, 0.0
      %v2515 = vmax.f32 %v2461, 0.0
      %v2516 = vmax.f32 %v2462, 0.0
      %v2517 = vmax.f32 %v2463, 0.0
      %v2518 = vmax.f32 %v2464, 0.0
      %v2519 = vmax.f32 %v2465, 0.0
      %v2520 = vmax.f32 %v2466, 0.0
      %v2521 = vmax.f32 %v2467, 0.0
      %v2522 = vmax.f32 %v2468, 0.0
      %v2523 = vmax.f32 %v2469, 0.0
      %v2524 = vmax.f32 %v2470, 0.0
      %v2525 = vmax.f32 %v2471, 0.0
      %v2526 = vmax.f32 %v2472, 0.0
      %v2527 = vmax.f32 %v2473, 0.0
      %v2528 = vmax.f32 %v2474, 0.0
      %v2529 = vmax.f32 %v2475, 0.0
      %v2530 = vmax.f32 %v2476, 0.0
      %v2531 = vmax.f32 %v2477, 0.0
      %v2532 = vmax.f32 %v2478, 0.0
      %v2533 = vmax.f32 %v2479, 0.0
      %v2534 = vmax.f32 %v2480, 0.0
      %v2535 = vmax.f32 %v2481, 0.0
      %v2536 = vmax.f32 %v2482, 0.0
      %v2537 = vmin.f32 %v2483, 6.0
      %v2538 = vmin.f32 %v2484, 6.0
      %v2539 = vmin.f32 %v2485, 6.0
      %v2540 = vmin.f32 %v2486, 6.0
      %v2541 = vmin.f32 %v2487, 6.0
      %v2542 = vmin.f32 %v2488, 6.0
      %v2543 = vmin.f32 %v2489, 6.0
      %v2544 = vmin.f32 %v2490, 6.0
      %v2545 = vmin.f32 %v2491, 6.0
      %v2546 = vmin.f32 %v2492, 6.0
      %v2547 = vmin.f32 %v2493, 6.0
      %v2548 = vmin.f32 %v2494, 6.0
      %v2549 = vmin.f32 %v2495, 6.0
      %v2550 = vmin.f32 %v2496, 6.0
      %v2551 = vmin.f32 %v2497, 6.0
      %v2552 = vmin.f32 %v2498, 6.0
      %v2553 = vmin.f32 %v2499, 6.0
      %v2554 = vmin.f32 %v2500, 6.0
      %v2555 = vmin.f32 %v2501, 6.0
      %v2556 = vmin.f32 %v2502, 6.0
      %v2557 = vmin.f32 %v2503, 6.0
      %v2558 = vmin.f32 %v2504, 6.0
      %v2559 = vmin.f32 %v2505, 6.0
      %v2560 = vmin.f32 %v2506, 6.0
      %v2561 = vmin.f32 %v2507, 6.0
      %v2562 = vmin.f32 %v2508, 6.0
      %v2563 = vmin.f32 %v2509, 6.0
      %v2564 = vmin.f32 %v2510, 6.0
      %v2565 = vmin.f32 %v2511, 6.0
      %v2566 = vmin.f32 %v2512, 6.0
      %v2567 = vmin.f32 %v2513, 6.0
      %v2568 = vmin.f32 %v2514, 6.0
      %v2569 = vmin.f32 %v2515, 6.0
      %v2570 = vmin.f32 %v2516, 6.0
      %v2571 = vmin.f32 %v2517, 6.0
      %v2572 = vmin.f32 %v2518, 6.0
      %v2573 = vmin.f32 %v2519, 6.0
      %v2574 = vmin.f32 %v2520, 6.0
      %v2575 = vmin.f32 %v2521, 6.0
      %v2576 = vmin.f32 %v2522, 6.0
      %v2577 = vmin.f32 %v2523, 6.0
      %v2578 = vmin.f32 %v2524, 6.0
      %v2579 = vmin.f32 %v2525, 6.0
      %v2580 = vmin.f32 %v2526, 6.0
      %v2581 = vmin.f32 %v2527, 6.0
      %v2582 = vmin.f32 %v2528, 6.0
      %v2583 = vmin.f32 %v2529, 6.0
      %v2584 = vmin.f32 %v2530, 6.0
      %v2585 = vmin.f32 %v2531, 6.0
      %v2586 = vmin.f32 %v2532, 6.0
      %v2587 = vmin.f32 %v2533, 6.0
      %v2588 = vmin.f32 %v2534, 6.0
      %v2589 = vmin.f32 %v2535, 6.0
      %v2590 = vmin.f32 %v2536, 6.0
      %v2591 = vmul.f32 %v2537, 0.16666667
      %v2592 = vmul.f32 %v2538, 0.16666667
      %v2593 = vmul.f32 %v2539, 0.16666667
      %v2594 = vmul.f32 %v2540, 0.16666667
      %v2595 = vmul.f32 %v2541, 0.16666667
      %v2596 = vmul.f32 %v2542, 0.16666667
      %v2597 = vmul.f32 %v2543, 0.16666667
      %v2598 = vmul.f32 %v2544, 0.16666667
      %v2599 = vmul.f32 %v2545, 0.16666667
      %v2600 = vmul.f32 %v2546, 0.16666667
      %v2601 = vmul.f32 %v2547, 0.16666667
      %v2602 = vmul.f32 %v2548, 0.16666667
      %v2603 = vmul.f32 %v2549, 0.16666667
      %v2604 = vmul.f32 %v2550, 0.16666667
      %v2605 = vmul.f32 %v2551, 0.16666667
      %v2606 = vmul.f32 %v2552, 0.16666667
      %v2607 = vmul.f32 %v2553, 0.16666667
      %v2608 = vmul.f32 %v2554, 0.16666667
      %v2609 = vmul.f32 %v2555, 0.16666667
      %v2610 = vmul.f32 %v2556, 0.16666667
      %v2611 = vmul.f32 %v2557, 0.16666667
      %v2612 = vmul.f32 %v2558, 0.16666667
      %v2613 = vmul.f32 %v2559, 0.16666667
      %v2614 = vmul.f32 %v2560, 0.16666667
      %v2615 = vmul.f32 %v2561, 0.16666667
      %v2616 = vmul.f32 %v2562, 0.16666667
      %v2617 = vmul.f32 %v2563, 0.16666667
      %v2618 = vmul.f32 %v2564, 0.16666667
      %v2619 = vmul.f32 %v2565, 0.16666667
      %v2620 = vmul.f32 %v2566, 0.16666667
      %v2621 = vmul.f32 %v2567, 0.16666667
      %v2622 = vmul.f32 %v2568, 0.16666667
      %v2623 = vmul.f32 %v2569, 0.16666667
      %v2624 = vmul.f32 %v2570, 0.16666667
      %v2625 = vmul.f32 %v2571, 0.16666667
      %v2626 = vmul.f32 %v2572, 0.16666667
      %v2627 = vmul.f32 %v2573, 0.16666667
      %v2628 = vmul.f32 %v2574, 0.16666667
      %v2629 = vmul.f32 %v2575, 0.16666667
      %v2630 = vmul.f32 %v2576, 0.16666667
      %v2631 = vmul.f32 %v2577, 0.16666667
      %v2632 = vmul.f32 %v2578, 0.16666667
      %v2633 = vmul.f32 %v2579, 0.16666667
      %v2634 = vmul.f32 %v2580, 0.16666667
      %v2635 = vmul.f32 %v2581, 0.16666667
      %v2636 = vmul.f32 %v2582, 0.16666667
      %v2637 = vmul.f32 %v2583, 0.16666667
      %v2638 = vmul.f32 %v2584, 0.16666667
      %v2639 = vmul.f32 %v2585, 0.16666667
      %v2640 = vmul.f32 %v2586, 0.16666667
      %v2641 = vmul.f32 %v2587, 0.16666667
      %v2642 = vmul.f32 %v2588, 0.16666667
      %v2643 = vmul.f32 %v2589, 0.16666667
      %v2644 = vmul.f32 %v2590, 0.16666667
      %v2645 = vmul.f32 %v2215, %v2591
      %v2646 = vmul.f32 %v2219, %v2592
      %v2647 = vmul.f32 %v2223, %v2593
      %v2648 = vmul.f32 %v2227, %v2594
      %v2649 = vmul.f32 %v2231, %v2595
      %v2650 = vmul.f32 %v2235, %v2596
      %v2651 = vmul.f32 %v2239, %v2597
      %v2652 = vmul.f32 %v2243, %v2598
      %v2653 = vmul.f32 %v2247, %v2599
      %v2654 = vmul.f32 %v2251, %v2600
      %v2655 = vmul.f32 %v2255, %v2601
      %v2656 = vmul.f32 %v2259, %v2602
      %v2657 = vmul.f32 %v2263, %v2603
      %v2658 = vmul.f32 %v2267, %v2604
      %v2659 = vmul.f32 %v2271, %v2605
      %v2660 = vmul.f32 %v2275, %v2606
      %v2661 = vmul.f32 %v2279, %v2607
      %v2662 = vmul.f32 %v2283, %v2608
      %v2663 = vmul.f32 %v2287, %v2609
      %v2664 = vmul.f32 %v2291, %v2610
      %v2665 = vmul.f32 %v2295, %v2611
      %v2666 = vmul.f32 %v2299, %v2612
      %v2667 = vmul.f32 %v2303, %v2613
      %v2668 = vmul.f32 %v2307, %v2614
      %v2669 = vmul.f32 %v2311, %v2615
      %v2670 = vmul.f32 %v2315, %v2616
      %v2671 = vmul.f32 %v2319, %v2617
      %v2672 = vmul.f32 %v2323, %v2618
      %v2673 = vmul.f32 %v2327, %v2619
      %v2674 = vmul.f32 %v2331, %v2620
      %v2675 = vmul.f32 %v2335, %v2621
      %v2676 = vmul.f32 %v2339, %v2622
      %v2677 = vmul.f32 %v2343, %v2623
      %v2678 = vmul.f32 %v2347, %v2624
      %v2679 = vmul.f32 %v2351, %v2625
      %v2680 = vmul.f32 %v2355, %v2626
      %v2681 = vmul.f32 %v2359, %v2627
      %v2682 = vmul.f32 %v2363, %v2628
      %v2683 = vmul.f32 %v2367, %v2629
      %v2684 = vmul.f32 %v2371, %v2630
      %v2685 = vmul.f32 %v2375, %v2631
      %v2686 = vmul.f32 %v2379, %v2632
      %v2687 = vmul.f32 %v2383, %v2633
      %v2688 = vmul.f32 %v2387, %v2634
      %v2689 = vmul.f32 %v2391, %v2635
      %v2690 = vmul.f32 %v2395, %v2636
      %v2691 = vmul.f32 %v2399, %v2637
      %v2692 = vmul.f32 %v2403, %v2638
      %v2693 = vmul.f32 %v2407, %v2639
      %v2694 = vmul.f32 %v2411, %v2640
      %v2695 = vmul.f32 %v2415, %v2641
      %v2696 = vmul.f32 %v2419, %v2642
      %v2697 = vmul.f32 %v2423, %v2643
      %v2698 = vmul.f32 %v2427, %v2644
      %v2699 = vld [vmem:[%s0] sm:$0xff]
      %v2700 = vld [vmem:[%s0 + $0x8] sm:$0xff]
      %v2701 = vld [vmem:[%s0 + $0x10] sm:$0xff]
      %v2702 = vld [vmem:[%s0 + $0x18] sm:$0xff]
      %v2703 = vld [vmem:[%s0 + $0x20] sm:$0xff]
      %v2704 = vld [vmem:[%s0 + $0x28] sm:$0xff]
      %v2705 = vld [vmem:[%s0 + $0x30] sm:$0xff]
      %v2706 = vld [vmem:[%s0 + $0x38] sm:$0xff]
      %v2707 = vld [vmem:[%s0 + $0x40] sm:$0xff]
      %v2708 = vld [vmem:[%s0 + $0x48] sm:$0xff]
      %v2709 = vld [vmem:[%s0 + $0x50] sm:$0xff]
      %v2710 = vld [vmem:[%s0 + $0x58] sm:$0xff]
      %v2711 = vld [vmem:[%s0 + $0x60] sm:$0xff]
      %v2712 = vld [vmem:[%s0 + $0x68] sm:$0xff]
      %v2713 = vld [vmem:[%s0 + $0x70] sm:$0xff]
      %v2714 = vld [vmem:[%s0 + $0x78] sm:$0xff]
      %v2715 = vld [vmem:[%s0 + $0x80] sm:$0xff]
      %v2716 = vld [vmem:[%s0 + $0x88] sm:$0xff]
      %v2717 = vld [vmem:[%s0 + $0x90] sm:$0xff]
      %v2718 = vld [vmem:[%s0 + $0x98] sm:$0xff]
      %v2719 = vld [vmem:[%s0 + $0xa0] sm:$0xff]
      %v2720 = vld [vmem:[%s0 + $0xa8] sm:$0xff]
      %v2721 = vld [vmem:[%s0 + $0xb0] sm:$0xff]
      %v2722 = vld [vmem:[%s0 + $0xb8] sm:$0xff]
      %v2723 = vld [vmem:[%s0 + $0xc0] sm:$0xff]
      %v2724 = vld [vmem:[%s0 + $0xc8] sm:$0xff]
      %v2725 = vld [vmem:[%s0 + $0xd0] sm:$0xff]
      %v2726 = vld [vmem:[%s0 + $0xd8] sm:$0xff]
      %v2727 = vld [vmem:[%s0 + $0xe0] sm:$0xff]
      %v2728 = vld [vmem:[%s0 + $0xe8] sm:$0xff]
      %v2729 = vld [vmem:[%s0 + $0xf0] sm:$0xff]
      %v2730 = vld [vmem:[%s0 + $0xf8] sm:$0xff]
      %v2731 = vld [vmem:[%s0 + $0x100] sm:$0xff]
      %v2732 = vld [vmem:[%s0 + $0x108] sm:$0xff]
      %v2733 = vld [vmem:[%s0 + $0x110] sm:$0xff]
      %v2734 = vld [vmem:[%s0 + $0x118] sm:$0xff]
      %v2735 = vld [vmem:[%s0 + $0x120] sm:$0xff]
      %v2736 = vld [vmem:[%s0 + $0x128] sm:$0xff]
      %v2737 = vld [vmem:[%s0 + $0x130] sm:$0xff]
      %v2738 = vld [vmem:[%s0 + $0x138] sm:$0xff]
      %v2739 = vld [vmem:[%s0 + $0x140] sm:$0xff]
      %v2740 = vld [vmem:[%s0 + $0x148] sm:$0xff]
      %v2741 = vld [vmem:[%s0 + $0x150] sm:$0xff]
      %v2742 = vld [vmem:[%s0 + $0x158] sm:$0xff]
      %v2743 = vld [vmem:[%s0 + $0x160] sm:$0xff]
      %v2744 = vld [vmem:[%s0 + $0x168] sm:$0xff]
      %v2745 = vld [vmem:[%s0 + $0x170] sm:$0xff]
      %v2746 = vld [vmem:[%s0 + $0x178] sm:$0xff]
      %v2747 = vld [vmem:[%s0 + $0x180] sm:$0xff]
      %v2748 = vld [vmem:[%s0 + $0x188] sm:$0xff]
      %v2749 = vld [vmem:[%s0 + $0x190] sm:$0xff]
      %v2750 = vld [vmem:[%s0 + $0x198] sm:$0xff]
      %v2751 = vld [vmem:[%s0 + $0x1a0] sm:$0xff]
      %v2752 = vld [vmem:[%s0 + $0x1a8] sm:$0xff]
      %2754 = vset.pattern.permute.xlu0 0
      %2755 = vperm.xlu0 %2754, %v2699
      %v2756 = vpop.permute.xlu0 %2755
      %2759 = vset.pattern.permute.xlu0 0
      %2760 = vperm.xlu0 %2759, %v2700
      %v2761 = vpop.permute.xlu0 %2760
      %2764 = vset.pattern.permute.xlu0 0
      %2765 = vperm.xlu0 %2764, %v2701
      %v2766 = vpop.permute.xlu0 %2765
      %2769 = vset.pattern.permute.xlu0 0
      %2770 = vperm.xlu0 %2769, %v2702
      %v2771 = vpop.permute.xlu0 %2770
      %2774 = vset.pattern.permute.xlu0 0
      %2775 = vperm.xlu0 %2774, %v2703
      %v2776 = vpop.permute.xlu0 %2775
      %2779 = vset.pattern.permute.xlu0 0
      %2780 = vperm.xlu0 %2779, %v2704
      %v2781 = vpop.permute.xlu0 %2780
      %2784 = vset.pattern.permute.xlu0 0
      %2785 = vperm.xlu0 %2784, %v2705
      %v2786 = vpop.permute.xlu0 %2785
      %2789 = vset.pattern.permute.xlu0 0
      %2790 = vperm.xlu0 %2789, %v2706
      %v2791 = vpop.permute.xlu0 %2790
      %2794 = vset.pattern.permute.xlu0 0
      %2795 = vperm.xlu0 %2794, %v2707
      %v2796 = vpop.permute.xlu0 %2795
      %2799 = vset.pattern.permute.xlu0 0
      %2800 = vperm.xlu0 %2799, %v2708
      %v2801 = vpop.permute.xlu0 %2800
      %2804 = vset.pattern.permute.xlu0 0
      %2805 = vperm.xlu0 %2804, %v2709
      %v2806 = vpop.permute.xlu0 %2805
      %2809 = vset.pattern.permute.xlu0 0
      %2810 = vperm.xlu0 %2809, %v2710
      %v2811 = vpop.permute.xlu0 %2810
      %2814 = vset.pattern.permute.xlu0 0
      %2815 = vperm.xlu0 %2814, %v2711
      %v2816 = vpop.permute.xlu0 %2815
      %2819 = vset.pattern.permute.xlu0 0
      %2820 = vperm.xlu0 %2819, %v2712
      %v2821 = vpop.permute.xlu0 %2820
      %2824 = vset.pattern.permute.xlu0 0
      %2825 = vperm.xlu0 %2824, %v2713
      %v2826 = vpop.permute.xlu0 %2825
      %2829 = vset.pattern.permute.xlu0 0
      %2830 = vperm.xlu0 %2829, %v2714
      %v2831 = vpop.permute.xlu0 %2830
      %2834 = vset.pattern.permute.xlu0 0
      %2835 = vperm.xlu0 %2834, %v2715
      %v2836 = vpop.permute.xlu0 %2835
      %2839 = vset.pattern.permute.xlu0 0
      %2840 = vperm.xlu0 %2839, %v2716
      %v2841 = vpop.permute.xlu0 %2840
      %2844 = vset.pattern.permute.xlu0 0
      %2845 = vperm.xlu0 %2844, %v2717
      %v2846 = vpop.permute.xlu0 %2845
      %2849 = vset.pattern.permute.xlu0 0
      %2850 = vperm.xlu0 %2849, %v2718
      %v2851 = vpop.permute.xlu0 %2850
      %2854 = vset.pattern.permute.xlu0 0
      %2855 = vperm.xlu0 %2854, %v2719
      %v2856 = vpop.permute.xlu0 %2855
      %2859 = vset.pattern.permute.xlu0 0
      %2860 = vperm.xlu0 %2859, %v2720
      %v2861 = vpop.permute.xlu0 %2860
      %2864 = vset.pattern.permute.xlu0 0
      %2865 = vperm.xlu0 %2864, %v2721
      %v2866 = vpop.permute.xlu0 %2865
      %2869 = vset.pattern.permute.xlu0 0
      %2870 = vperm.xlu0 %2869, %v2722
      %v2871 = vpop.permute.xlu0 %2870
      %2874 = vset.pattern.permute.xlu0 0
      %2875 = vperm.xlu0 %2874, %v2723
      %v2876 = vpop.permute.xlu0 %2875
      %2879 = vset.pattern.permute.xlu0 0
      %2880 = vperm.xlu0 %2879, %v2724
      %v2881 = vpop.permute.xlu0 %2880
      %2884 = vset.pattern.permute.xlu0 0
      %2885 = vperm.xlu0 %2884, %v2725
      %v2886 = vpop.permute.xlu0 %2885
      %2889 = vset.pattern.permute.xlu0 0
      %2890 = vperm.xlu0 %2889, %v2726
      %v2891 = vpop.permute.xlu0 %2890
      %2894 = vset.pattern.permute.xlu0 0
      %2895 = vperm.xlu0 %2894, %v2727
      %v2896 = vpop.permute.xlu0 %2895
      %2899 = vset.pattern.permute.xlu0 0
      %2900 = vperm.xlu0 %2899, %v2728
      %v2901 = vpop.permute.xlu0 %2900
      %2904 = vset.pattern.permute.xlu0 0
      %2905 = vperm.xlu0 %2904, %v2729
      %v2906 = vpop.permute.xlu0 %2905
      %2909 = vset.pattern.permute.xlu0 0
      %2910 = vperm.xlu0 %2909, %v2730
      %v2911 = vpop.permute.xlu0 %2910
      %2914 = vset.pattern.permute.xlu0 0
      %2915 = vperm.xlu0 %2914, %v2731
      %v2916 = vpop.permute.xlu0 %2915
      %2919 = vset.pattern.permute.xlu0 0
      %2920 = vperm.xlu0 %2919, %v2732
      %v2921 = vpop.permute.xlu0 %2920
      %2924 = vset.pattern.permute.xlu0 0
      %2925 = vperm.xlu0 %2924, %v2733
      %v2926 = vpop.permute.xlu0 %2925
      %2929 = vset.pattern.permute.xlu0 0
      %2930 = vperm.xlu0 %2929, %v2734
      %v2931 = vpop.permute.xlu0 %2930
      %2934 = vset.pattern.permute.xlu0 0
      %2935 = vperm.xlu0 %2934, %v2735
      %v2936 = vpop.permute.xlu0 %2935
      %2939 = vset.pattern.permute.xlu0 0
      %2940 = vperm.xlu0 %2939, %v2736
      %v2941 = vpop.permute.xlu0 %2940
      %2944 = vset.pattern.permute.xlu0 0
      %2945 = vperm.xlu0 %2944, %v2737
      %v2946 = vpop.permute.xlu0 %2945
      %2949 = vset.pattern.permute.xlu0 0
      %2950 = vperm.xlu0 %2949, %v2738
      %v2951 = vpop.permute.xlu0 %2950
      %2954 = vset.pattern.permute.xlu0 0
      %2955 = vperm.xlu0 %2954, %v2739
      %v2956 = vpop.permute.xlu0 %2955
      %2959 = vset.pattern.permute.xlu0 0
      %2960 = vperm.xlu0 %2959, %v2740
      %v2961 = vpop.permute.xlu0 %2960
      %2964 = vset.pattern.permute.xlu0 0
      %2965 = vperm.xlu0 %2964, %v2741
      %v2966 = vpop.permute.xlu0 %2965
      %2969 = vset.pattern.permute.xlu0 0
      %2970 = vperm.xlu0 %2969, %v2742
      %v2971 = vpop.permute.xlu0 %2970
      %2974 = vset.pattern.permute.xlu0 0
      %2975 = vperm.xlu0 %2974, %v2743
      %v2976 = vpop.permute.xlu0 %2975
      %2979 = vset.pattern.permute.xlu0 0
      %2980 = vperm.xlu0 %2979, %v2744
      %v2981 = vpop.permute.xlu0 %2980
      %2984 = vset.pattern.permute.xlu0 0
      %2985 = vperm.xlu0 %2984, %v2745
      %v2986 = vpop.permute.xlu0 %2985
      %2989 = vset.pattern.permute.xlu0 0
      %2990 = vperm.xlu0 %2989, %v2746
      %v2991 = vpop.permute.xlu0 %2990
      %2994 = vset.pattern.permute.xlu0 0
      %2995 = vperm.xlu0 %2994, %v2747
      %v2996 = vpop.permute.xlu0 %2995
      %2999 = vset.pattern.permute.xlu0 0
      %3000 = vperm.xlu0 %2999, %v2748
      %v3001 = vpop.permute.xlu0 %3000
      %3004 = vset.pattern.permute.xlu0 0
      %3005 = vperm.xlu0 %3004, %v2749
      %v3006 = vpop.permute.xlu0 %3005
      %3009 = vset.pattern.permute.xlu0 0
      %3010 = vperm.xlu0 %3009, %v2750
      %v3011 = vpop.permute.xlu0 %3010
      %3014 = vset.pattern.permute.xlu0 0
      %3015 = vperm.xlu0 %3014, %v2751
      %v3016 = vpop.permute.xlu0 %3015
      %3019 = vset.pattern.permute.xlu0 0
      %3020 = vperm.xlu0 %3019, %v2752
      %v3021 = vpop.permute.xlu0 %3020
      %v3023 = vmul.f32 %v2645, %v2756
      %v3024 = vmul.f32 %v2646, %v2761
      %v3025 = vmul.f32 %v2647, %v2766
      %v3026 = vmul.f32 %v2648, %v2771
      %v3027 = vmul.f32 %v2649, %v2776
      %v3028 = vmul.f32 %v2650, %v2781
      %v3029 = vmul.f32 %v2651, %v2786
      %v3030 = vmul.f32 %v2652, %v2791
      %v3031 = vmul.f32 %v2653, %v2796
      %v3032 = vmul.f32 %v2654, %v2801
      %v3033 = vmul.f32 %v2655, %v2806
      %v3034 = vmul.f32 %v2656, %v2811
      %v3035 = vmul.f32 %v2657, %v2816
      %v3036 = vmul.f32 %v2658, %v2821
      %v3037 = vmul.f32 %v2659, %v2826
      %v3038 = vmul.f32 %v2660, %v2831
      %v3039 = vmul.f32 %v2661, %v2836
      %v3040 = vmul.f32 %v2662, %v2841
      %v3041 = vmul.f32 %v2663, %v2846
      %v3042 = vmul.f32 %v2664, %v2851
      %v3043 = vmul.f32 %v2665, %v2856
      %v3044 = vmul.f32 %v2666, %v2861
      %v3045 = vmul.f32 %v2667, %v2866
      %v3046 = vmul.f32 %v2668, %v2871
      %v3047 = vmul.f32 %v2669, %v2876
      %v3048 = vmul.f32 %v2670, %v2881
      %v3049 = vmul.f32 %v2671, %v2886
      %v3050 = vmul.f32 %v2672, %v2891
      %v3051 = vmul.f32 %v2673, %v2896
      %v3052 = vmul.f32 %v2674, %v2901
      %v3053 = vmul.f32 %v2675, %v2906
      %v3054 = vmul.f32 %v2676, %v2911
      %v3055 = vmul.f32 %v2677, %v2916
      %v3056 = vmul.f32 %v2678, %v2921
      %v3057 = vmul.f32 %v2679, %v2926
      %v3058 = vmul.f32 %v2680, %v2931
      %v3059 = vmul.f32 %v2681, %v2936
      %v3060 = vmul.f32 %v2682, %v2941
      %v3061 = vmul.f32 %v2683, %v2946
      %v3062 = vmul.f32 %v2684, %v2951
      %v3063 = vmul.f32 %v2685, %v2956
      %v3064 = vmul.f32 %v2686, %v2961
      %v3065 = vmul.f32 %v2687, %v2966
      %v3066 = vmul.f32 %v2688, %v2971
      %v3067 = vmul.f32 %v2689, %v2976
      %v3068 = vmul.f32 %v2690, %v2981
      %v3069 = vmul.f32 %v2691, %v2986
      %v3070 = vmul.f32 %v2692, %v2991
      %v3071 = vmul.f32 %v2693, %v2996
      %v3072 = vmul.f32 %v2694, %v3001
      %v3073 = vmul.f32 %v2695, %v3006
      %v3074 = vmul.f32 %v2696, %v3011
      %v3075 = vmul.f32 %v2697, %v3016
      %v3076 = vmul.f32 %v2698, %v3021
      %v3077 = vld [vmem:[%s4] sm:$0x1]
      %v3078 = vperm.slane %v3077, 0
      %v3079 = vmul.f32 %v3023, %v3078
      %v3080 = vmul.f32 %v3024, %v3078
      %v3081 = vmul.f32 %v3026, %v3078
      %v3082 = vmul.f32 %v3027, %v3078
      %v3083 = vmul.f32 %v3029, %v3078
      %v3084 = vmul.f32 %v3030, %v3078
      %v3085 = vmul.f32 %v3032, %v3078
      %v3086 = vmul.f32 %v3033, %v3078
      %v3087 = vmul.f32 %v3035, %v3078
      %v3088 = vmul.f32 %v3036, %v3078
      %v3089 = vmul.f32 %v3038, %v3078
      %v3090 = vmul.f32 %v3039, %v3078
      %v3091 = vmul.f32 %v3041, %v3078
      %v3092 = vmul.f32 %v3042, %v3078
      %v3093 = vmul.f32 %v3044, %v3078
      %v3094 = vmul.f32 %v3045, %v3078
      %v3095 = vmul.f32 %v3047, %v3078
      %v3096 = vmul.f32 %v3048, %v3078
      %v3097 = vmul.f32 %v3050, %v3078
      %v3098 = vmul.f32 %v3051, %v3078
      %v3099 = vmul.f32 %v3053, %v3078
      %v3100 = vmul.f32 %v3054, %v3078
      %v3101 = vmul.f32 %v3056, %v3078
      %v3102 = vmul.f32 %v3057, %v3078
      %v3103 = vmul.f32 %v3059, %v3078
      %v3104 = vmul.f32 %v3060, %v3078
      %v3105 = vmul.f32 %v3062, %v3078
      %v3106 = vmul.f32 %v3063, %v3078
      %v3107 = vmul.f32 %v3065, %v3078
      %v3108 = vmul.f32 %v3066, %v3078
      %v3109 = vmul.f32 %v3068, %v3078
      %v3110 = vmul.f32 %v3069, %v3078
      %v3111 = vadd.f32 %v3079, 0.0
      %v3112 = vadd.f32 %v3080, 0.0
      %v3113 = vadd.f32 %v3081, 0.0
      %v3114 = vadd.f32 %v3082, 0.0
      %v3115 = vadd.f32 %v3083, 0.0
      %v3116 = vadd.f32 %v3084, 0.0
      %v3117 = vadd.f32 %v3085, 0.0
      %v3118 = vadd.f32 %v3086, 0.0
      %v3119 = vadd.f32 %v3087, 0.0
      %v3120 = vadd.f32 %v3088, 0.0
      %v3121 = vadd.f32 %v3089, 0.0
      %v3122 = vadd.f32 %v3090, 0.0
      %v3123 = vadd.f32 %v3091, 0.0
      %v3124 = vadd.f32 %v3092, 0.0
      %v3125 = vadd.f32 %v3093, 0.0
      %v3126 = vadd.f32 %v3094, 0.0
      %v3127 = vadd.f32 %v3095, 0.0
      %v3128 = vadd.f32 %v3096, 0.0
      %v3129 = vadd.f32 %v3097, 0.0
      %v3130 = vadd.f32 %v3098, 0.0
      %v3131 = vadd.f32 %v3099, 0.0
      %v3132 = vadd.f32 %v3100, 0.0
      %v3133 = vadd.f32 %v3101, 0.0
      %v3134 = vadd.f32 %v3102, 0.0
      %v3135 = vadd.f32 %v3103, 0.0
      %v3136 = vadd.f32 %v3104, 0.0
      %v3137 = vadd.f32 %v3105, 0.0
      %v3138 = vadd.f32 %v3106, 0.0
      %v3139 = vadd.f32 %v3107, 0.0
      %v3140 = vadd.f32 %v3108, 0.0
      %v3141 = vadd.f32 %v3109, 0.0
      %v3142 = vadd.f32 %v3110, 0.0
      %v3143 = vld [vmem:[%s4 + $0x1] sm:$0x1]
      %v3144 = vperm.slane %v3143, 0
      %v3145 = vmul.f32 %v3023, %v3144
      %v3146 = vmul.f32 %v3024, %v3144
      %v3147 = vmul.f32 %v3025, %v3144
      %v3148 = vmul.f32 %v3026, %v3144
      %v3149 = vmul.f32 %v3027, %v3144
      %v3150 = vmul.f32 %v3028, %v3144
      %v3151 = vmul.f32 %v3029, %v3144
      %v3152 = vmul.f32 %v3030, %v3144
      %v3153 = vmul.f32 %v3031, %v3144
      %v3154 = vmul.f32 %v3032, %v3144
      %v3155 = vmul.f32 %v3033, %v3144
      %v3156 = vmul.f32 %v3034, %v3144
      %v3157 = vmul.f32 %v3035, %v3144
      %v3158 = vmul.f32 %v3036, %v3144
      %v3159 = vmul.f32 %v3037, %v3144
      %v3160 = vmul.f32 %v3038, %v3144
      %v3161 = vmul.f32 %v3039, %v3144
      %v3162 = vmul.f32 %v3040, %v3144
      %v3163 = vmul.f32 %v3041, %v3144
      %v3164 = vmul.f32 %v3042, %v3144
      %v3165 = vmul.f32 %v3043, %v3144
      %v3166 = vmul.f32 %v3044, %v3144
      %v3167 = vmul.f32 %v3045, %v3144
      %v3168 = vmul.f32 %v3046, %v3144
      %v3169 = vmul.f32 %v3047, %v3144
      %v3170 = vmul.f32 %v3048, %v3144
      %v3171 = vmul.f32 %v3049, %v3144
      %v3172 = vmul.f32 %v3050, %v3144
      %v3173 = vmul.f32 %v3051, %v3144
      %v3174 = vmul.f32 %v3052, %v3144
      %v3175 = vmul.f32 %v3053, %v3144
      %v3176 = vmul.f32 %v3054, %v3144
      %v3177 = vmul.f32 %v3055, %v3144
      %v3178 = vmul.f32 %v3056, %v3144
      %v3179 = vmul.f32 %v3057, %v3144
      %v3180 = vmul.f32 %v3058, %v3144
      %v3181 = vmul.f32 %v3059, %v3144
      %v3182 = vmul.f32 %v3060, %v3144
      %v3183 = vmul.f32 %v3061, %v3144
      %v3184 = vmul.f32 %v3062, %v3144
      %v3185 = vmul.f32 %v3063, %v3144
      %v3186 = vmul.f32 %v3064, %v3144
      %v3187 = vmul.f32 %v3065, %v3144
      %v3188 = vmul.f32 %v3066, %v3144
      %v3189 = vmul.f32 %v3067, %v3144
      %v3190 = vmul.f32 %v3068, %v3144
      %v3191 = vmul.f32 %v3069, %v3144
      %v3192 = vmul.f32 %v3070, %v3144
      %vm3241 = vcmask 1046528
      %v3242 = vrot.slane %v3145, 1
      %v3243 = vrot.slane %v3146, 1
      %v3244 = vsel %vm3241, %v3242, %v3243
      %v3245 = vrot.slane %v3147, 1
      %v3246 = vsel %vm3241, %v3243, %v3245
      %v3247 = vrot.slane %v3148, 1
      %v3248 = vrot.slane %v3149, 1
      %v3249 = vsel %vm3241, %v3247, %v3248
      %v3250 = vrot.slane %v3150, 1
      %v3251 = vsel %vm3241, %v3248, %v3250
      %v3252 = vrot.slane %v3151, 1
      %v3253 = vrot.slane %v3152, 1
      %v3254 = vsel %vm3241, %v3252, %v3253
      %v3255 = vrot.slane %v3153, 1
      %v3256 = vsel %vm3241, %v3253, %v3255
      %v3257 = vrot.slane %v3154, 1
      %v3258 = vrot.slane %v3155, 1
      %v3259 = vsel %vm3241, %v3257, %v3258
      %v3260 = vrot.slane %v3156, 1
      %v3261 = vsel %vm3241, %v3258, %v3260
      %v3262 = vrot.slane %v3157, 1
      %v3263 = vrot.slane %v3158, 1
      %v3264 = vsel %vm3241, %v3262, %v3263
      %v3265 = vrot.slane %v3159, 1
      %v3266 = vsel %vm3241, %v3263, %v3265
      %v3267 = vrot.slane %v3160, 1
      %v3268 = vrot.slane %v3161, 1
      %v3269 = vsel %vm3241, %v3267, %v3268
      %v3270 = vrot.slane %v3162, 1
      %v3271 = vsel %vm3241, %v3268, %v3270
      %v3272 = vrot.slane %v3163, 1
      %v3273 = vrot.slane %v3164, 1
      %v3274 = vsel %vm3241, %v3272, %v3273
      %v3275 = vrot.slane %v3165, 1
      %v3276 = vsel %vm3241, %v3273, %v3275
      %v3277 = vrot.slane %v3166, 1
      %v3278 = vrot.slane %v3167, 1
      %v3279 = vsel %vm3241, %v3277, %v3278
      %v3280 = vrot.slane %v3168, 1
      %v3281 = vsel %vm3241, %v3278, %v3280
      %v3282 = vrot.slane %v3169, 1
      %v3283 = vrot.slane %v3170, 1
      %v3284 = vsel %vm3241, %v3282, %v3283
      %v3285 = vrot.slane %v3171, 1
      %v3286 = vsel %vm3241, %v3283, %v3285
      %v3287 = vrot.slane %v3172, 1
      %v3288 = vrot.slane %v3173, 1
      %v3289 = vsel %vm3241, %v3287, %v3288
      %v3290 = vrot.slane %v3174, 1
      %v3291 = vsel %vm3241, %v3288, %v3290
      %v3292 = vrot.slane %v3175, 1
      %v3293 = vrot.slane %v3176, 1
      %v3294 = vsel %vm3241, %v3292, %v3293
      %v3295 = vrot.slane %v3177, 1
      %v3296 = vsel %vm3241, %v3293, %v3295
      %v3297 = vrot.slane %v3178, 1
      %v3298 = vrot.slane %v3179, 1
      %v3299 = vsel %vm3241, %v3297, %v3298
      %v3300 = vrot.slane %v3180, 1
      %v3301 = vsel %vm3241, %v3298, %v3300
      %v3302 = vrot.slane %v3181, 1
      %v3303 = vrot.slane %v3182, 1
      %v3304 = vsel %vm3241, %v3302, %v3303
      %v3305 = vrot.slane %v3183, 1
      %v3306 = vsel %vm3241, %v3303, %v3305
      %v3307 = vrot.slane %v3184, 1
      %v3308 = vrot.slane %v3185, 1
      %v3309 = vsel %vm3241, %v3307, %v3308
      %v3310 = vrot.slane %v3186, 1
      %v3311 = vsel %vm3241, %v3308, %v3310
      %v3312 = vrot.slane %v3187, 1
      %v3313 = vrot.slane %v3188, 1
      %v3314 = vsel %vm3241, %v3312, %v3313
      %v3315 = vrot.slane %v3189, 1
      %v3316 = vsel %vm3241, %v3313, %v3315
      %v3317 = vrot.slane %v3190, 1
      %v3318 = vrot.slane %v3191, 1
      %v3319 = vsel %vm3241, %v3317, %v3318
      %v3320 = vrot.slane %v3192, 1
      %v3321 = vsel %vm3241, %v3318, %v3320
      %v3354 = vadd.f32 %v3111, %v3244
      %v3355 = vadd.f32 %v3112, %v3246
      %v3356 = vadd.f32 %v3113, %v3249
      %v3357 = vadd.f32 %v3114, %v3251
      %v3358 = vadd.f32 %v3115, %v3254
      %v3359 = vadd.f32 %v3116, %v3256
      %v3360 = vadd.f32 %v3117, %v3259
      %v3361 = vadd.f32 %v3118, %v3261
      %v3362 = vadd.f32 %v3119, %v3264
      %v3363 = vadd.f32 %v3120, %v3266
      %v3364 = vadd.f32 %v3121, %v3269
      %v3365 = vadd.f32 %v3122, %v3271
      %v3366 = vadd.f32 %v3123, %v3274
      %v3367 = vadd.f32 %v3124, %v3276
      %v3368 = vadd.f32 %v3125, %v3279
      %v3369 = vadd.f32 %v3126, %v3281
      %v3370 = vadd.f32 %v3127, %v3284
      %v3371 = vadd.f32 %v3128, %v3286
      %v3372 = vadd.f32 %v3129, %v3289
      %v3373 = vadd.f32 %v3130, %v3291
      %v3374 = vadd.f32 %v3131, %v3294
      %v3375 = vadd.f32 %v3132, %v3296
      %v3376 = vadd.f32 %v3133, %v3299
      %v3377 = vadd.f32 %v3134, %v3301
      %v3378 = vadd.f32 %v3135, %v3304
      %v3379 = vadd.f32 %v3136, %v3306
      %v3380 = vadd.f32 %v3137, %v3309
      %v3381 = vadd.f32 %v3138, %v3311
      %v3382 = vadd.f32 %v3139, %v3314
      %v3383 = vadd.f32 %v3140, %v3316
      %v3384 = vadd.f32 %v3141, %v3319
      %v3385 = vadd.f32 %v3142, %v3321
      %v3386 = vld [vmem:[%s4 + $0x2] sm:$0x1]
      %v3387 = vperm.slane %v3386, 0
      %v3388 = vmul.f32 %v3023, %v3387
      %v3389 = vmul.f32 %v3024, %v3387
      %v3390 = vmul.f32 %v3025, %v3387
      %v3391 = vmul.f32 %v3026, %v3387
      %v3392 = vmul.f32 %v3027, %v3387
      %v3393 = vmul.f32 %v3028, %v3387
      %v3394 = vmul.f32 %v3029, %v3387
      %v3395 = vmul.f32 %v3030, %v3387
      %v3396 = vmul.f32 %v3031, %v3387
      %v3397 = vmul.f32 %v3032, %v3387
      %v3398 = vmul.f32 %v3033, %v3387
      %v3399 = vmul.f32 %v3034, %v3387
      %v3400 = vmul.f32 %v3035, %v3387
      %v3401 = vmul.f32 %v3036, %v3387
      %v3402 = vmul.f32 %v3037, %v3387
      %v3403 = vmul.f32 %v3038, %v3387
      %v3404 = vmul.f32 %v3039, %v3387
      %v3405 = vmul.f32 %v3040, %v3387
      %v3406 = vmul.f32 %v3041, %v3387
      %v3407 = vmul.f32 %v3042, %v3387
      %v3408 = vmul.f32 %v3043, %v3387
      %v3409 = vmul.f32 %v3044, %v3387
      %v3410 = vmul.f32 %v3045, %v3387
      %v3411 = vmul.f32 %v3046, %v3387
      %v3412 = vmul.f32 %v3047, %v3387
      %v3413 = vmul.f32 %v3048, %v3387
      %v3414 = vmul.f32 %v3049, %v3387
      %v3415 = vmul.f32 %v3050, %v3387
      %v3416 = vmul.f32 %v3051, %v3387
      %v3417 = vmul.f32 %v3052, %v3387
      %v3418 = vmul.f32 %v3053, %v3387
      %v3419 = vmul.f32 %v3054, %v3387
      %v3420 = vmul.f32 %v3055, %v3387
      %v3421 = vmul.f32 %v3056, %v3387
      %v3422 = vmul.f32 %v3057, %v3387
      %v3423 = vmul.f32 %v3058, %v3387
      %v3424 = vmul.f32 %v3059, %v3387
      %v3425 = vmul.f32 %v3060, %v3387
      %v3426 = vmul.f32 %v3061, %v3387
      %v3427 = vmul.f32 %v3062, %v3387
      %v3428 = vmul.f32 %v3063, %v3387
      %v3429 = vmul.f32 %v3064, %v3387
      %v3430 = vmul.f32 %v3065, %v3387
      %v3431 = vmul.f32 %v3066, %v3387
      %v3432 = vmul.f32 %v3067, %v3387
      %v3433 = vmul.f32 %v3068, %v3387
      %v3434 = vmul.f32 %v3069, %v3387
      %v3435 = vmul.f32 %v3070, %v3387
      %vm3484 = vcmask 1045504
      %v3485 = vrot.slane %v3388, 2
      %v3486 = vrot.slane %v3389, 2
      %v3487 = vsel %vm3484, %v3485, %v3486
      %v3488 = vrot.slane %v3390, 2
      %v3489 = vsel %vm3484, %v3486, %v3488
      %v3490 = vrot.slane %v3391, 2
      %v3491 = vrot.slane %v3392, 2
      %v3492 = vsel %vm3484, %v3490, %v3491
      %v3493 = vrot.slane %v3393, 2
      %v3494 = vsel %vm3484, %v3491, %v3493
      %v3495 = vrot.slane %v3394, 2
      %v3496 = vrot.slane %v3395, 2
      %v3497 = vsel %vm3484, %v3495, %v3496
      %v3498 = vrot.slane %v3396, 2
      %v3499 = vsel %vm3484, %v3496, %v3498
      %v3500 = vrot.slane %v3397, 2
      %v3501 = vrot.slane %v3398, 2
      %v3502 = vsel %vm3484, %v3500, %v3501
      %v3503 = vrot.slane %v3399, 2
      %v3504 = vsel %vm3484, %v3501, %v3503
      %v3505 = vrot.slane %v3400, 2
      %v3506 = vrot.slane %v3401, 2
      %v3507 = vsel %vm3484, %v3505, %v3506
      %v3508 = vrot.slane %v3402, 2
      %v3509 = vsel %vm3484, %v3506, %v3508
      %v3510 = vrot.slane %v3403, 2
      %v3511 = vrot.slane %v3404, 2
      %v3512 = vsel %vm3484, %v3510, %v3511
      %v3513 = vrot.slane %v3405, 2
      %v3514 = vsel %vm3484, %v3511, %v3513
      %v3515 = vrot.slane %v3406, 2
      %v3516 = vrot.slane %v3407, 2
      %v3517 = vsel %vm3484, %v3515, %v3516
      %v3518 = vrot.slane %v3408, 2
      %v3519 = vsel %vm3484, %v3516, %v3518
      %v3520 = vrot.slane %v3409, 2
      %v3521 = vrot.slane %v3410, 2
      %v3522 = vsel %vm3484, %v3520, %v3521
      %v3523 = vrot.slane %v3411, 2
      %v3524 = vsel %vm3484, %v3521, %v3523
      %v3525 = vrot.slane %v3412, 2
      %v3526 = vrot.slane %v3413, 2
      %v3527 = vsel %vm3484, %v3525, %v3526
      %v3528 = vrot.slane %v3414, 2
      %v3529 = vsel %vm3484, %v3526, %v3528
      %v3530 = vrot.slane %v3415, 2
      %v3531 = vrot.slane %v3416, 2
      %v3532 = vsel %vm3484, %v3530, %v3531
      %v3533 = vrot.slane %v3417, 2
      %v3534 = vsel %vm3484, %v3531, %v3533
      %v3535 = vrot.slane %v3418, 2
      %v3536 = vrot.slane %v3419, 2
      %v3537 = vsel %vm3484, %v3535, %v3536
      %v3538 = vrot.slane %v3420, 2
      %v3539 = vsel %vm3484, %v3536, %v3538
      %v3540 = vrot.slane %v3421, 2
      %v3541 = vrot.slane %v3422, 2
      %v3542 = vsel %vm3484, %v3540, %v3541
      %v3543 = vrot.slane %v3423, 2
      %v3544 = vsel %vm3484, %v3541, %v3543
      %v3545 = vrot.slane %v3424, 2
      %v3546 = vrot.slane %v3425, 2
      %v3547 = vsel %vm3484, %v3545, %v3546
      %v3548 = vrot.slane %v3426, 2
      %v3549 = vsel %vm3484, %v3546, %v3548
      %v3550 = vrot.slane %v3427, 2
      %v3551 = vrot.slane %v3428, 2
      %v3552 = vsel %vm3484, %v3550, %v3551
      %v3553 = vrot.slane %v3429, 2
      %v3554 = vsel %vm3484, %v3551, %v3553
      %v3555 = vrot.slane %v3430, 2
      %v3556 = vrot.slane %v3431, 2
      %v3557 = vsel %vm3484, %v3555, %v3556
      %v3558 = vrot.slane %v3432, 2
      %v3559 = vsel %vm3484, %v3556, %v3558
      %v3560 = vrot.slane %v3433, 2
      %v3561 = vrot.slane %v3434, 2
      %v3562 = vsel %vm3484, %v3560, %v3561
      %v3563 = vrot.slane %v3435, 2
      %v3564 = vsel %vm3484, %v3561, %v3563
      %v3597 = vadd.f32 %v3354, %v3487
      %v3598 = vadd.f32 %v3355, %v3489
      %v3599 = vadd.f32 %v3356, %v3492
      %v3600 = vadd.f32 %v3357, %v3494
      %v3601 = vadd.f32 %v3358, %v3497
      %v3602 = vadd.f32 %v3359, %v3499
      %v3603 = vadd.f32 %v3360, %v3502
      %v3604 = vadd.f32 %v3361, %v3504
      %v3605 = vadd.f32 %v3362, %v3507
      %v3606 = vadd.f32 %v3363, %v3509
      %v3607 = vadd.f32 %v3364, %v3512
      %v3608 = vadd.f32 %v3365, %v3514
      %v3609 = vadd.f32 %v3366, %v3517
      %v3610 = vadd.f32 %v3367, %v3519
      %v3611 = vadd.f32 %v3368, %v3522
      %v3612 = vadd.f32 %v3369, %v3524
      %v3613 = vadd.f32 %v3370, %v3527
      %v3614 = vadd.f32 %v3371, %v3529
      %v3615 = vadd.f32 %v3372, %v3532
      %v3616 = vadd.f32 %v3373, %v3534
      %v3617 = vadd.f32 %v3374, %v3537
      %v3618 = vadd.f32 %v3375, %v3539
      %v3619 = vadd.f32 %v3376, %v3542
      %v3620 = vadd.f32 %v3377, %v3544
      %v3621 = vadd.f32 %v3378, %v3547
      %v3622 = vadd.f32 %v3379, %v3549
      %v3623 = vadd.f32 %v3380, %v3552
      %v3624 = vadd.f32 %v3381, %v3554
      %v3625 = vadd.f32 %v3382, %v3557
      %v3626 = vadd.f32 %v3383, %v3559
      %v3627 = vadd.f32 %v3384, %v3562
      %v3628 = vadd.f32 %v3385, %v3564
      %v3629 = vld [vmem:[%s4 + $0x3] sm:$0x1]
      %v3630 = vperm.slane %v3629, 0
      %v3631 = vmul.f32 %v3026, %v3630
      %v3632 = vmul.f32 %v3027, %v3630
      %v3633 = vmul.f32 %v3029, %v3630
      %v3634 = vmul.f32 %v3030, %v3630
      %v3635 = vmul.f32 %v3032, %v3630
      %v3636 = vmul.f32 %v3033, %v3630
      %v3637 = vmul.f32 %v3035, %v3630
      %v3638 = vmul.f32 %v3036, %v3630
      %v3639 = vmul.f32 %v3038, %v3630
      %v3640 = vmul.f32 %v3039, %v3630
      %v3641 = vmul.f32 %v3041, %v3630
      %v3642 = vmul.f32 %v3042, %v3630
      %v3643 = vmul.f32 %v3044, %v3630
      %v3644 = vmul.f32 %v3045, %v3630
      %v3645 = vmul.f32 %v3047, %v3630
      %v3646 = vmul.f32 %v3048, %v3630
      %v3647 = vmul.f32 %v3050, %v3630
      %v3648 = vmul.f32 %v3051, %v3630
      %v3649 = vmul.f32 %v3053, %v3630
      %v3650 = vmul.f32 %v3054, %v3630
      %v3651 = vmul.f32 %v3056, %v3630
      %v3652 = vmul.f32 %v3057, %v3630
      %v3653 = vmul.f32 %v3059, %v3630
      %v3654 = vmul.f32 %v3060, %v3630
      %v3655 = vmul.f32 %v3062, %v3630
      %v3656 = vmul.f32 %v3063, %v3630
      %v3657 = vmul.f32 %v3065, %v3630
      %v3658 = vmul.f32 %v3066, %v3630
      %v3659 = vmul.f32 %v3068, %v3630
      %v3660 = vmul.f32 %v3069, %v3630
      %v3661 = vmul.f32 %v3071, %v3630
      %v3662 = vmul.f32 %v3072, %v3630
      %v3663 = vadd.f32 %v3597, %v3631
      %v3664 = vadd.f32 %v3598, %v3632
      %v3665 = vadd.f32 %v3599, %v3633
      %v3666 = vadd.f32 %v3600, %v3634
      %v3667 = vadd.f32 %v3601, %v3635
      %v3668 = vadd.f32 %v3602, %v3636
      %v3669 = vadd.f32 %v3603, %v3637
      %v3670 = vadd.f32 %v3604, %v3638
      %v3671 = vadd.f32 %v3605, %v3639
      %v3672 = vadd.f32 %v3606, %v3640
      %v3673 = vadd.f32 %v3607, %v3641
      %v3674 = vadd.f32 %v3608, %v3642
      %v3675 = vadd.f32 %v3609, %v3643
      %v3676 = vadd.f32 %v3610, %v3644
      %v3677 = vadd.f32 %v3611, %v3645
      %v3678 = vadd.f32 %v3612, %v3646
      %v3679 = vadd.f32 %v3613, %v3647
      %v3680 = vadd.f32 %v3614, %v3648
      %v3681 = vadd.f32 %v3615, %v3649
      %v3682 = vadd.f32 %v3616, %v3650
      %v3683 = vadd.f32 %v3617, %v3651
      %v3684 = vadd.f32 %v3618, %v3652
      %v3685 = vadd.f32 %v3619, %v3653
      %v3686 = vadd.f32 %v3620, %v3654
      %v3687 = vadd.f32 %v3621, %v3655
      %v3688 = vadd.f32 %v3622, %v3656
      %v3689 = vadd.f32 %v3623, %v3657
      %v3690 = vadd.f32 %v3624, %v3658
      %v3691 = vadd.f32 %v3625, %v3659
      %v3692 = vadd.f32 %v3626, %v3660
      %v3693 = vadd.f32 %v3627, %v3661
      %v3694 = vadd.f32 %v3628, %v3662
      %v3695 = vld [vmem:[%s4 + $0x4] sm:$0x1]
      %v3696 = vperm.slane %v3695, 0
      %v3697 = vmul.f32 %v3026, %v3696
      %v3698 = vmul.f32 %v3027, %v3696
      %v3699 = vmul.f32 %v3028, %v3696
      %v3700 = vmul.f32 %v3029, %v3696
      %v3701 = vmul.f32 %v3030, %v3696
      %v3702 = vmul.f32 %v3031, %v3696
      %v3703 = vmul.f32 %v3032, %v3696
      %v3704 = vmul.f32 %v3033, %v3696
      %v3705 = vmul.f32 %v3034, %v3696
      %v3706 = vmul.f32 %v3035, %v3696
      %v3707 = vmul.f32 %v3036, %v3696
      %v3708 = vmul.f32 %v3037, %v3696
      %v3709 = vmul.f32 %v3038, %v3696
      %v3710 = vmul.f32 %v3039, %v3696
      %v3711 = vmul.f32 %v3040, %v3696
      %v3712 = vmul.f32 %v3041, %v3696
      %v3713 = vmul.f32 %v3042, %v3696
      %v3714 = vmul.f32 %v3043, %v3696
      %v3715 = vmul.f32 %v3044, %v3696
      %v3716 = vmul.f32 %v3045, %v3696
      %v3717 = vmul.f32 %v3046, %v3696
      %v3718 = vmul.f32 %v3047, %v3696
      %v3719 = vmul.f32 %v3048, %v3696
      %v3720 = vmul.f32 %v3049, %v3696
      %v3721 = vmul.f32 %v3050, %v3696
      %v3722 = vmul.f32 %v3051, %v3696
      %v3723 = vmul.f32 %v3052, %v3696
      %v3724 = vmul.f32 %v3053, %v3696
      %v3725 = vmul.f32 %v3054, %v3696
      %v3726 = vmul.f32 %v3055, %v3696
      %v3727 = vmul.f32 %v3056, %v3696
      %v3728 = vmul.f32 %v3057, %v3696
      %v3729 = vmul.f32 %v3058, %v3696
      %v3730 = vmul.f32 %v3059, %v3696
      %v3731 = vmul.f32 %v3060, %v3696
      %v3732 = vmul.f32 %v3061, %v3696
      %v3733 = vmul.f32 %v3062, %v3696
      %v3734 = vmul.f32 %v3063, %v3696
      %v3735 = vmul.f32 %v3064, %v3696
      %v3736 = vmul.f32 %v3065, %v3696
      %v3737 = vmul.f32 %v3066, %v3696
      %v3738 = vmul.f32 %v3067, %v3696
      %v3739 = vmul.f32 %v3068, %v3696
      %v3740 = vmul.f32 %v3069, %v3696
      %v3741 = vmul.f32 %v3070, %v3696
      %v3742 = vmul.f32 %v3071, %v3696
      %v3743 = vmul.f32 %v3072, %v3696
      %v3744 = vmul.f32 %v3073, %v3696
      %v3793 = vrot.slane %v3697, 1
      %v3794 = vrot.slane %v3698, 1
      %v3795 = vsel %vm3241, %v3793, %v3794
      %v3796 = vrot.slane %v3699, 1
      %v3797 = vsel %vm3241, %v3794, %v3796
      %v3798 = vrot.slane %v3700, 1
      %v3799 = vrot.slane %v3701, 1
      %v3800 = vsel %vm3241, %v3798, %v3799
      %v3801 = vrot.slane %v3702, 1
      %v3802 = vsel %vm3241, %v3799, %v3801
      %v3803 = vrot.slane %v3703, 1
      %v3804 = vrot.slane %v3704, 1
      %v3805 = vsel %vm3241, %v3803, %v3804
      %v3806 = vrot.slane %v3705, 1
      %v3807 = vsel %vm3241, %v3804, %v3806
      %v3808 = vrot.slane %v3706, 1
      %v3809 = vrot.slane %v3707, 1
      %v3810 = vsel %vm3241, %v3808, %v3809
      %v3811 = vrot.slane %v3708, 1
      %v3812 = vsel %vm3241, %v3809, %v3811
      %v3813 = vrot.slane %v3709, 1
      %v3814 = vrot.slane %v3710, 1
      %v3815 = vsel %vm3241, %v3813, %v3814
      %v3816 = vrot.slane %v3711, 1
      %v3817 = vsel %vm3241, %v3814, %v3816
      %v3818 = vrot.slane %v3712, 1
      %v3819 = vrot.slane %v3713, 1
      %v3820 = vsel %vm3241, %v3818, %v3819
      %v3821 = vrot.slane %v3714, 1
      %v3822 = vsel %vm3241, %v3819, %v3821
      %v3823 = vrot.slane %v3715, 1
      %v3824 = vrot.slane %v3716, 1
      %v3825 = vsel %vm3241, %v3823, %v3824
      %v3826 = vrot.slane %v3717, 1
      %v3827 = vsel %vm3241, %v3824, %v3826
      %v3828 = vrot.slane %v3718, 1
      %v3829 = vrot.slane %v3719, 1
      %v3830 = vsel %vm3241, %v3828, %v3829
      %v3831 = vrot.slane %v3720, 1
      %v3832 = vsel %vm3241, %v3829, %v3831
      %v3833 = vrot.slane %v3721, 1
      %v3834 = vrot.slane %v3722, 1
      %v3835 = vsel %vm3241, %v3833, %v3834
      %v3836 = vrot.slane %v3723, 1
      %v3837 = vsel %vm3241, %v3834, %v3836
      %v3838 = vrot.slane %v3724, 1
      %v3839 = vrot.slane %v3725, 1
      %v3840 = vsel %vm3241, %v3838, %v3839
      %v3841 = vrot.slane %v3726, 1
      %v3842 = vsel %vm3241, %v3839, %v3841
      %v3843 = vrot.slane %v3727, 1
      %v3844 = vrot.slane %v3728, 1
      %v3845 = vsel %vm3241, %v3843, %v3844
      %v3846 = vrot.slane %v3729, 1
      %v3847 = vsel %vm3241, %v3844, %v3846
      %v3848 = vrot.slane %v3730, 1
      %v3849 = vrot.slane %v3731, 1
      %v3850 = vsel %vm3241, %v3848, %v3849
      %v3851 = vrot.slane %v3732, 1
      %v3852 = vsel %vm3241, %v3849, %v3851
      %v3853 = vrot.slane %v3733, 1
      %v3854 = vrot.slane %v3734, 1
      %v3855 = vsel %vm3241, %v3853, %v3854
      %v3856 = vrot.slane %v3735, 1
      %v3857 = vsel %vm3241, %v3854, %v3856
      %v3858 = vrot.slane %v3736, 1
      %v3859 = vrot.slane %v3737, 1
      %v3860 = vsel %vm3241, %v3858, %v3859
      %v3861 = vrot.slane %v3738, 1
      %v3862 = vsel %vm3241, %v3859, %v3861
      %v3863 = vrot.slane %v3739, 1
      %v3864 = vrot.slane %v3740, 1
      %v3865 = vsel %vm3241, %v3863, %v3864
      %v3866 = vrot.slane %v3741, 1
      %v3867 = vsel %vm3241, %v3864, %v3866
      %v3868 = vrot.slane %v3742, 1
      %v3869 = vrot.slane %v3743, 1
      %v3870 = vsel %vm3241, %v3868, %v3869
      %v3871 = vrot.slane %v3744, 1
      %v3872 = vsel %vm3241, %v3869, %v3871
      %v3905 = vadd.f32 %v3663, %v3795
      %v3906 = vadd.f32 %v3664, %v3797
      %v3907 = vadd.f32 %v3665, %v3800
      %v3908 = vadd.f32 %v3666, %v3802
      %v3909 = vadd.f32 %v3667, %v3805
      %v3910 = vadd.f32 %v3668, %v3807
      %v3911 = vadd.f32 %v3669, %v3810
      %v3912 = vadd.f32 %v3670, %v3812
      %v3913 = vadd.f32 %v3671, %v3815
      %v3914 = vadd.f32 %v3672, %v3817
      %v3915 = vadd.f32 %v3673, %v3820
      %v3916 = vadd.f32 %v3674, %v3822
      %v3917 = vadd.f32 %v3675, %v3825
      %v3918 = vadd.f32 %v3676, %v3827
      %v3919 = vadd.f32 %v3677, %v3830
      %v3920 = vadd.f32 %v3678, %v3832
      %v3921 = vadd.f32 %v3679, %v3835
      %v3922 = vadd.f32 %v3680, %v3837
      %v3923 = vadd.f32 %v3681, %v3840
      %v3924 = vadd.f32 %v3682, %v3842
      %v3925 = vadd.f32 %v3683, %v3845
      %v3926 = vadd.f32 %v3684, %v3847
      %v3927 = vadd.f32 %v3685, %v3850
      %v3928 = vadd.f32 %v3686, %v3852
      %v3929 = vadd.f32 %v3687, %v3855
      %v3930 = vadd.f32 %v3688, %v3857
      %v3931 = vadd.f32 %v3689, %v3860
      %v3932 = vadd.f32 %v3690, %v3862
      %v3933 = vadd.f32 %v3691, %v3865
      %v3934 = vadd.f32 %v3692, %v3867
      %v3935 = vadd.f32 %v3693, %v3870
      %v3936 = vadd.f32 %v3694, %v3872
      %v3937 = vld [vmem:[%s4 + $0x5] sm:$0x1]
      %v3938 = vperm.slane %v3937, 0
      %v3939 = vmul.f32 %v3026, %v3938
      %v3940 = vmul.f32 %v3027, %v3938
      %v3941 = vmul.f32 %v3028, %v3938
      %v3942 = vmul.f32 %v3029, %v3938
      %v3943 = vmul.f32 %v3030, %v3938
      %v3944 = vmul.f32 %v3031, %v3938
      %v3945 = vmul.f32 %v3032, %v3938
      %v3946 = vmul.f32 %v3033, %v3938
      %v3947 = vmul.f32 %v3034, %v3938
      %v3948 = vmul.f32 %v3035, %v3938
      %v3949 = vmul.f32 %v3036, %v3938
      %v3950 = vmul.f32 %v3037, %v3938
      %v3951 = vmul.f32 %v3038, %v3938
      %v3952 = vmul.f32 %v3039, %v3938
      %v3953 = vmul.f32 %v3040, %v3938
      %v3954 = vmul.f32 %v3041, %v3938
      %v3955 = vmul.f32 %v3042, %v3938
      %v3956 = vmul.f32 %v3043, %v3938
      %v3957 = vmul.f32 %v3044, %v3938
      %v3958 = vmul.f32 %v3045, %v3938
      %v3959 = vmul.f32 %v3046, %v3938
      %v3960 = vmul.f32 %v3047, %v3938
      %v3961 = vmul.f32 %v3048, %v3938
      %v3962 = vmul.f32 %v3049, %v3938
      %v3963 = vmul.f32 %v3050, %v3938
      %v3964 = vmul.f32 %v3051, %v3938
      %v3965 = vmul.f32 %v3052, %v3938
      %v3966 = vmul.f32 %v3053, %v3938
      %v3967 = vmul.f32 %v3054, %v3938
      %v3968 = vmul.f32 %v3055, %v3938
      %v3969 = vmul.f32 %v3056, %v3938
      %v3970 = vmul.f32 %v3057, %v3938
      %v3971 = vmul.f32 %v3058, %v3938
      %v3972 = vmul.f32 %v3059, %v3938
      %v3973 = vmul.f32 %v3060, %v3938
      %v3974 = vmul.f32 %v3061, %v3938
      %v3975 = vmul.f32 %v3062, %v3938
      %v3976 = vmul.f32 %v3063, %v3938
      %v3977 = vmul.f32 %v3064, %v3938
      %v3978 = vmul.f32 %v3065, %v3938
      %v3979 = vmul.f32 %v3066, %v3938
      %v3980 = vmul.f32 %v3067, %v3938
      %v3981 = vmul.f32 %v3068, %v3938
      %v3982 = vmul.f32 %v3069, %v3938
      %v3983 = vmul.f32 %v3070, %v3938
      %v3984 = vmul.f32 %v3071, %v3938
      %v3985 = vmul.f32 %v3072, %v3938
      %v3986 = vmul.f32 %v3073, %v3938
      %v4035 = vrot.slane %v3939, 2
      %v4036 = vrot.slane %v3940, 2
      %v4037 = vsel %vm3484, %v4035, %v4036
      %v4038 = vrot.slane %v3941, 2
      %v4039 = vsel %vm3484, %v4036, %v4038
      %v4040 = vrot.slane %v3942, 2
      %v4041 = vrot.slane %v3943, 2
      %v4042 = vsel %vm3484, %v4040, %v4041
      %v4043 = vrot.slane %v3944, 2
      %v4044 = vsel %vm3484, %v4041, %v4043
      %v4045 = vrot.slane %v3945, 2
      %v4046 = vrot.slane %v3946, 2
      %v4047 = vsel %vm3484, %v4045, %v4046
      %v4048 = vrot.slane %v3947, 2
      %v4049 = vsel %vm3484, %v4046, %v4048
      %v4050 = vrot.slane %v3948, 2
      %v4051 = vrot.slane %v3949, 2
      %v4052 = vsel %vm3484, %v4050, %v4051
      %v4053 = vrot.slane %v3950, 2
      %v4054 = vsel %vm3484, %v4051, %v4053
      %v4055 = vrot.slane %v3951, 2
      %v4056 = vrot.slane %v3952, 2
      %v4057 = vsel %vm3484, %v4055, %v4056
      %v4058 = vrot.slane %v3953, 2
      %v4059 = vsel %vm3484, %v4056, %v4058
      %v4060 = vrot.slane %v3954, 2
      %v4061 = vrot.slane %v3955, 2
      %v4062 = vsel %vm3484, %v4060, %v4061
      %v4063 = vrot.slane %v3956, 2
      %v4064 = vsel %vm3484, %v4061, %v4063
      %v4065 = vrot.slane %v3957, 2
      %v4066 = vrot.slane %v3958, 2
      %v4067 = vsel %vm3484, %v4065, %v4066
      %v4068 = vrot.slane %v3959, 2
      %v4069 = vsel %vm3484, %v4066, %v4068
      %v4070 = vrot.slane %v3960, 2
      %v4071 = vrot.slane %v3961, 2
      %v4072 = vsel %vm3484, %v4070, %v4071
      %v4073 = vrot.slane %v3962, 2
      %v4074 = vsel %vm3484, %v4071, %v4073
      %v4075 = vrot.slane %v3963, 2
      %v4076 = vrot.slane %v3964, 2
      %v4077 = vsel %vm3484, %v4075, %v4076
      %v4078 = vrot.slane %v3965, 2
      %v4079 = vsel %vm3484, %v4076, %v4078
      %v4080 = vrot.slane %v3966, 2
      %v4081 = vrot.slane %v3967, 2
      %v4082 = vsel %vm3484, %v4080, %v4081
      %v4083 = vrot.slane %v3968, 2
      %v4084 = vsel %vm3484, %v4081, %v4083
      %v4085 = vrot.slane %v3969, 2
      %v4086 = vrot.slane %v3970, 2
      %v4087 = vsel %vm3484, %v4085, %v4086
      %v4088 = vrot.slane %v3971, 2
      %v4089 = vsel %vm3484, %v4086, %v4088
      %v4090 = vrot.slane %v3972, 2
      %v4091 = vrot.slane %v3973, 2
      %v4092 = vsel %vm3484, %v4090, %v4091
      %v4093 = vrot.slane %v3974, 2
      %v4094 = vsel %vm3484, %v4091, %v4093
      %v4095 = vrot.slane %v3975, 2
      %v4096 = vrot.slane %v3976, 2
      %v4097 = vsel %vm3484, %v4095, %v4096
      %v4098 = vrot.slane %v3977, 2
      %v4099 = vsel %vm3484, %v4096, %v4098
      %v4100 = vrot.slane %v3978, 2
      %v4101 = vrot.slane %v3979, 2
      %v4102 = vsel %vm3484, %v4100, %v4101
      %v4103 = vrot.slane %v3980, 2
      %v4104 = vsel %vm3484, %v4101, %v4103
      %v4105 = vrot.slane %v3981, 2
      %v4106 = vrot.slane %v3982, 2
      %v4107 = vsel %vm3484, %v4105, %v4106
      %v4108 = vrot.slane %v3983, 2
      %v4109 = vsel %vm3484, %v4106, %v4108
      %v4110 = vrot.slane %v3984, 2
      %v4111 = vrot.slane %v3985, 2
      %v4112 = vsel %vm3484, %v4110, %v4111
      %v4113 = vrot.slane %v3986, 2
      %v4114 = vsel %vm3484, %v4111, %v4113
      %v4147 = vadd.f32 %v3905, %v4037
      %v4148 = vadd.f32 %v3906, %v4039
      %v4149 = vadd.f32 %v3907, %v4042
      %v4150 = vadd.f32 %v3908, %v4044
      %v4151 = vadd.f32 %v3909, %v4047
      %v4152 = vadd.f32 %v3910, %v4049
      %v4153 = vadd.f32 %v3911, %v4052
      %v4154 = vadd.f32 %v3912, %v4054
      %v4155 = vadd.f32 %v3913, %v4057
      %v4156 = vadd.f32 %v3914, %v4059
      %v4157 = vadd.f32 %v3915, %v4062
      %v4158 = vadd.f32 %v3916, %v4064
      %v4159 = vadd.f32 %v3917, %v4067
      %v4160 = vadd.f32 %v3918, %v4069
      %v4161 = vadd.f32 %v3919, %v4072
      %v4162 = vadd.f32 %v3920, %v4074
      %v4163 = vadd.f32 %v3921, %v4077
      %v4164 = vadd.f32 %v3922, %v4079
      %v4165 = vadd.f32 %v3923, %v4082
      %v4166 = vadd.f32 %v3924, %v4084
      %v4167 = vadd.f32 %v3925, %v4087
      %v4168 = vadd.f32 %v3926, %v4089
      %v4169 = vadd.f32 %v3927, %v4092
      %v4170 = vadd.f32 %v3928, %v4094
      %v4171 = vadd.f32 %v3929, %v4097
      %v4172 = vadd.f32 %v3930, %v4099
      %v4173 = vadd.f32 %v3931, %v4102
      %v4174 = vadd.f32 %v3932, %v4104
      %v4175 = vadd.f32 %v3933, %v4107
      %v4176 = vadd.f32 %v3934, %v4109
      %v4177 = vadd.f32 %v3935, %v4112
      %v4178 = vadd.f32 %v3936, %v4114
      %v4179 = vld [vmem:[%s4 + $0x6] sm:$0x1]
      %v4180 = vperm.slane %v4179, 0
      %v4181 = vmul.f32 %v3029, %v4180
      %v4182 = vmul.f32 %v3030, %v4180
      %v4183 = vmul.f32 %v3032, %v4180
      %v4184 = vmul.f32 %v3033, %v4180
      %v4185 = vmul.f32 %v3035, %v4180
      %v4186 = vmul.f32 %v3036, %v4180
      %v4187 = vmul.f32 %v3038, %v4180
      %v4188 = vmul.f32 %v3039, %v4180
      %v4189 = vmul.f32 %v3041, %v4180
      %v4190 = vmul.f32 %v3042, %v4180
      %v4191 = vmul.f32 %v3044, %v4180
      %v4192 = vmul.f32 %v3045, %v4180
      %v4193 = vmul.f32 %v3047, %v4180
      %v4194 = vmul.f32 %v3048, %v4180
      %v4195 = vmul.f32 %v3050, %v4180
      %v4196 = vmul.f32 %v3051, %v4180
      %v4197 = vmul.f32 %v3053, %v4180
      %v4198 = vmul.f32 %v3054, %v4180
      %v4199 = vmul.f32 %v3056, %v4180
      %v4200 = vmul.f32 %v3057, %v4180
      %v4201 = vmul.f32 %v3059, %v4180
      %v4202 = vmul.f32 %v3060, %v4180
      %v4203 = vmul.f32 %v3062, %v4180
      %v4204 = vmul.f32 %v3063, %v4180
      %v4205 = vmul.f32 %v3065, %v4180
      %v4206 = vmul.f32 %v3066, %v4180
      %v4207 = vmul.f32 %v3068, %v4180
      %v4208 = vmul.f32 %v3069, %v4180
      %v4209 = vmul.f32 %v3071, %v4180
      %v4210 = vmul.f32 %v3072, %v4180
      %v4211 = vmul.f32 %v3074, %v4180
      %v4212 = vmul.f32 %v3075, %v4180
      %v4213 = vadd.f32 %v4147, %v4181
      %v4214 = vadd.f32 %v4148, %v4182
      %v4215 = vadd.f32 %v4149, %v4183
      %v4216 = vadd.f32 %v4150, %v4184
      %v4217 = vadd.f32 %v4151, %v4185
      %v4218 = vadd.f32 %v4152, %v4186
      %v4219 = vadd.f32 %v4153, %v4187
      %v4220 = vadd.f32 %v4154, %v4188
      %v4221 = vadd.f32 %v4155, %v4189
      %v4222 = vadd.f32 %v4156, %v4190
      %v4223 = vadd.f32 %v4157, %v4191
      %v4224 = vadd.f32 %v4158, %v4192
      %v4225 = vadd.f32 %v4159, %v4193
      %v4226 = vadd.f32 %v4160, %v4194
      %v4227 = vadd.f32 %v4161, %v4195
      %v4228 = vadd.f32 %v4162, %v4196
      %v4229 = vadd.f32 %v4163, %v4197
      %v4230 = vadd.f32 %v4164, %v4198
      %v4231 = vadd.f32 %v4165, %v4199
      %v4232 = vadd.f32 %v4166, %v4200
      %v4233 = vadd.f32 %v4167, %v4201
      %v4234 = vadd.f32 %v4168, %v4202
      %v4235 = vadd.f32 %v4169, %v4203
      %v4236 = vadd.f32 %v4170, %v4204
      %v4237 = vadd.f32 %v4171, %v4205
      %v4238 = vadd.f32 %v4172, %v4206
      %v4239 = vadd.f32 %v4173, %v4207
      %v4240 = vadd.f32 %v4174, %v4208
      %v4241 = vadd.f32 %v4175, %v4209
      %v4242 = vadd.f32 %v4176, %v4210
      %v4243 = vadd.f32 %v4177, %v4211
      %v4244 = vadd.f32 %v4178, %v4212
      %v4245 = vld [vmem:[%s4 + $0x7] sm:$0x1]
      %v4246 = vperm.slane %v4245, 0
      %v4247 = vmul.f32 %v3029, %v4246
      %v4248 = vmul.f32 %v3030, %v4246
      %v4249 = vmul.f32 %v3031, %v4246
      %v4250 = vmul.f32 %v3032, %v4246
      %v4251 = vmul.f32 %v3033, %v4246
      %v4252 = vmul.f32 %v3034, %v4246
      %v4253 = vmul.f32 %v3035, %v4246
      %v4254 = vmul.f32 %v3036, %v4246
      %v4255 = vmul.f32 %v3037, %v4246
      %v4256 = vmul.f32 %v3038, %v4246
      %v4257 = vmul.f32 %v3039, %v4246
      %v4258 = vmul.f32 %v3040, %v4246
      %v4259 = vmul.f32 %v3041, %v4246
      %v4260 = vmul.f32 %v3042, %v4246
      %v4261 = vmul.f32 %v3043, %v4246
      %v4262 = vmul.f32 %v3044, %v4246
      %v4263 = vmul.f32 %v3045, %v4246
      %v4264 = vmul.f32 %v3046, %v4246
      %v4265 = vmul.f32 %v3047, %v4246
      %v4266 = vmul.f32 %v3048, %v4246
      %v4267 = vmul.f32 %v3049, %v4246
      %v4268 = vmul.f32 %v3050, %v4246
      %v4269 = vmul.f32 %v3051, %v4246
      %v4270 = vmul.f32 %v3052, %v4246
      %v4271 = vmul.f32 %v3053, %v4246
      %v4272 = vmul.f32 %v3054, %v4246
      %v4273 = vmul.f32 %v3055, %v4246
      %v4274 = vmul.f32 %v3056, %v4246
      %v4275 = vmul.f32 %v3057, %v4246
      %v4276 = vmul.f32 %v3058, %v4246
      %v4277 = vmul.f32 %v3059, %v4246
      %v4278 = vmul.f32 %v3060, %v4246
      %v4279 = vmul.f32 %v3061, %v4246
      %v4280 = vmul.f32 %v3062, %v4246
      %v4281 = vmul.f32 %v3063, %v4246
      %v4282 = vmul.f32 %v3064, %v4246
      %v4283 = vmul.f32 %v3065, %v4246
      %v4284 = vmul.f32 %v3066, %v4246
      %v4285 = vmul.f32 %v3067, %v4246
      %v4286 = vmul.f32 %v3068, %v4246
      %v4287 = vmul.f32 %v3069, %v4246
      %v4288 = vmul.f32 %v3070, %v4246
      %v4289 = vmul.f32 %v3071, %v4246
      %v4290 = vmul.f32 %v3072, %v4246
      %v4291 = vmul.f32 %v3073, %v4246
      %v4292 = vmul.f32 %v3074, %v4246
      %v4293 = vmul.f32 %v3075, %v4246
      %v4294 = vmul.f32 %v3076, %v4246
      %v4343 = vrot.slane %v4247, 1
      %v4344 = vrot.slane %v4248, 1
      %v4345 = vsel %vm3241, %v4343, %v4344
      %v4346 = vrot.slane %v4249, 1
      %v4347 = vsel %vm3241, %v4344, %v4346
      %v4348 = vrot.slane %v4250, 1
      %v4349 = vrot.slane %v4251, 1
      %v4350 = vsel %vm3241, %v4348, %v4349
      %v4351 = vrot.slane %v4252, 1
      %v4352 = vsel %vm3241, %v4349, %v4351
      %v4353 = vrot.slane %v4253, 1
      %v4354 = vrot.slane %v4254, 1
      %v4355 = vsel %vm3241, %v4353, %v4354
      %v4356 = vrot.slane %v4255, 1
      %v4357 = vsel %vm3241, %v4354, %v4356
      %v4358 = vrot.slane %v4256, 1
      %v4359 = vrot.slane %v4257, 1
      %v4360 = vsel %vm3241, %v4358, %v4359
      %v4361 = vrot.slane %v4258, 1
      %v4362 = vsel %vm3241, %v4359, %v4361
      %v4363 = vrot.slane %v4259, 1
      %v4364 = vrot.slane %v4260, 1
      %v4365 = vsel %vm3241, %v4363, %v4364
      %v4366 = vrot.slane %v4261, 1
      %v4367 = vsel %vm3241, %v4364, %v4366
      %v4368 = vrot.slane %v4262, 1
      %v4369 = vrot.slane %v4263, 1
      %v4370 = vsel %vm3241, %v4368, %v4369
      %v4371 = vrot.slane %v4264, 1
      %v4372 = vsel %vm3241, %v4369, %v4371
      %v4373 = vrot.slane %v4265, 1
      %v4374 = vrot.slane %v4266, 1
      %v4375 = vsel %vm3241, %v4373, %v4374
      %v4376 = vrot.slane %v4267, 1
      %v4377 = vsel %vm3241, %v4374, %v4376
      %v4378 = vrot.slane %v4268, 1
      %v4379 = vrot.slane %v4269, 1
      %v4380 = vsel %vm3241, %v4378, %v4379
      %v4381 = vrot.slane %v4270, 1
      %v4382 = vsel %vm3241, %v4379, %v4381
      %v4383 = vrot.slane %v4271, 1
      %v4384 = vrot.slane %v4272, 1
      %v4385 = vsel %vm3241, %v4383, %v4384
      %v4386 = vrot.slane %v4273, 1
      %v4387 = vsel %vm3241, %v4384, %v4386
      %v4388 = vrot.slane %v4274, 1
      %v4389 = vrot.slane %v4275, 1
      %v4390 = vsel %vm3241, %v4388, %v4389
      %v4391 = vrot.slane %v4276, 1
      %v4392 = vsel %vm3241, %v4389, %v4391
      %v4393 = vrot.slane %v4277, 1
      %v4394 = vrot.slane %v4278, 1
      %v4395 = vsel %vm3241, %v4393, %v4394
      %v4396 = vrot.slane %v4279, 1
      %v4397 = vsel %vm3241, %v4394, %v4396
      %v4398 = vrot.slane %v4280, 1
      %v4399 = vrot.slane %v4281, 1
      %v4400 = vsel %vm3241, %v4398, %v4399
      %v4401 = vrot.slane %v4282, 1
      %v4402 = vsel %vm3241, %v4399, %v4401
      %v4403 = vrot.slane %v4283, 1
      %v4404 = vrot.slane %v4284, 1
      %v4405 = vsel %vm3241, %v4403, %v4404
      %v4406 = vrot.slane %v4285, 1
      %v4407 = vsel %vm3241, %v4404, %v4406
      %v4408 = vrot.slane %v4286, 1
      %v4409 = vrot.slane %v4287, 1
      %v4410 = vsel %vm3241, %v4408, %v4409
      %v4411 = vrot.slane %v4288, 1
      %v4412 = vsel %vm3241, %v4409, %v4411
      %v4413 = vrot.slane %v4289, 1
      %v4414 = vrot.slane %v4290, 1
      %v4415 = vsel %vm3241, %v4413, %v4414
      %v4416 = vrot.slane %v4291, 1
      %v4417 = vsel %vm3241, %v4414, %v4416
      %v4418 = vrot.slane %v4292, 1
      %v4419 = vrot.slane %v4293, 1
      %v4420 = vsel %vm3241, %v4418, %v4419
      %v4421 = vrot.slane %v4294, 1
      %v4422 = vsel %vm3241, %v4419, %v4421
      %v4455 = vadd.f32 %v4213, %v4345
      %v4456 = vadd.f32 %v4214, %v4347
      %v4457 = vadd.f32 %v4215, %v4350
      %v4458 = vadd.f32 %v4216, %v4352
      %v4459 = vadd.f32 %v4217, %v4355
      %v4460 = vadd.f32 %v4218, %v4357
      %v4461 = vadd.f32 %v4219, %v4360
      %v4462 = vadd.f32 %v4220, %v4362
      %v4463 = vadd.f32 %v4221, %v4365
      %v4464 = vadd.f32 %v4222, %v4367
      %v4465 = vadd.f32 %v4223, %v4370
      %v4466 = vadd.f32 %v4224, %v4372
      %v4467 = vadd.f32 %v4225, %v4375
      %v4468 = vadd.f32 %v4226, %v4377
      %v4469 = vadd.f32 %v4227, %v4380
      %v4470 = vadd.f32 %v4228, %v4382
      %v4471 = vadd.f32 %v4229, %v4385
      %v4472 = vadd.f32 %v4230, %v4387
      %v4473 = vadd.f32 %v4231, %v4390
      %v4474 = vadd.f32 %v4232, %v4392
      %v4475 = vadd.f32 %v4233, %v4395
      %v4476 = vadd.f32 %v4234, %v4397
      %v4477 = vadd.f32 %v4235, %v4400
      %v4478 = vadd.f32 %v4236, %v4402
      %v4479 = vadd.f32 %v4237, %v4405
      %v4480 = vadd.f32 %v4238, %v4407
      %v4481 = vadd.f32 %v4239, %v4410
      %v4482 = vadd.f32 %v4240, %v4412
      %v4483 = vadd.f32 %v4241, %v4415
      %v4484 = vadd.f32 %v4242, %v4417
      %v4485 = vadd.f32 %v4243, %v4420
      %v4486 = vadd.f32 %v4244, %v4422
      %v4487 = vld [vmem:[%s4 + $0x8] sm:$0x1]
      %v4488 = vperm.slane %v4487, 0
      %v4489 = vmul.f32 %v3029, %v4488
      %v4490 = vmul.f32 %v3030, %v4488
      %v4491 = vmul.f32 %v3031, %v4488
      %v4492 = vmul.f32 %v3032, %v4488
      %v4493 = vmul.f32 %v3033, %v4488
      %v4494 = vmul.f32 %v3034, %v4488
      %v4495 = vmul.f32 %v3035, %v4488
      %v4496 = vmul.f32 %v3036, %v4488
      %v4497 = vmul.f32 %v3037, %v4488
      %v4498 = vmul.f32 %v3038, %v4488
      %v4499 = vmul.f32 %v3039, %v4488
      %v4500 = vmul.f32 %v3040, %v4488
      %v4501 = vmul.f32 %v3041, %v4488
      %v4502 = vmul.f32 %v3042, %v4488
      %v4503 = vmul.f32 %v3043, %v4488
      %v4504 = vmul.f32 %v3044, %v4488
      %v4505 = vmul.f32 %v3045, %v4488
      %v4506 = vmul.f32 %v3046, %v4488
      %v4507 = vmul.f32 %v3047, %v4488
      %v4508 = vmul.f32 %v3048, %v4488
      %v4509 = vmul.f32 %v3049, %v4488
      %v4510 = vmul.f32 %v3050, %v4488
      %v4511 = vmul.f32 %v3051, %v4488
      %v4512 = vmul.f32 %v3052, %v4488
      %v4513 = vmul.f32 %v3053, %v4488
      %v4514 = vmul.f32 %v3054, %v4488
      %v4515 = vmul.f32 %v3055, %v4488
      %v4516 = vmul.f32 %v3056, %v4488
      %v4517 = vmul.f32 %v3057, %v4488
      %v4518 = vmul.f32 %v3058, %v4488
      %v4519 = vmul.f32 %v3059, %v4488
      %v4520 = vmul.f32 %v3060, %v4488
      %v4521 = vmul.f32 %v3061, %v4488
      %v4522 = vmul.f32 %v3062, %v4488
      %v4523 = vmul.f32 %v3063, %v4488
      %v4524 = vmul.f32 %v3064, %v4488
      %v4525 = vmul.f32 %v3065, %v4488
      %v4526 = vmul.f32 %v3066, %v4488
      %v4527 = vmul.f32 %v3067, %v4488
      %v4528 = vmul.f32 %v3068, %v4488
      %v4529 = vmul.f32 %v3069, %v4488
      %v4530 = vmul.f32 %v3070, %v4488
      %v4531 = vmul.f32 %v3071, %v4488
      %v4532 = vmul.f32 %v3072, %v4488
      %v4533 = vmul.f32 %v3073, %v4488
      %v4534 = vmul.f32 %v3074, %v4488
      %v4535 = vmul.f32 %v3075, %v4488
      %v4536 = vmul.f32 %v3076, %v4488
      %v4585 = vrot.slane %v4489, 2
      %v4586 = vrot.slane %v4490, 2
      %v4587 = vsel %vm3484, %v4585, %v4586
      %v4588 = vrot.slane %v4491, 2
      %v4589 = vsel %vm3484, %v4586, %v4588
      %v4590 = vrot.slane %v4492, 2
      %v4591 = vrot.slane %v4493, 2
      %v4592 = vsel %vm3484, %v4590, %v4591
      %v4593 = vrot.slane %v4494, 2
      %v4594 = vsel %vm3484, %v4591, %v4593
      %v4595 = vrot.slane %v4495, 2
      %v4596 = vrot.slane %v4496, 2
      %v4597 = vsel %vm3484, %v4595, %v4596
      %v4598 = vrot.slane %v4497, 2
      %v4599 = vsel %vm3484, %v4596, %v4598
      %v4600 = vrot.slane %v4498, 2
      %v4601 = vrot.slane %v4499, 2
      %v4602 = vsel %vm3484, %v4600, %v4601
      %v4603 = vrot.slane %v4500, 2
      %v4604 = vsel %vm3484, %v4601, %v4603
      %v4605 = vrot.slane %v4501, 2
      %v4606 = vrot.slane %v4502, 2
      %v4607 = vsel %vm3484, %v4605, %v4606
      %v4608 = vrot.slane %v4503, 2
      %v4609 = vsel %vm3484, %v4606, %v4608
      %v4610 = vrot.slane %v4504, 2
      %v4611 = vrot.slane %v4505, 2
      %v4612 = vsel %vm3484, %v4610, %v4611
      %v4613 = vrot.slane %v4506, 2
      %v4614 = vsel %vm3484, %v4611, %v4613
      %v4615 = vrot.slane %v4507, 2
      %v4616 = vrot.slane %v4508, 2
      %v4617 = vsel %vm3484, %v4615, %v4616
      %v4618 = vrot.slane %v4509, 2
      %v4619 = vsel %vm3484, %v4616, %v4618
      %v4620 = vrot.slane %v4510, 2
      %v4621 = vrot.slane %v4511, 2
      %v4622 = vsel %vm3484, %v4620, %v4621
      %v4623 = vrot.slane %v4512, 2
      %v4624 = vsel %vm3484, %v4621, %v4623
      %v4625 = vrot.slane %v4513, 2
      %v4626 = vrot.slane %v4514, 2
      %v4627 = vsel %vm3484, %v4625, %v4626
      %v4628 = vrot.slane %v4515, 2
      %v4629 = vsel %vm3484, %v4626, %v4628
      %v4630 = vrot.slane %v4516, 2
      %v4631 = vrot.slane %v4517, 2
      %v4632 = vsel %vm3484, %v4630, %v4631
      %v4633 = vrot.slane %v4518, 2
      %v4634 = vsel %vm3484, %v4631, %v4633
      %v4635 = vrot.slane %v4519, 2
      %v4636 = vrot.slane %v4520, 2
      %v4637 = vsel %vm3484, %v4635, %v4636
      %v4638 = vrot.slane %v4521, 2
      %v4639 = vsel %vm3484, %v4636, %v4638
      %v4640 = vrot.slane %v4522, 2
      %v4641 = vrot.slane %v4523, 2
      %v4642 = vsel %vm3484, %v4640, %v4641
      %v4643 = vrot.slane %v4524, 2
      %v4644 = vsel %vm3484, %v4641, %v4643
      %v4645 = vrot.slane %v4525, 2
      %v4646 = vrot.slane %v4526, 2
      %v4647 = vsel %vm3484, %v4645, %v4646
      %v4648 = vrot.slane %v4527, 2
      %v4649 = vsel %vm3484, %v4646, %v4648
      %v4650 = vrot.slane %v4528, 2
      %v4651 = vrot.slane %v4529, 2
      %v4652 = vsel %vm3484, %v4650, %v4651
      %v4653 = vrot.slane %v4530, 2
      %v4654 = vsel %vm3484, %v4651, %v4653
      %v4655 = vrot.slane %v4531, 2
      %v4656 = vrot.slane %v4532, 2
      %v4657 = vsel %vm3484, %v4655, %v4656
      %v4658 = vrot.slane %v4533, 2
      %v4659 = vsel %vm3484, %v4656, %v4658
      %v4660 = vrot.slane %v4534, 2
      %v4661 = vrot.slane %v4535, 2
      %v4662 = vsel %vm3484, %v4660, %v4661
      %v4663 = vrot.slane %v4536, 2
      %v4664 = vsel %vm3484, %v4661, %v4663
      %v4697 = vadd.f32 %v4455, %v4587
      %v4698 = vadd.f32 %v4456, %v4589
      %v4699 = vadd.f32 %v4457, %v4592
      %v4700 = vadd.f32 %v4458, %v4594
      %v4701 = vadd.f32 %v4459, %v4597
      %v4702 = vadd.f32 %v4460, %v4599
      %v4703 = vadd.f32 %v4461, %v4602
      %v4704 = vadd.f32 %v4462, %v4604
      %v4705 = vadd.f32 %v4463, %v4607
      %v4706 = vadd.f32 %v4464, %v4609
      %v4707 = vadd.f32 %v4465, %v4612
      %v4708 = vadd.f32 %v4466, %v4614
      %v4709 = vadd.f32 %v4467, %v4617
      %v4710 = vadd.f32 %v4468, %v4619
      %v4711 = vadd.f32 %v4469, %v4622
      %v4712 = vadd.f32 %v4470, %v4624
      %v4713 = vadd.f32 %v4471, %v4627
      %v4714 = vadd.f32 %v4472, %v4629
      %v4715 = vadd.f32 %v4473, %v4632
      %v4716 = vadd.f32 %v4474, %v4634
      %v4717 = vadd.f32 %v4475, %v4637
      %v4718 = vadd.f32 %v4476, %v4639
      %v4719 = vadd.f32 %v4477, %v4642
      %v4720 = vadd.f32 %v4478, %v4644
      %v4721 = vadd.f32 %v4479, %v4647
      %v4722 = vadd.f32 %v4480, %v4649
      %v4723 = vadd.f32 %v4481, %v4652
      %v4724 = vadd.f32 %v4482, %v4654
      %v4725 = vadd.f32 %v4483, %v4657
      %v4726 = vadd.f32 %v4484, %v4659
      %v4727 = vadd.f32 %v4485, %v4662
      %v4728 = vadd.f32 %v4486, %v4664
      %v4729 = vld [vmem:[%s5] sm:$0x1]
      %v4731 = vperm.slane %v4729, 0
      %v4733 = vadd.f32 %v4697, %v4731
      %v4734 = vadd.f32 %v4698, %v4731
      %v4735 = vadd.f32 %v4699, %v4731
      %v4736 = vadd.f32 %v4700, %v4731
      %v4737 = vadd.f32 %v4701, %v4731
      %v4738 = vadd.f32 %v4702, %v4731
      %v4739 = vadd.f32 %v4703, %v4731
      %v4740 = vadd.f32 %v4704, %v4731
      %v4741 = vadd.f32 %v4705, %v4731
      %v4742 = vadd.f32 %v4706, %v4731
      %v4743 = vadd.f32 %v4707, %v4731
      %v4744 = vadd.f32 %v4708, %v4731
      %v4745 = vadd.f32 %v4709, %v4731
      %v4746 = vadd.f32 %v4710, %v4731
      %v4747 = vadd.f32 %v4711, %v4731
      %v4748 = vadd.f32 %v4712, %v4731
      %v4749 = vadd.f32 %v4713, %v4731
      %v4750 = vadd.f32 %v4714, %v4731
      %v4751 = vadd.f32 %v4715, %v4731
      %v4752 = vadd.f32 %v4716, %v4731
      %v4753 = vadd.f32 %v4717, %v4731
      %v4754 = vadd.f32 %v4718, %v4731
      %v4755 = vadd.f32 %v4719, %v4731
      %v4756 = vadd.f32 %v4720, %v4731
      %v4757 = vadd.f32 %v4721, %v4731
      %v4758 = vadd.f32 %v4722, %v4731
      %v4759 = vadd.f32 %v4723, %v4731
      %v4760 = vadd.f32 %v4724, %v4731
      %v4761 = vadd.f32 %v4725, %v4731
      %v4762 = vadd.f32 %v4726, %v4731
      %v4763 = vadd.f32 %v4727, %v4731
      %v4764 = vadd.f32 %v4728, %v4731
      %vm4765 = vcmask 64512
      %v4766 = vsel %vm4765, %v4733, 0.0
      %v4767 = vsel %vm4765, %v4734, 0.0
      %v4768 = vadd.f32 %v4766, %v4767
      %v4769 = vsel %vm4765, %v4735, 0.0
      %v4770 = vadd.f32 %v4768, %v4769
      %v4771 = vsel %vm4765, %v4736, 0.0
      %v4772 = vadd.f32 %v4770, %v4771
      %v4773 = vsel %vm4765, %v4737, 0.0
      %v4774 = vadd.f32 %v4772, %v4773
      %v4775 = vsel %vm4765, %v4738, 0.0
      %v4776 = vadd.f32 %v4774, %v4775
      %v4777 = vsel %vm4765, %v4739, 0.0
      %v4778 = vadd.f32 %v4776, %v4777
      %v4779 = vsel %vm4765, %v4740, 0.0
      %v4780 = vadd.f32 %v4778, %v4779
      %v4781 = vsel %vm4765, %v4741, 0.0
      %v4782 = vadd.f32 %v4780, %v4781
      %v4783 = vsel %vm4765, %v4742, 0.0
      %v4784 = vadd.f32 %v4782, %v4783
      %v4785 = vsel %vm4765, %v4743, 0.0
      %v4786 = vadd.f32 %v4784, %v4785
      %v4787 = vsel %vm4765, %v4744, 0.0
      %v4788 = vadd.f32 %v4786, %v4787
      %v4789 = vsel %vm4765, %v4745, 0.0
      %v4790 = vadd.f32 %v4788, %v4789
      %v4791 = vsel %vm4765, %v4746, 0.0
      %v4792 = vadd.f32 %v4790, %v4791
      %v4793 = vsel %vm4765, %v4747, 0.0
      %v4794 = vadd.f32 %v4792, %v4793
      %v4795 = vsel %vm4765, %v4748, 0.0
      %v4796 = vadd.f32 %v4794, %v4795
      %v4797 = vsel %vm4765, %v4749, 0.0
      %v4798 = vadd.f32 %v4796, %v4797
      %v4799 = vsel %vm4765, %v4750, 0.0
      %v4800 = vadd.f32 %v4798, %v4799
      %v4801 = vsel %vm4765, %v4751, 0.0
      %v4802 = vadd.f32 %v4800, %v4801
      %v4803 = vsel %vm4765, %v4752, 0.0
      %v4804 = vadd.f32 %v4802, %v4803
      %v4805 = vsel %vm4765, %v4753, 0.0
      %v4806 = vadd.f32 %v4804, %v4805
      %v4807 = vsel %vm4765, %v4754, 0.0
      %v4808 = vadd.f32 %v4806, %v4807
      %v4809 = vsel %vm4765, %v4755, 0.0
      %v4810 = vadd.f32 %v4808, %v4809
      %v4811 = vsel %vm4765, %v4756, 0.0
      %v4812 = vadd.f32 %v4810, %v4811
      %v4813 = vsel %vm4765, %v4757, 0.0
      %v4814 = vadd.f32 %v4812, %v4813
      %v4815 = vsel %vm4765, %v4758, 0.0
      %v4816 = vadd.f32 %v4814, %v4815
      %v4817 = vsel %vm4765, %v4759, 0.0
      %v4818 = vadd.f32 %v4816, %v4817
      %v4819 = vsel %vm4765, %v4760, 0.0
      %v4820 = vadd.f32 %v4818, %v4819
      %v4821 = vsel %vm4765, %v4761, 0.0
      %v4822 = vadd.f32 %v4820, %v4821
      %v4823 = vsel %vm4765, %v4762, 0.0
      %v4824 = vadd.f32 %v4822, %v4823
      %v4825 = vsel %vm4765, %v4763, 0.0
      %v4826 = vadd.f32 %v4824, %v4825
      %v4827 = vsel %vm4765, %v4764, 0.0
      %v4828 = vadd.f32 %v4826, %v4827
      %v4829 = vrot.slane %v4828, 4
      %v4830 = vadd.f32 %v4828, %v4829
      %v4831 = vrot.slane %v4830, 2
      %v4832 = vadd.f32 %v4830, %v4831
      %v4833 = vrot.slane %v4832, 1
      %v4834 = vadd.f32 %v4832, %v4833
      %v4835 = vmul.f32 %v4834, 0.00390625
      %v4836 = vld [vmem:[%s6] sm:$0xff]
      %v4837 = vld [vmem:[%s7] sm:$0x1]
      %v4839 = vsel %vm4765, %v4835, 0
      %4841 = vmatpush.msra.mxu0 0.0
      %4842 = vmatpush.msra.mxu0 0.0
      %4843 = vmatpush.msra.mxu0 0.0
      %4844 = vmatpush.msra.mxu0 0.0
      %4845 = vmatpush.msra.mxu0 0.0
      %4846 = vmatpush.msra.mxu0 0.0
      %4847 = vmatpush.msra.mxu0 0.0
      %4848 = vmatpush.msra.mxu0 0.0
      %4849 = vmatpush.msra.mxu0 0.0
      %4850 = vmatpush.msra.mxu0 0.0
      %4851 = vmatpush.msra.mxu0 0.0
      %4852 = vmatpush.msra.mxu0 0.0
      %4853 = vmatpush.msra.mxu0 0.0
      %4854 = vmatpush.msra.mxu0 0.0
      %4855 = vmatpush.msra.mxu0 0.0
      %v4856 = vand.u32 %v4836, 4294901760
      %4857 = vmatpush.msra.mxu0 %v4856
      %v4858 = vand.u32 %v4839, 4294901760
      %v4859 = vsub.f32 %v4839, %v4858
      %v4860 = vand.u32 %v4859, 4294901760
      %v4861 = vsub.f32 %v4859, %v4860
      %v4862 = vand.u32 %v4861, 4294901760
      %4863 = vmatmul.f32.gmra.mxu0 %v4862
      %v4864 = vpop.f32.mrf.mxu0
      %v4865 = vadd.f32 %v4837, %v4864
      %4866 = vdwg.mxu0
      %4867 = vmatpush.msra.mxu0 0.0
      %4868 = vmatpush.msra.mxu0 0.0
      %4869 = vmatpush.msra.mxu0 0.0
      %4870 = vmatpush.msra.mxu0 0.0
      %4871 = vmatpush.msra.mxu0 0.0
      %4872 = vmatpush.msra.mxu0 0.0
      %4873 = vmatpush.msra.mxu0 0.0
      %4874 = vmatpush.msra.mxu0 0.0
      %4875 = vmatpush.msra.mxu0 0.0
      %4876 = vmatpush.msra.mxu0 0.0
      %4877 = vmatpush.msra.mxu0 0.0
      %4878 = vmatpush.msra.mxu0 0.0
      %4879 = vmatpush.msra.mxu0 0.0
      %4880 = vmatpush.msra.mxu0 0.0
      %4881 = vmatpush.msra.mxu0 0.0
      %v4882 = vand.u32 %v4836, 4294901760
      %v4883 = vsub.f32 %v4836, %v4882
      %v4884 = vand.u32 %v4883, 4294901760
      %v4885 = vsub.f32 %v4883, %v4884
      %v4886 = vand.u32 %v4885, 4294901760
      %4887 = vmatpush.msra.mxu0 %v4886
      %v4888 = vand.u32 %v4839, 4294901760
      %4889 = vmatmul.f32.gmra.mxu0 %v4888
      %v4890 = vpop.f32.mrf.mxu0
      %v4891 = vadd.f32 %v4865, %v4890
      %4892 = vdwg.mxu0
      %4893 = vmatpush.msra.mxu0 0.0
      %4894 = vmatpush.msra.mxu0 0.0
      %4895 = vmatpush.msra.mxu0 0.0
      %4896 = vmatpush.msra.mxu0 0.0
      %4897 = vmatpush.msra.mxu0 0.0
      %4898 = vmatpush.msra.mxu0 0.0
      %4899 = vmatpush.msra.mxu0 0.0
      %4900 = vmatpush.msra.mxu0 0.0
      %4901 = vmatpush.msra.mxu0 0.0
      %4902 = vmatpush.msra.mxu0 0.0
      %4903 = vmatpush.msra.mxu0 0.0
      %4904 = vmatpush.msra.mxu0 0.0
      %4905 = vmatpush.msra.mxu0 0.0
      %4906 = vmatpush.msra.mxu0 0.0
      %4907 = vmatpush.msra.mxu0 0.0
      %v4908 = vand.u32 %v4836, 4294901760
      %v4909 = vsub.f32 %v4836, %v4908
      %4910 = vmatpush.msra.mxu0 %v4909
      %v4911 = vand.u32 %v4839, 4294901760
      %v4912 = vsub.f32 %v4839, %v4911
      %4913 = vmatmul.f32.gmra.mxu0 %v4912
      %v4914 = vpop.f32.mrf.mxu0
      %v4915 = vadd.f32 %v4891, %v4914
      %4916 = vdwg.mxu0
      %4917 = vmatpush.msra.mxu0 0.0
      %4918 = vmatpush.msra.mxu0 0.0
      %4919 = vmatpush.msra.mxu0 0.0
      %4920 = vmatpush.msra.mxu0 0.0
      %4921 = vmatpush.msra.mxu0 0.0
      %4922 = vmatpush.msra.mxu0 0.0
      %4923 = vmatpush.msra.mxu0 0.0
      %4924 = vmatpush.msra.mxu0 0.0
      %4925 = vmatpush.msra.mxu0 0.0
      %4926 = vmatpush.msra.mxu0 0.0
      %4927 = vmatpush.msra.mxu0 0.0
      %4928 = vmatpush.msra.mxu0 0.0
      %4929 = vmatpush.msra.mxu0 0.0
      %4930 = vmatpush.msra.mxu0 0.0
      %4931 = vmatpush.msra.mxu0 0.0
      %v4932 = vand.u32 %v4836, 4294901760
      %4933 = vmatpush.msra.mxu0 %v4932
      %v4934 = vand.u32 %v4839, 4294901760
      %v4935 = vsub.f32 %v4839, %v4934
      %v4936 = vand.u32 %v4935, 4294901760
      %4937 = vmatmul.f32.gmra.mxu0 %v4936
      %v4938 = vpop.f32.mrf.mxu0
      %v4939 = vadd.f32 %v4915, %v4938
      %4940 = vdwg.mxu0
      %4941 = vmatpush.msra.mxu0 0.0
      %4942 = vmatpush.msra.mxu0 0.0
      %4943 = vmatpush.msra.mxu0 0.0
      %4944 = vmatpush.msra.mxu0 0.0
      %4945 = vmatpush.msra.mxu0 0.0
      %4946 = vmatpush.msra.mxu0 0.0
      %4947 = vmatpush.msra.mxu0 0.0
      %4948 = vmatpush.msra.mxu0 0.0
      %4949 = vmatpush.msra.mxu0 0.0
      %4950 = vmatpush.msra.mxu0 0.0
      %4951 = vmatpush.msra.mxu0 0.0
      %4952 = vmatpush.msra.mxu0 0.0
      %4953 = vmatpush.msra.mxu0 0.0
      %4954 = vmatpush.msra.mxu0 0.0
      %4955 = vmatpush.msra.mxu0 0.0
      %v4956 = vand.u32 %v4836, 4294901760
      %v4957 = vsub.f32 %v4836, %v4956
      %v4958 = vand.u32 %v4957, 4294901760
      %4959 = vmatpush.msra.mxu0 %v4958
      %v4960 = vand.u32 %v4839, 4294901760
      %4961 = vmatmul.f32.gmra.mxu0 %v4960
      %v4962 = vpop.f32.mrf.mxu0
      %v4963 = vadd.f32 %v4939, %v4962
      %4964 = vdwg.mxu0
      %4965 = vmatpush.msra.mxu0 0.0
      %4966 = vmatpush.msra.mxu0 0.0
      %4967 = vmatpush.msra.mxu0 0.0
      %4968 = vmatpush.msra.mxu0 0.0
      %4969 = vmatpush.msra.mxu0 0.0
      %4970 = vmatpush.msra.mxu0 0.0
      %4971 = vmatpush.msra.mxu0 0.0
      %4972 = vmatpush.msra.mxu0 0.0
      %4973 = vmatpush.msra.mxu0 0.0
      %4974 = vmatpush.msra.mxu0 0.0
      %4975 = vmatpush.msra.mxu0 0.0
      %4976 = vmatpush.msra.mxu0 0.0
      %4977 = vmatpush.msra.mxu0 0.0
      %4978 = vmatpush.msra.mxu0 0.0
      %4979 = vmatpush.msra.mxu0 0.0
      %v4980 = vand.u32 %v4836, 4294901760
      %4981 = vmatpush.msra.mxu0 %v4980
      %v4982 = vand.u32 %v4839, 4294901760
      %4983 = vmatmul.f32.gmra.mxu0 %v4982
      %v4984 = vpop.f32.mrf.mxu0
      %v4985 = vadd.f32 %v4963, %v4984
      %4986 = vdwg.mxu0
      %v4987 = vmax.f32 %v4985, 0.0
      %v4988 = vld [vmem:[%s8] sm:$0x3]
      %v4989 = vld [vmem:[%s9] sm:$0x1]
      %vm4990 = vcmask 15360
      %v4992 = vsel %vm4990, %v4987, 0
      %vm4994 = vcmask 1041408
      %v4996 = vsel %vm4994, %v4988, 0
      %4998 = vmatpush.msra.mxu0 0.0
      %4999 = vmatpush.msra.mxu0 0.0
      %5000 = vmatpush.msra.mxu0 0.0
      %5001 = vmatpush.msra.mxu0 0.0
      %5002 = vmatpush.msra.mxu0 0.0
      %5003 = vmatpush.msra.mxu0 0.0
      %5004 = vmatpush.msra.mxu0 0.0
      %5005 = vmatpush.msra.mxu0 0.0
      %5006 = vmatpush.msra.mxu0 0.0
      %5007 = vmatpush.msra.mxu0 0.0
      %5008 = vmatpush.msra.mxu0 0.0
      %5009 = vmatpush.msra.mxu0 0.0
      %5010 = vmatpush.msra.mxu0 0.0
      %5011 = vmatpush.msra.mxu0 0.0
      %5012 = vmatpush.msra.mxu0 0.0
      %v5013 = vand.u32 %v4996, 4294901760
      %5014 = vmatpush.msra.mxu0 %v5013
      %v5015 = vand.u32 %v4992, 4294901760
      %v5016 = vsub.f32 %v4992, %v5015
      %v5017 = vand.u32 %v5016, 4294901760
      %v5018 = vsub.f32 %v5016, %v5017
      %v5019 = vand.u32 %v5018, 4294901760
      %5020 = vmatmul.f32.gmra.mxu0 %v5019
      %v5021 = vpop.f32.mrf.mxu0
      %v5022 = vadd.f32 %v4989, %v5021
      %5023 = vdwg.mxu0
      %5024 = vmatpush.msra.mxu0 0.0
      %5025 = vmatpush.msra.mxu0 0.0
      %5026 = vmatpush.msra.mxu0 0.0
      %5027 = vmatpush.msra.mxu0 0.0
      %5028 = vmatpush.msra.mxu0 0.0
      %5029 = vmatpush.msra.mxu0 0.0
      %5030 = vmatpush.msra.mxu0 0.0
      %5031 = vmatpush.msra.mxu0 0.0
      %5032 = vmatpush.msra.mxu0 0.0
      %5033 = vmatpush.msra.mxu0 0.0
      %5034 = vmatpush.msra.mxu0 0.0
      %5035 = vmatpush.msra.mxu0 0.0
      %5036 = vmatpush.msra.mxu0 0.0
      %5037 = vmatpush.msra.mxu0 0.0
      %5038 = vmatpush.msra.mxu0 0.0
      %v5039 = vand.u32 %v4996, 4294901760
      %v5040 = vsub.f32 %v4996, %v5039
      %v5041 = vand.u32 %v5040, 4294901760
      %v5042 = vsub.f32 %v5040, %v5041
      %v5043 = vand.u32 %v5042, 4294901760
      %5044 = vmatpush.msra.mxu0 %v5043
      %v5045 = vand.u32 %v4992, 4294901760
      %5046 = vmatmul.f32.gmra.mxu0 %v5045
      %v5047 = vpop.f32.mrf.mxu0
      %v5048 = vadd.f32 %v5022, %v5047
      %5049 = vdwg.mxu0
      %5050 = vmatpush.msra.mxu0 0.0
      %5051 = vmatpush.msra.mxu0 0.0
      %5052 = vmatpush.msra.mxu0 0.0
      %5053 = vmatpush.msra.mxu0 0.0
      %5054 = vmatpush.msra.mxu0 0.0
      %5055 = vmatpush.msra.mxu0 0.0
      %5056 = vmatpush.msra.mxu0 0.0
      %5057 = vmatpush.msra.mxu0 0.0
      %5058 = vmatpush.msra.mxu0 0.0
      %5059 = vmatpush.msra.mxu0 0.0
      %5060 = vmatpush.msra.mxu0 0.0
      %5061 = vmatpush.msra.mxu0 0.0
      %5062 = vmatpush.msra.mxu0 0.0
      %5063 = vmatpush.msra.mxu0 0.0
      %5064 = vmatpush.msra.mxu0 0.0
      %v5065 = vand.u32 %v4996, 4294901760
      %v5066 = vsub.f32 %v4996, %v5065
      %5067 = vmatpush.msra.mxu0 %v5066
      %v5068 = vand.u32 %v4992, 4294901760
      %v5069 = vsub.f32 %v4992, %v5068
      %5070 = vmatmul.f32.gmra.mxu0 %v5069
      %v5071 = vpop.f32.mrf.mxu0
      %v5072 = vadd.f32 %v5048, %v5071
      %5073 = vdwg.mxu0
      %5074 = vmatpush.msra.mxu0 0.0
      %5075 = vmatpush.msra.mxu0 0.0
      %5076 = vmatpush.msra.mxu0 0.0
      %5077 = vmatpush.msra.mxu0 0.0
      %5078 = vmatpush.msra.mxu0 0.0
      %5079 = vmatpush.msra.mxu0 0.0
      %5080 = vmatpush.msra.mxu0 0.0
      %5081 = vmatpush.msra.mxu0 0.0
      %5082 = vmatpush.msra.mxu0 0.0
      %5083 = vmatpush.msra.mxu0 0.0
      %5084 = vmatpush.msra.mxu0 0.0
      %5085 = vmatpush.msra.mxu0 0.0
      %5086 = vmatpush.msra.mxu0 0.0
      %5087 = vmatpush.msra.mxu0 0.0
      %5088 = vmatpush.msra.mxu0 0.0
      %v5089 = vand.u32 %v4996, 4294901760
      %5090 = vmatpush.msra.mxu0 %v5089
      %v5091 = vand.u32 %v4992, 4294901760
      %v5092 = vsub.f32 %v4992, %v5091
      %v5093 = vand.u32 %v5092, 4294901760
      %5094 = vmatmul.f32.gmra.mxu0 %v5093
      %v5095 = vpop.f32.mrf.mxu0
      %v5096 = vadd.f32 %v5072, %v5095
      %5097 = vdwg.mxu0
      %5098 = vmatpush.msra.mxu0 0.0
      %5099 = vmatpush.msra.mxu0 0.0
      %5100 = vmatpush.msra.mxu0 0.0
      %5101 = vmatpush.msra.mxu0 0.0
      %5102 = vmatpush.msra.mxu0 0.0
      %5103 = vmatpush.msra.mxu0 0.0
      %5104 = vmatpush.msra.mxu0 0.0
      %5105 = vmatpush.msra.mxu0 0.0
      %5106 = vmatpush.msra.mxu0 0.0
      %5107 = vmatpush.msra.mxu0 0.0
      %5108 = vmatpush.msra.mxu0 0.0
      %5109 = vmatpush.msra.mxu0 0.0
      %5110 = vmatpush.msra.mxu0 0.0
      %5111 = vmatpush.msra.mxu0 0.0
      %5112 = vmatpush.msra.mxu0 0.0
      %v5113 = vand.u32 %v4996, 4294901760
      %v5114 = vsub.f32 %v4996, %v5113
      %v5115 = vand.u32 %v5114, 4294901760
      %5116 = vmatpush.msra.mxu0 %v5115
      %v5117 = vand.u32 %v4992, 4294901760
      %5118 = vmatmul.f32.gmra.mxu0 %v5117
      %v5119 = vpop.f32.mrf.mxu0
      %v5120 = vadd.f32 %v5096, %v5119
      %5121 = vdwg.mxu0
      %5122 = vmatpush.msra.mxu0 0.0
      %5123 = vmatpush.msra.mxu0 0.0
      %5124 = vmatpush.msra.mxu0 0.0
      %5125 = vmatpush.msra.mxu0 0.0
      %5126 = vmatpush.msra.mxu0 0.0
      %5127 = vmatpush.msra.mxu0 0.0
      %5128 = vmatpush.msra.mxu0 0.0
      %5129 = vmatpush.msra.mxu0 0.0
      %5130 = vmatpush.msra.mxu0 0.0
      %5131 = vmatpush.msra.mxu0 0.0
      %5132 = vmatpush.msra.mxu0 0.0
      %5133 = vmatpush.msra.mxu0 0.0
      %5134 = vmatpush.msra.mxu0 0.0
      %5135 = vmatpush.msra.mxu0 0.0
      %5136 = vmatpush.msra.mxu0 0.0
      %v5137 = vand.u32 %v4996, 4294901760
      %5138 = vmatpush.msra.mxu0 %v5137
      %v5139 = vand.u32 %v4992, 4294901760
      %5140 = vmatmul.f32.gmra.mxu0 %v5139
      %v5141 = vpop.f32.mrf.mxu0
      %v5142 = vadd.f32 %v5120, %v5141
      %5143 = vdwg.mxu0
      %v5144 = vadd.f32 %v5142, 3.0
      %v5145 = vmax.f32 %v5144, 0.0
      %v5146 = vmin.f32 %v5145, 6.0
      %v5147 = vmul.f32 %v5146, 0.16666667
      %v5148 = vperm.slane %v5147, 0
      %v5149 = vmul.f32 %v4733, %v5148
      %v5150 = vmul.f32 %v4734, %v5148
      %v5151 = vmul.f32 %v4735, %v5148
      %v5152 = vmul.f32 %v4736, %v5148
      %v5153 = vmul.f32 %v4737, %v5148
      %v5154 = vmul.f32 %v4738, %v5148
      %v5155 = vmul.f32 %v4739, %v5148
      %v5156 = vmul.f32 %v4740, %v5148
      %v5157 = vmul.f32 %v4741, %v5148
      %v5158 = vmul.f32 %v4742, %v5148
      %v5159 = vmul.f32 %v4743, %v5148
      %v5160 = vmul.f32 %v4744, %v5148
      %v5161 = vmul.f32 %v4745, %v5148
      %v5162 = vmul.f32 %v4746, %v5148
      %v5163 = vmul.f32 %v4747, %v5148
      %v5164 = vmul.f32 %v4748, %v5148
      %v5165 = vmul.f32 %v4749, %v5148
      %v5166 = vmul.f32 %v4750, %v5148
      %v5167 = vmul.f32 %v4751, %v5148
      %v5168 = vmul.f32 %v4752, %v5148
      %v5169 = vmul.f32 %v4753, %v5148
      %v5170 = vmul.f32 %v4754, %v5148
      %v5171 = vmul.f32 %v4755, %v5148
      %v5172 = vmul.f32 %v4756, %v5148
      %v5173 = vmul.f32 %v4757, %v5148
      %v5174 = vmul.f32 %v4758, %v5148
      %v5175 = vmul.f32 %v4759, %v5148
      %v5176 = vmul.f32 %v4760, %v5148
      %v5177 = vmul.f32 %v4761, %v5148
      %v5178 = vmul.f32 %v4762, %v5148
      %v5179 = vmul.f32 %v4763, %v5148
      %v5180 = vmul.f32 %v4764, %v5148
      %v5181 = vld [vmem:[%s10] sm:$0xff]
      %v5182 = vld [vmem:[%s11] sm:$0x1]
      %v5184 = vperm.slane %v5182, 0
      %v5187 = vsel %vm4765, %v5149, 0
      %v5190 = vsel %vm4765, %v5150, 0
      %v5193 = vsel %vm4765, %v5151, 0
      %v5196 = vsel %vm4765, %v5152, 0
      %v5199 = vsel %vm4765, %v5153, 0
      %v5202 = vsel %vm4765, %v5154, 0
      %v5205 = vsel %vm4765, %v5155, 0
      %v5208 = vsel %vm4765, %v5156, 0
      %v5211 = vsel %vm4765, %v5157, 0
      %v5214 = vsel %vm4765, %v5158, 0
      %v5217 = vsel %vm4765, %v5159, 0
      %v5220 = vsel %vm4765, %v5160, 0
      %v5223 = vsel %vm4765, %v5161, 0
      %v5226 = vsel %vm4765, %v5162, 0
      %v5229 = vsel %vm4765, %v5163, 0
      %v5232 = vsel %vm4765, %v5164, 0
      %v5235 = vsel %vm4765, %v5165, 0
      %v5238 = vsel %vm4765, %v5166, 0
      %v5241 = vsel %vm4765, %v5167, 0
      %v5244 = vsel %vm4765, %v5168, 0
      %v5247 = vsel %vm4765, %v5169, 0
      %v5250 = vsel %vm4765, %v5170, 0
      %v5253 = vsel %vm4765, %v5171, 0
      %v5256 = vsel %vm4765, %v5172, 0
      %v5259 = vsel %vm4765, %v5173, 0
      %v5262 = vsel %vm4765, %v5174, 0
      %v5265 = vsel %vm4765, %v5175, 0
      %v5268 = vsel %vm4765, %v5176, 0
      %v5271 = vsel %vm4765, %v5177, 0
      %v5274 = vsel %vm4765, %v5178, 0
      %v5277 = vsel %vm4765, %v5179, 0
      %v5280 = vsel %vm4765, %v5180, 0
      %5282 = vmatpush.msra.mxu0 0.0
      %5283 = vmatpush.msra.mxu0 0.0
      %5284 = vmatpush.msra.mxu0 0.0
      %5285 = vmatpush.msra.mxu0 0.0
      %5286 = vmatpush.msra.mxu0 0.0
      %5287 = vmatpush.msra.mxu0 0.0
      %5288 = vmatpush.msra.mxu0 0.0
      %5289 = vmatpush.msra.mxu0 0.0
      %5290 = vmatpush.msra.mxu0 0.0
      %5291 = vmatpush.msra.mxu0 0.0
      %5292 = vmatpush.msra.mxu0 0.0
      %5293 = vmatpush.msra.mxu0 0.0
      %5294 = vmatpush.msra.mxu0 0.0
      %5295 = vmatpush.msra.mxu0 0.0
      %5296 = vmatpush.msra.mxu0 0.0
      %v5297 = vand.u32 %v5181, 4294901760
      %5298 = vmatpush.msra.mxu0 %v5297
      %v5299 = vand.u32 %v5187, 4294901760
      %v5300 = vsub.f32 %v5187, %v5299
      %v5301 = vand.u32 %v5300, 4294901760
      %v5302 = vsub.f32 %v5300, %v5301
      %v5303 = vand.u32 %v5302, 4294901760
      %5304 = vmatmul.f32.gmra.mxu0 %v5303
      %v5305 = vpop.f32.mrf.mxu0
      %v5306 = vadd.f32 %v5184, %v5305
      %v5307 = vand.u32 %v5190, 4294901760
      %v5308 = vsub.f32 %v5190, %v5307
      %v5309 = vand.u32 %v5308, 4294901760
      %v5310 = vsub.f32 %v5308, %v5309
      %v5311 = vand.u32 %v5310, 4294901760
      %5312 = vmatmul.f32.gmra.mxu0 %v5311
      %v5313 = vpop.f32.mrf.mxu0
      %v5314 = vadd.f32 %v5184, %v5313
      %v5315 = vand.u32 %v5193, 4294901760
      %v5316 = vsub.f32 %v5193, %v5315
      %v5317 = vand.u32 %v5316, 4294901760
      %v5318 = vsub.f32 %v5316, %v5317
      %v5319 = vand.u32 %v5318, 4294901760
      %5320 = vmatmul.f32.gmra.mxu0 %v5319
      %v5321 = vpop.f32.mrf.mxu0
      %v5322 = vadd.f32 %v5184, %v5321
      %v5323 = vand.u32 %v5196, 4294901760
      %v5324 = vsub.f32 %v5196, %v5323
      %v5325 = vand.u32 %v5324, 4294901760
      %v5326 = vsub.f32 %v5324, %v5325
      %v5327 = vand.u32 %v5326, 4294901760
      %5328 = vmatmul.f32.gmra.mxu0 %v5327
      %v5329 = vpop.f32.mrf.mxu0
      %v5330 = vadd.f32 %v5184, %v5329
      %v5331 = vand.u32 %v5199, 4294901760
      %v5332 = vsub.f32 %v5199, %v5331
      %v5333 = vand.u32 %v5332, 4294901760
      %v5334 = vsub.f32 %v5332, %v5333
      %v5335 = vand.u32 %v5334, 4294901760
      %5336 = vmatmul.f32.gmra.mxu0 %v5335
      %v5337 = vpop.f32.mrf.mxu0
      %v5338 = vadd.f32 %v5184, %v5337
      %v5339 = vand.u32 %v5202, 4294901760
      %v5340 = vsub.f32 %v5202, %v5339
      %v5341 = vand.u32 %v5340, 4294901760
      %v5342 = vsub.f32 %v5340, %v5341
      %v5343 = vand.u32 %v5342, 4294901760
      %5344 = vmatmul.f32.gmra.mxu0 %v5343
      %v5345 = vpop.f32.mrf.mxu0
      %v5346 = vadd.f32 %v5184, %v5345
      %v5347 = vand.u32 %v5205, 4294901760
      %v5348 = vsub.f32 %v5205, %v5347
      %v5349 = vand.u32 %v5348, 4294901760
      %v5350 = vsub.f32 %v5348, %v5349
      %v5351 = vand.u32 %v5350, 4294901760
      %5352 = vmatmul.f32.gmra.mxu0 %v5351
      %v5353 = vpop.f32.mrf.mxu0
      %v5354 = vadd.f32 %v5184, %v5353
      %v5355 = vand.u32 %v5208, 4294901760
      %v5356 = vsub.f32 %v5208, %v5355
      %v5357 = vand.u32 %v5356, 4294901760
      %v5358 = vsub.f32 %v5356, %v5357
      %v5359 = vand.u32 %v5358, 4294901760
      %5360 = vmatmul.f32.gmra.mxu0 %v5359
      %v5361 = vpop.f32.mrf.mxu0
      %v5362 = vadd.f32 %v5184, %v5361
      %v5363 = vand.u32 %v5211, 4294901760
      %v5364 = vsub.f32 %v5211, %v5363
      %v5365 = vand.u32 %v5364, 4294901760
      %v5366 = vsub.f32 %v5364, %v5365
      %v5367 = vand.u32 %v5366, 4294901760
      %5368 = vmatmul.f32.gmra.mxu0 %v5367
      %v5369 = vpop.f32.mrf.mxu0
      %v5370 = vadd.f32 %v5184, %v5369
      %v5371 = vand.u32 %v5214, 4294901760
      %v5372 = vsub.f32 %v5214, %v5371
      %v5373 = vand.u32 %v5372, 4294901760
      %v5374 = vsub.f32 %v5372, %v5373
      %v5375 = vand.u32 %v5374, 4294901760
      %5376 = vmatmul.f32.gmra.mxu0 %v5375
      %v5377 = vpop.f32.mrf.mxu0
      %v5378 = vadd.f32 %v5184, %v5377
      %v5379 = vand.u32 %v5217, 4294901760
      %v5380 = vsub.f32 %v5217, %v5379
      %v5381 = vand.u32 %v5380, 4294901760
      %v5382 = vsub.f32 %v5380, %v5381
      %v5383 = vand.u32 %v5382, 4294901760
      %5384 = vmatmul.f32.gmra.mxu0 %v5383
      %v5385 = vpop.f32.mrf.mxu0
      %v5386 = vadd.f32 %v5184, %v5385
      %v5387 = vand.u32 %v5220, 4294901760
      %v5388 = vsub.f32 %v5220, %v5387
      %v5389 = vand.u32 %v5388, 4294901760
      %v5390 = vsub.f32 %v5388, %v5389
      %v5391 = vand.u32 %v5390, 4294901760
      %5392 = vmatmul.f32.gmra.mxu0 %v5391
      %v5393 = vpop.f32.mrf.mxu0
      %v5394 = vadd.f32 %v5184, %v5393
      %v5395 = vand.u32 %v5223, 4294901760
      %v5396 = vsub.f32 %v5223, %v5395
      %v5397 = vand.u32 %v5396, 4294901760
      %v5398 = vsub.f32 %v5396, %v5397
      %v5399 = vand.u32 %v5398, 4294901760
      %5400 = vmatmul.f32.gmra.mxu0 %v5399
      %v5401 = vpop.f32.mrf.mxu0
      %v5402 = vadd.f32 %v5184, %v5401
      %v5403 = vand.u32 %v5226, 4294901760
      %v5404 = vsub.f32 %v5226, %v5403
      %v5405 = vand.u32 %v5404, 4294901760
      %v5406 = vsub.f32 %v5404, %v5405
      %v5407 = vand.u32 %v5406, 4294901760
      %5408 = vmatmul.f32.gmra.mxu0 %v5407
      %v5409 = vpop.f32.mrf.mxu0
      %v5410 = vadd.f32 %v5184, %v5409
      %v5411 = vand.u32 %v5229, 4294901760
      %v5412 = vsub.f32 %v5229, %v5411
      %v5413 = vand.u32 %v5412, 4294901760
      %v5414 = vsub.f32 %v5412, %v5413
      %v5415 = vand.u32 %v5414, 4294901760
      %5416 = vmatmul.f32.gmra.mxu0 %v5415
      %v5417 = vpop.f32.mrf.mxu0
      %v5418 = vadd.f32 %v5184, %v5417
      %v5419 = vand.u32 %v5232, 4294901760
      %v5420 = vsub.f32 %v5232, %v5419
      %v5421 = vand.u32 %v5420, 4294901760
      %v5422 = vsub.f32 %v5420, %v5421
      %v5423 = vand.u32 %v5422, 4294901760
      %5424 = vmatmul.f32.gmra.mxu0 %v5423
      %v5425 = vpop.f32.mrf.mxu0
      %v5426 = vadd.f32 %v5184, %v5425
      %v5427 = vand.u32 %v5235, 4294901760
      %v5428 = vsub.f32 %v5235, %v5427
      %v5429 = vand.u32 %v5428, 4294901760
      %v5430 = vsub.f32 %v5428, %v5429
      %v5431 = vand.u32 %v5430, 4294901760
      %5432 = vmatmul.f32.gmra.mxu0 %v5431
      %v5433 = vpop.f32.mrf.mxu0
      %v5434 = vadd.f32 %v5184, %v5433
      %v5435 = vand.u32 %v5238, 4294901760
      %v5436 = vsub.f32 %v5238, %v5435
      %v5437 = vand.u32 %v5436, 4294901760
      %v5438 = vsub.f32 %v5436, %v5437
      %v5439 = vand.u32 %v5438, 4294901760
      %5440 = vmatmul.f32.gmra.mxu0 %v5439
      %v5441 = vpop.f32.mrf.mxu0
      %v5442 = vadd.f32 %v5184, %v5441
      %v5443 = vand.u32 %v5241, 4294901760
      %v5444 = vsub.f32 %v5241, %v5443
      %v5445 = vand.u32 %v5444, 4294901760
      %v5446 = vsub.f32 %v5444, %v5445
      %v5447 = vand.u32 %v5446, 4294901760
      %5448 = vmatmul.f32.gmra.mxu0 %v5447
      %v5449 = vpop.f32.mrf.mxu0
      %v5450 = vadd.f32 %v5184, %v5449
      %v5451 = vand.u32 %v5244, 4294901760
      %v5452 = vsub.f32 %v5244, %v5451
      %v5453 = vand.u32 %v5452, 4294901760
      %v5454 = vsub.f32 %v5452, %v5453
      %v5455 = vand.u32 %v5454, 4294901760
      %5456 = vmatmul.f32.gmra.mxu0 %v5455
      %v5457 = vpop.f32.mrf.mxu0
      %v5458 = vadd.f32 %v5184, %v5457
      %v5459 = vand.u32 %v5247, 4294901760
      %v5460 = vsub.f32 %v5247, %v5459
      %v5461 = vand.u32 %v5460, 4294901760
      %v5462 = vsub.f32 %v5460, %v5461
      %v5463 = vand.u32 %v5462, 4294901760
      %5464 = vmatmul.f32.gmra.mxu0 %v5463
      %v5465 = vpop.f32.mrf.mxu0
      %v5466 = vadd.f32 %v5184, %v5465
      %v5467 = vand.u32 %v5250, 4294901760
      %v5468 = vsub.f32 %v5250, %v5467
      %v5469 = vand.u32 %v5468, 4294901760
      %v5470 = vsub.f32 %v5468, %v5469
      %v5471 = vand.u32 %v5470, 4294901760
      %5472 = vmatmul.f32.gmra.mxu0 %v5471
      %v5473 = vpop.f32.mrf.mxu0
      %v5474 = vadd.f32 %v5184, %v5473
      %v5475 = vand.u32 %v5253, 4294901760
      %v5476 = vsub.f32 %v5253, %v5475
      %v5477 = vand.u32 %v5476, 4294901760
      %v5478 = vsub.f32 %v5476, %v5477
      %v5479 = vand.u32 %v5478, 4294901760
      %5480 = vmatmul.f32.gmra.mxu0 %v5479
      %v5481 = vpop.f32.mrf.mxu0
      %v5482 = vadd.f32 %v5184, %v5481
      %v5483 = vand.u32 %v5256, 4294901760
      %v5484 = vsub.f32 %v5256, %v5483
      %v5485 = vand.u32 %v5484, 4294901760
      %v5486 = vsub.f32 %v5484, %v5485
      %v5487 = vand.u32 %v5486, 4294901760
      %5488 = vmatmul.f32.gmra.mxu0 %v5487
      %v5489 = vpop.f32.mrf.mxu0
      %v5490 = vadd.f32 %v5184, %v5489
      %v5491 = vand.u32 %v5259, 4294901760
      %v5492 = vsub.f32 %v5259, %v5491
      %v5493 = vand.u32 %v5492, 4294901760
      %v5494 = vsub.f32 %v5492, %v5493
      %v5495 = vand.u32 %v5494, 4294901760
      %5496 = vmatmul.f32.gmra.mxu0 %v5495
      %v5497 = vpop.f32.mrf.mxu0
      %v5498 = vadd.f32 %v5184, %v5497
      %v5499 = vand.u32 %v5262, 4294901760
      %v5500 = vsub.f32 %v5262, %v5499
      %v5501 = vand.u32 %v5500, 4294901760
      %v5502 = vsub.f32 %v5500, %v5501
      %v5503 = vand.u32 %v5502, 4294901760
      %5504 = vmatmul.f32.gmra.mxu0 %v5503
      %v5505 = vpop.f32.mrf.mxu0
      %v5506 = vadd.f32 %v5184, %v5505
      %v5507 = vand.u32 %v5265, 4294901760
      %v5508 = vsub.f32 %v5265, %v5507
      %v5509 = vand.u32 %v5508, 4294901760
      %v5510 = vsub.f32 %v5508, %v5509
      %v5511 = vand.u32 %v5510, 4294901760
      %5512 = vmatmul.f32.gmra.mxu0 %v5511
      %v5513 = vpop.f32.mrf.mxu0
      %v5514 = vadd.f32 %v5184, %v5513
      %v5515 = vand.u32 %v5268, 4294901760
      %v5516 = vsub.f32 %v5268, %v5515
      %v5517 = vand.u32 %v5516, 4294901760
      %v5518 = vsub.f32 %v5516, %v5517
      %v5519 = vand.u32 %v5518, 4294901760
      %5520 = vmatmul.f32.gmra.mxu0 %v5519
      %v5521 = vpop.f32.mrf.mxu0
      %v5522 = vadd.f32 %v5184, %v5521
      %v5523 = vand.u32 %v5271, 4294901760
      %v5524 = vsub.f32 %v5271, %v5523
      %v5525 = vand.u32 %v5524, 4294901760
      %v5526 = vsub.f32 %v5524, %v5525
      %v5527 = vand.u32 %v5526, 4294901760
      %5528 = vmatmul.f32.gmra.mxu0 %v5527
      %v5529 = vpop.f32.mrf.mxu0
      %v5530 = vadd.f32 %v5184, %v5529
      %v5531 = vand.u32 %v5274, 4294901760
      %v5532 = vsub.f32 %v5274, %v5531
      %v5533 = vand.u32 %v5532, 4294901760
      %v5534 = vsub.f32 %v5532, %v5533
      %v5535 = vand.u32 %v5534, 4294901760
      %5536 = vmatmul.f32.gmra.mxu0 %v5535
      %v5537 = vpop.f32.mrf.mxu0
      %v5538 = vadd.f32 %v5184, %v5537
      %v5539 = vand.u32 %v5277, 4294901760
      %v5540 = vsub.f32 %v5277, %v5539
      %v5541 = vand.u32 %v5540, 4294901760
      %v5542 = vsub.f32 %v5540, %v5541
      %v5543 = vand.u32 %v5542, 4294901760
      %5544 = vmatmul.f32.gmra.mxu0 %v5543
      %v5545 = vpop.f32.mrf.mxu0
      %v5546 = vadd.f32 %v5184, %v5545
      %v5547 = vand.u32 %v5280, 4294901760
      %v5548 = vsub.f32 %v5280, %v5547
      %v5549 = vand.u32 %v5548, 4294901760
      %v5550 = vsub.f32 %v5548, %v5549
      %v5551 = vand.u32 %v5550, 4294901760
      %5552 = vmatmul.f32.gmra.mxu0 %v5551
      %v5553 = vpop.f32.mrf.mxu0
      %v5554 = vadd.f32 %v5184, %v5553
      %5555 = vdwg.mxu0
      %5556 = vmatpush.msra.mxu0 0.0
      %5557 = vmatpush.msra.mxu0 0.0
      %5558 = vmatpush.msra.mxu0 0.0
      %5559 = vmatpush.msra.mxu0 0.0
      %5560 = vmatpush.msra.mxu0 0.0
      %5561 = vmatpush.msra.mxu0 0.0
      %5562 = vmatpush.msra.mxu0 0.0
      %5563 = vmatpush.msra.mxu0 0.0
      %5564 = vmatpush.msra.mxu0 0.0
      %5565 = vmatpush.msra.mxu0 0.0
      %5566 = vmatpush.msra.mxu0 0.0
      %5567 = vmatpush.msra.mxu0 0.0
      %5568 = vmatpush.msra.mxu0 0.0
      %5569 = vmatpush.msra.mxu0 0.0
      %5570 = vmatpush.msra.mxu0 0.0
      %v5571 = vand.u32 %v5181, 4294901760
      %v5572 = vsub.f32 %v5181, %v5571
      %v5573 = vand.u32 %v5572, 4294901760
      %v5574 = vsub.f32 %v5572, %v5573
      %v5575 = vand.u32 %v5574, 4294901760
      %5576 = vmatpush.msra.mxu0 %v5575
      %v5577 = vand.u32 %v5187, 4294901760
      %5578 = vmatmul.f32.gmra.mxu0 %v5577
      %v5579 = vpop.f32.mrf.mxu0
      %v5580 = vadd.f32 %v5306, %v5579
      %v5581 = vand.u32 %v5190, 4294901760
      %5582 = vmatmul.f32.gmra.mxu0 %v5581
      %v5583 = vpop.f32.mrf.mxu0
      %v5584 = vadd.f32 %v5314, %v5583
      %v5585 = vand.u32 %v5193, 4294901760
      %5586 = vmatmul.f32.gmra.mxu0 %v5585
      %v5587 = vpop.f32.mrf.mxu0
      %v5588 = vadd.f32 %v5322, %v5587
      %v5589 = vand.u32 %v5196, 4294901760
      %5590 = vmatmul.f32.gmra.mxu0 %v5589
      %v5591 = vpop.f32.mrf.mxu0
      %v5592 = vadd.f32 %v5330, %v5591
      %v5593 = vand.u32 %v5199, 4294901760
      %5594 = vmatmul.f32.gmra.mxu0 %v5593
      %v5595 = vpop.f32.mrf.mxu0
      %v5596 = vadd.f32 %v5338, %v5595
      %v5597 = vand.u32 %v5202, 4294901760
      %5598 = vmatmul.f32.gmra.mxu0 %v5597
      %v5599 = vpop.f32.mrf.mxu0
      %v5600 = vadd.f32 %v5346, %v5599
      %v5601 = vand.u32 %v5205, 4294901760
      %5602 = vmatmul.f32.gmra.mxu0 %v5601
      %v5603 = vpop.f32.mrf.mxu0
      %v5604 = vadd.f32 %v5354, %v5603
      %v5605 = vand.u32 %v5208, 4294901760
      %5606 = vmatmul.f32.gmra.mxu0 %v5605
      %v5607 = vpop.f32.mrf.mxu0
      %v5608 = vadd.f32 %v5362, %v5607
      %v5609 = vand.u32 %v5211, 4294901760
      %5610 = vmatmul.f32.gmra.mxu0 %v5609
      %v5611 = vpop.f32.mrf.mxu0
      %v5612 = vadd.f32 %v5370, %v5611
      %v5613 = vand.u32 %v5214, 4294901760
      %5614 = vmatmul.f32.gmra.mxu0 %v5613
      %v5615 = vpop.f32.mrf.mxu0
      %v5616 = vadd.f32 %v5378, %v5615
      %v5617 = vand.u32 %v5217, 4294901760
      %5618 = vmatmul.f32.gmra.mxu0 %v5617
      %v5619 = vpop.f32.mrf.mxu0
      %v5620 = vadd.f32 %v5386, %v5619
      %v5621 = vand.u32 %v5220, 4294901760
      %5622 = vmatmul.f32.gmra.mxu0 %v5621
      %v5623 = vpop.f32.mrf.mxu0
      %v5624 = vadd.f32 %v5394, %v5623
      %v5625 = vand.u32 %v5223, 4294901760
      %5626 = vmatmul.f32.gmra.mxu0 %v5625
      %v5627 = vpop.f32.mrf.mxu0
      %v5628 = vadd.f32 %v5402, %v5627
      %v5629 = vand.u32 %v5226, 4294901760
      %5630 = vmatmul.f32.gmra.mxu0 %v5629
      %v5631 = vpop.f32.mrf.mxu0
      %v5632 = vadd.f32 %v5410, %v5631
      %v5633 = vand.u32 %v5229, 4294901760
      %5634 = vmatmul.f32.gmra.mxu0 %v5633
      %v5635 = vpop.f32.mrf.mxu0
      %v5636 = vadd.f32 %v5418, %v5635
      %v5637 = vand.u32 %v5232, 4294901760
      %5638 = vmatmul.f32.gmra.mxu0 %v5637
      %v5639 = vpop.f32.mrf.mxu0
      %v5640 = vadd.f32 %v5426, %v5639
      %v5641 = vand.u32 %v5235, 4294901760
      %5642 = vmatmul.f32.gmra.mxu0 %v5641
      %v5643 = vpop.f32.mrf.mxu0
      %v5644 = vadd.f32 %v5434, %v5643
      %v5645 = vand.u32 %v5238, 4294901760
      %5646 = vmatmul.f32.gmra.mxu0 %v5645
      %v5647 = vpop.f32.mrf.mxu0
      %v5648 = vadd.f32 %v5442, %v5647
      %v5649 = vand.u32 %v5241, 4294901760
      %5650 = vmatmul.f32.gmra.mxu0 %v5649
      %v5651 = vpop.f32.mrf.mxu0
      %v5652 = vadd.f32 %v5450, %v5651
      %v5653 = vand.u32 %v5244, 4294901760
      %5654 = vmatmul.f32.gmra.mxu0 %v5653
      %v5655 = vpop.f32.mrf.mxu0
      %v5656 = vadd.f32 %v5458, %v5655
      %v5657 = vand.u32 %v5247, 4294901760
      %5658 = vmatmul.f32.gmra.mxu0 %v5657
      %v5659 = vpop.f32.mrf.mxu0
      %v5660 = vadd.f32 %v5466, %v5659
      %v5661 = vand.u32 %v5250, 4294901760
      %5662 = vmatmul.f32.gmra.mxu0 %v5661
      %v5663 = vpop.f32.mrf.mxu0
      %v5664 = vadd.f32 %v5474, %v5663
      %v5665 = vand.u32 %v5253, 4294901760
      %5666 = vmatmul.f32.gmra.mxu0 %v5665
      %v5667 = vpop.f32.mrf.mxu0
      %v5668 = vadd.f32 %v5482, %v5667
      %v5669 = vand.u32 %v5256, 4294901760
      %5670 = vmatmul.f32.gmra.mxu0 %v5669
      %v5671 = vpop.f32.mrf.mxu0
      %v5672 = vadd.f32 %v5490, %v5671
      %v5673 = vand.u32 %v5259, 4294901760
      %5674 = vmatmul.f32.gmra.mxu0 %v5673
      %v5675 = vpop.f32.mrf.mxu0
      %v5676 = vadd.f32 %v5498, %v5675
      %v5677 = vand.u32 %v5262, 4294901760
      %5678 = vmatmul.f32.gmra.mxu0 %v5677
      %v5679 = vpop.f32.mrf.mxu0
      %v5680 = vadd.f32 %v5506, %v5679
      %v5681 = vand.u32 %v5265, 4294901760
      %5682 = vmatmul.f32.gmra.mxu0 %v5681
      %v5683 = vpop.f32.mrf.mxu0
      %v5684 = vadd.f32 %v5514, %v5683
      %v5685 = vand.u32 %v5268, 4294901760
      %5686 = vmatmul.f32.gmra.mxu0 %v5685
      %v5687 = vpop.f32.mrf.mxu0
      %v5688 = vadd.f32 %v5522, %v5687
      %v5689 = vand.u32 %v5271, 4294901760
      %5690 = vmatmul.f32.gmra.mxu0 %v5689
      %v5691 = vpop.f32.mrf.mxu0
      %v5692 = vadd.f32 %v5530, %v5691
      %v5693 = vand.u32 %v5274, 4294901760
      %5694 = vmatmul.f32.gmra.mxu0 %v5693
      %v5695 = vpop.f32.mrf.mxu0
      %v5696 = vadd.f32 %v5538, %v5695
      %v5697 = vand.u32 %v5277, 4294901760
      %5698 = vmatmul.f32.gmra.mxu0 %v5697
      %v5699 = vpop.f32.mrf.mxu0
      %v5700 = vadd.f32 %v5546, %v5699
      %v5701 = vand.u32 %v5280, 4294901760
      %5702 = vmatmul.f32.gmra.mxu0 %v5701
      %v5703 = vpop.f32.mrf.mxu0
      %v5704 = vadd.f32 %v5554, %v5703
      %5705 = vdwg.mxu0
      %5706 = vmatpush.msra.mxu0 0.0
      %5707 = vmatpush.msra.mxu0 0.0
      %5708 = vmatpush.msra.mxu0 0.0
      %5709 = vmatpush.msra.mxu0 0.0
      %5710 = vmatpush.msra.mxu0 0.0
      %5711 = vmatpush.msra.mxu0 0.0
      %5712 = vmatpush.msra.mxu0 0.0
      %5713 = vmatpush.msra.mxu0 0.0
      %5714 = vmatpush.msra.mxu0 0.0
      %5715 = vmatpush.msra.mxu0 0.0
      %5716 = vmatpush.msra.mxu0 0.0
      %5717 = vmatpush.msra.mxu0 0.0
      %5718 = vmatpush.msra.mxu0 0.0
      %5719 = vmatpush.msra.mxu0 0.0
      %5720 = vmatpush.msra.mxu0 0.0
      %v5721 = vand.u32 %v5181, 4294901760
      %v5722 = vsub.f32 %v5181, %v5721
      %5723 = vmatpush.msra.mxu0 %v5722
      %v5724 = vand.u32 %v5187, 4294901760
      %v5725 = vsub.f32 %v5187, %v5724
      %5726 = vmatmul.f32.gmra.mxu0 %v5725
      %v5727 = vpop.f32.mrf.mxu0
      %v5728 = vadd.f32 %v5580, %v5727
      %v5729 = vand.u32 %v5190, 4294901760
      %v5730 = vsub.f32 %v5190, %v5729
      %5731 = vmatmul.f32.gmra.mxu0 %v5730
      %v5732 = vpop.f32.mrf.mxu0
      %v5733 = vadd.f32 %v5584, %v5732
      %v5734 = vand.u32 %v5193, 4294901760
      %v5735 = vsub.f32 %v5193, %v5734
      %5736 = vmatmul.f32.gmra.mxu0 %v5735
      %v5737 = vpop.f32.mrf.mxu0
      %v5738 = vadd.f32 %v5588, %v5737
      %v5739 = vand.u32 %v5196, 4294901760
      %v5740 = vsub.f32 %v5196, %v5739
      %5741 = vmatmul.f32.gmra.mxu0 %v5740
      %v5742 = vpop.f32.mrf.mxu0
      %v5743 = vadd.f32 %v5592, %v5742
      %v5744 = vand.u32 %v5199, 4294901760
      %v5745 = vsub.f32 %v5199, %v5744
      %5746 = vmatmul.f32.gmra.mxu0 %v5745
      %v5747 = vpop.f32.mrf.mxu0
      %v5748 = vadd.f32 %v5596, %v5747
      %v5749 = vand.u32 %v5202, 4294901760
      %v5750 = vsub.f32 %v5202, %v5749
      %5751 = vmatmul.f32.gmra.mxu0 %v5750
      %v5752 = vpop.f32.mrf.mxu0
      %v5753 = vadd.f32 %v5600, %v5752
      %v5754 = vand.u32 %v5205, 4294901760
      %v5755 = vsub.f32 %v5205, %v5754
      %5756 = vmatmul.f32.gmra.mxu0 %v5755
      %v5757 = vpop.f32.mrf.mxu0
      %v5758 = vadd.f32 %v5604, %v5757
      %v5759 = vand.u32 %v5208, 4294901760
      %v5760 = vsub.f32 %v5208, %v5759
      %5761 = vmatmul.f32.gmra.mxu0 %v5760
      %v5762 = vpop.f32.mrf.mxu0
      %v5763 = vadd.f32 %v5608, %v5762
      %v5764 = vand.u32 %v5211, 4294901760
      %v5765 = vsub.f32 %v5211, %v5764
      %5766 = vmatmul.f32.gmra.mxu0 %v5765
      %v5767 = vpop.f32.mrf.mxu0
      %v5768 = vadd.f32 %v5612, %v5767
      %v5769 = vand.u32 %v5214, 4294901760
      %v5770 = vsub.f32 %v5214, %v5769
      %5771 = vmatmul.f32.gmra.mxu0 %v5770
      %v5772 = vpop.f32.mrf.mxu0
      %v5773 = vadd.f32 %v5616, %v5772
      %v5774 = vand.u32 %v5217, 4294901760
      %v5775 = vsub.f32 %v5217, %v5774
      %5776 = vmatmul.f32.gmra.mxu0 %v5775
      %v5777 = vpop.f32.mrf.mxu0
      %v5778 = vadd.f32 %v5620, %v5777
      %v5779 = vand.u32 %v5220, 4294901760
      %v5780 = vsub.f32 %v5220, %v5779
      %5781 = vmatmul.f32.gmra.mxu0 %v5780
      %v5782 = vpop.f32.mrf.mxu0
      %v5783 = vadd.f32 %v5624, %v5782
      %v5784 = vand.u32 %v5223, 4294901760
      %v5785 = vsub.f32 %v5223, %v5784
      %5786 = vmatmul.f32.gmra.mxu0 %v5785
      %v5787 = vpop.f32.mrf.mxu0
      %v5788 = vadd.f32 %v5628, %v5787
      %v5789 = vand.u32 %v5226, 4294901760
      %v5790 = vsub.f32 %v5226, %v5789
      %5791 = vmatmul.f32.gmra.mxu0 %v5790
      %v5792 = vpop.f32.mrf.mxu0
      %v5793 = vadd.f32 %v5632, %v5792
      %v5794 = vand.u32 %v5229, 4294901760
      %v5795 = vsub.f32 %v5229, %v5794
      %5796 = vmatmul.f32.gmra.mxu0 %v5795
      %v5797 = vpop.f32.mrf.mxu0
      %v5798 = vadd.f32 %v5636, %v5797
      %v5799 = vand.u32 %v5232, 4294901760
      %v5800 = vsub.f32 %v5232, %v5799
      %5801 = vmatmul.f32.gmra.mxu0 %v5800
      %v5802 = vpop.f32.mrf.mxu0
      %v5803 = vadd.f32 %v5640, %v5802
      %v5804 = vand.u32 %v5235, 4294901760
      %v5805 = vsub.f32 %v5235, %v5804
      %5806 = vmatmul.f32.gmra.mxu0 %v5805
      %v5807 = vpop.f32.mrf.mxu0
      %v5808 = vadd.f32 %v5644, %v5807
      %v5809 = vand.u32 %v5238, 4294901760
      %v5810 = vsub.f32 %v5238, %v5809
      %5811 = vmatmul.f32.gmra.mxu0 %v5810
      %v5812 = vpop.f32.mrf.mxu0
      %v5813 = vadd.f32 %v5648, %v5812
      %v5814 = vand.u32 %v5241, 4294901760
      %v5815 = vsub.f32 %v5241, %v5814
      %5816 = vmatmul.f32.gmra.mxu0 %v5815
      %v5817 = vpop.f32.mrf.mxu0
      %v5818 = vadd.f32 %v5652, %v5817
      %v5819 = vand.u32 %v5244, 4294901760
      %v5820 = vsub.f32 %v5244, %v5819
      %5821 = vmatmul.f32.gmra.mxu0 %v5820
      %v5822 = vpop.f32.mrf.mxu0
      %v5823 = vadd.f32 %v5656, %v5822
      %v5824 = vand.u32 %v5247, 4294901760
      %v5825 = vsub.f32 %v5247, %v5824
      %5826 = vmatmul.f32.gmra.mxu0 %v5825
      %v5827 = vpop.f32.mrf.mxu0
      %v5828 = vadd.f32 %v5660, %v5827
      %v5829 = vand.u32 %v5250, 4294901760
      %v5830 = vsub.f32 %v5250, %v5829
      %5831 = vmatmul.f32.gmra.mxu0 %v5830
      %v5832 = vpop.f32.mrf.mxu0
      %v5833 = vadd.f32 %v5664, %v5832
      %v5834 = vand.u32 %v5253, 4294901760
      %v5835 = vsub.f32 %v5253, %v5834
      %5836 = vmatmul.f32.gmra.mxu0 %v5835
      %v5837 = vpop.f32.mrf.mxu0
      %v5838 = vadd.f32 %v5668, %v5837
      %v5839 = vand.u32 %v5256, 4294901760
      %v5840 = vsub.f32 %v5256, %v5839
      %5841 = vmatmul.f32.gmra.mxu0 %v5840
      %v5842 = vpop.f32.mrf.mxu0
      %v5843 = vadd.f32 %v5672, %v5842
      %v5844 = vand.u32 %v5259, 4294901760
      %v5845 = vsub.f32 %v5259, %v5844
      %5846 = vmatmul.f32.gmra.mxu0 %v5845
      %v5847 = vpop.f32.mrf.mxu0
      %v5848 = vadd.f32 %v5676, %v5847
      %v5849 = vand.u32 %v5262, 4294901760
      %v5850 = vsub.f32 %v5262, %v5849
      %5851 = vmatmul.f32.gmra.mxu0 %v5850
      %v5852 = vpop.f32.mrf.mxu0
      %v5853 = vadd.f32 %v5680, %v5852
      %v5854 = vand.u32 %v5265, 4294901760
      %v5855 = vsub.f32 %v5265, %v5854
      %5856 = vmatmul.f32.gmra.mxu0 %v5855
      %v5857 = vpop.f32.mrf.mxu0
      %v5858 = vadd.f32 %v5684, %v5857
      %v5859 = vand.u32 %v5268, 4294901760
      %v5860 = vsub.f32 %v5268, %v5859
      %5861 = vmatmul.f32.gmra.mxu0 %v5860
      %v5862 = vpop.f32.mrf.mxu0
      %v5863 = vadd.f32 %v5688, %v5862
      %v5864 = vand.u32 %v5271, 4294901760
      %v5865 = vsub.f32 %v5271, %v5864
      %5866 = vmatmul.f32.gmra.mxu0 %v5865
      %v5867 = vpop.f32.mrf.mxu0
      %v5868 = vadd.f32 %v5692, %v5867
      %v5869 = vand.u32 %v5274, 4294901760
      %v5870 = vsub.f32 %v5274, %v5869
      %5871 = vmatmul.f32.gmra.mxu0 %v5870
      %v5872 = vpop.f32.mrf.mxu0
      %v5873 = vadd.f32 %v5696, %v5872
      %v5874 = vand.u32 %v5277, 4294901760
      %v5875 = vsub.f32 %v5277, %v5874
      %5876 = vmatmul.f32.gmra.mxu0 %v5875
      %v5877 = vpop.f32.mrf.mxu0
      %v5878 = vadd.f32 %v5700, %v5877
      %v5879 = vand.u32 %v5280, 4294901760
      %v5880 = vsub.f32 %v5280, %v5879
      %5881 = vmatmul.f32.gmra.mxu0 %v5880
      %v5882 = vpop.f32.mrf.mxu0
      %v5883 = vadd.f32 %v5704, %v5882
      %5884 = vdwg.mxu0
      %5885 = vmatpush.msra.mxu0 0.0
      %5886 = vmatpush.msra.mxu0 0.0
      %5887 = vmatpush.msra.mxu0 0.0
      %5888 = vmatpush.msra.mxu0 0.0
      %5889 = vmatpush.msra.mxu0 0.0
      %5890 = vmatpush.msra.mxu0 0.0
      %5891 = vmatpush.msra.mxu0 0.0
      %5892 = vmatpush.msra.mxu0 0.0
      %5893 = vmatpush.msra.mxu0 0.0
      %5894 = vmatpush.msra.mxu0 0.0
      %5895 = vmatpush.msra.mxu0 0.0
      %5896 = vmatpush.msra.mxu0 0.0
      %5897 = vmatpush.msra.mxu0 0.0
      %5898 = vmatpush.msra.mxu0 0.0
      %5899 = vmatpush.msra.mxu0 0.0
      %v5900 = vand.u32 %v5181, 4294901760
      %5901 = vmatpush.msra.mxu0 %v5900
      %v5902 = vand.u32 %v5187, 4294901760
      %v5903 = vsub.f32 %v5187, %v5902
      %v5904 = vand.u32 %v5903, 4294901760
      %5905 = vmatmul.f32.gmra.mxu0 %v5904
      %v5906 = vpop.f32.mrf.mxu0
      %v5907 = vadd.f32 %v5728, %v5906
      %v5908 = vand.u32 %v5190, 4294901760
      %v5909 = vsub.f32 %v5190, %v5908
      %v5910 = vand.u32 %v5909, 4294901760
      %5911 = vmatmul.f32.gmra.mxu0 %v5910
      %v5912 = vpop.f32.mrf.mxu0
      %v5913 = vadd.f32 %v5733, %v5912
      %v5914 = vand.u32 %v5193, 4294901760
      %v5915 = vsub.f32 %v5193, %v5914
      %v5916 = vand.u32 %v5915, 4294901760
      %5917 = vmatmul.f32.gmra.mxu0 %v5916
      %v5918 = vpop.f32.mrf.mxu0
      %v5919 = vadd.f32 %v5738, %v5918
      %v5920 = vand.u32 %v5196, 4294901760
      %v5921 = vsub.f32 %v5196, %v5920
      %v5922 = vand.u32 %v5921, 4294901760
      %5923 = vmatmul.f32.gmra.mxu0 %v5922
      %v5924 = vpop.f32.mrf.mxu0
      %v5925 = vadd.f32 %v5743, %v5924
      %v5926 = vand.u32 %v5199, 4294901760
      %v5927 = vsub.f32 %v5199, %v5926
      %v5928 = vand.u32 %v5927, 4294901760
      %5929 = vmatmul.f32.gmra.mxu0 %v5928
      %v5930 = vpop.f32.mrf.mxu0
      %v5931 = vadd.f32 %v5748, %v5930
      %v5932 = vand.u32 %v5202, 4294901760
      %v5933 = vsub.f32 %v5202, %v5932
      %v5934 = vand.u32 %v5933, 4294901760
      %5935 = vmatmul.f32.gmra.mxu0 %v5934
      %v5936 = vpop.f32.mrf.mxu0
      %v5937 = vadd.f32 %v5753, %v5936
      %v5938 = vand.u32 %v5205, 4294901760
      %v5939 = vsub.f32 %v5205, %v5938
      %v5940 = vand.u32 %v5939, 4294901760
      %5941 = vmatmul.f32.gmra.mxu0 %v5940
      %v5942 = vpop.f32.mrf.mxu0
      %v5943 = vadd.f32 %v5758, %v5942
      %v5944 = vand.u32 %v5208, 4294901760
      %v5945 = vsub.f32 %v5208, %v5944
      %v5946 = vand.u32 %v5945, 4294901760
      %5947 = vmatmul.f32.gmra.mxu0 %v5946
      %v5948 = vpop.f32.mrf.mxu0
      %v5949 = vadd.f32 %v5763, %v5948
      %v5950 = vand.u32 %v5211, 4294901760
      %v5951 = vsub.f32 %v5211, %v5950
      %v5952 = vand.u32 %v5951, 4294901760
      %5953 = vmatmul.f32.gmra.mxu0 %v5952
      %v5954 = vpop.f32.mrf.mxu0
      %v5955 = vadd.f32 %v5768, %v5954
      %v5956 = vand.u32 %v5214, 4294901760
      %v5957 = vsub.f32 %v5214, %v5956
      %v5958 = vand.u32 %v5957, 4294901760
      %5959 = vmatmul.f32.gmra.mxu0 %v5958
      %v5960 = vpop.f32.mrf.mxu0
      %v5961 = vadd.f32 %v5773, %v5960
      %v5962 = vand.u32 %v5217, 4294901760
      %v5963 = vsub.f32 %v5217, %v5962
      %v5964 = vand.u32 %v5963, 4294901760
      %5965 = vmatmul.f32.gmra.mxu0 %v5964
      %v5966 = vpop.f32.mrf.mxu0
      %v5967 = vadd.f32 %v5778, %v5966
      %v5968 = vand.u32 %v5220, 4294901760
      %v5969 = vsub.f32 %v5220, %v5968
      %v5970 = vand.u32 %v5969, 4294901760
      %5971 = vmatmul.f32.gmra.mxu0 %v5970
      %v5972 = vpop.f32.mrf.mxu0
      %v5973 = vadd.f32 %v5783, %v5972
      %v5974 = vand.u32 %v5223, 4294901760
      %v5975 = vsub.f32 %v5223, %v5974
      %v5976 = vand.u32 %v5975, 4294901760
      %5977 = vmatmul.f32.gmra.mxu0 %v5976
      %v5978 = vpop.f32.mrf.mxu0
      %v5979 = vadd.f32 %v5788, %v5978
      %v5980 = vand.u32 %v5226, 4294901760
      %v5981 = vsub.f32 %v5226, %v5980
      %v5982 = vand.u32 %v5981, 4294901760
      %5983 = vmatmul.f32.gmra.mxu0 %v5982
      %v5984 = vpop.f32.mrf.mxu0
      %v5985 = vadd.f32 %v5793, %v5984
      %v5986 = vand.u32 %v5229, 4294901760
      %v5987 = vsub.f32 %v5229, %v5986
      %v5988 = vand.u32 %v5987, 4294901760
      %5989 = vmatmul.f32.gmra.mxu0 %v5988
      %v5990 = vpop.f32.mrf.mxu0
      %v5991 = vadd.f32 %v5798, %v5990
      %v5992 = vand.u32 %v5232, 4294901760
      %v5993 = vsub.f32 %v5232, %v5992
      %v5994 = vand.u32 %v5993, 4294901760
      %5995 = vmatmul.f32.gmra.mxu0 %v5994
      %v5996 = vpop.f32.mrf.mxu0
      %v5997 = vadd.f32 %v5803, %v5996
      %v5998 = vand.u32 %v5235, 4294901760
      %v5999 = vsub.f32 %v5235, %v5998
      %v6000 = vand.u32 %v5999, 4294901760
      %6001 = vmatmul.f32.gmra.mxu0 %v6000
      %v6002 = vpop.f32.mrf.mxu0
      %v6003 = vadd.f32 %v5808, %v6002
      %v6004 = vand.u32 %v5238, 4294901760
      %v6005 = vsub.f32 %v5238, %v6004
      %v6006 = vand.u32 %v6005, 4294901760
      %6007 = vmatmul.f32.gmra.mxu0 %v6006
      %v6008 = vpop.f32.mrf.mxu0
      %v6009 = vadd.f32 %v5813, %v6008
      %v6010 = vand.u32 %v5241, 4294901760
      %v6011 = vsub.f32 %v5241, %v6010
      %v6012 = vand.u32 %v6011, 4294901760
      %6013 = vmatmul.f32.gmra.mxu0 %v6012
      %v6014 = vpop.f32.mrf.mxu0
      %v6015 = vadd.f32 %v5818, %v6014
      %v6016 = vand.u32 %v5244, 4294901760
      %v6017 = vsub.f32 %v5244, %v6016
      %v6018 = vand.u32 %v6017, 4294901760
      %6019 = vmatmul.f32.gmra.mxu0 %v6018
      %v6020 = vpop.f32.mrf.mxu0
      %v6021 = vadd.f32 %v5823, %v6020
      %v6022 = vand.u32 %v5247, 4294901760
      %v6023 = vsub.f32 %v5247, %v6022
      %v6024 = vand.u32 %v6023, 4294901760
      %6025 = vmatmul.f32.gmra.mxu0 %v6024
      %v6026 = vpop.f32.mrf.mxu0
      %v6027 = vadd.f32 %v5828, %v6026
      %v6028 = vand.u32 %v5250, 4294901760
      %v6029 = vsub.f32 %v5250, %v6028
      %v6030 = vand.u32 %v6029, 4294901760
      %6031 = vmatmul.f32.gmra.mxu0 %v6030
      %v6032 = vpop.f32.mrf.mxu0
      %v6033 = vadd.f32 %v5833, %v6032
      %v6034 = vand.u32 %v5253, 4294901760
      %v6035 = vsub.f32 %v5253, %v6034
      %v6036 = vand.u32 %v6035, 4294901760
      %6037 = vmatmul.f32.gmra.mxu0 %v6036
      %v6038 = vpop.f32.mrf.mxu0
      %v6039 = vadd.f32 %v5838, %v6038
      %v6040 = vand.u32 %v5256, 4294901760
      %v6041 = vsub.f32 %v5256, %v6040
      %v6042 = vand.u32 %v6041, 4294901760
      %6043 = vmatmul.f32.gmra.mxu0 %v6042
      %v6044 = vpop.f32.mrf.mxu0
      %v6045 = vadd.f32 %v5843, %v6044
      %v6046 = vand.u32 %v5259, 4294901760
      %v6047 = vsub.f32 %v5259, %v6046
      %v6048 = vand.u32 %v6047, 4294901760
      %6049 = vmatmul.f32.gmra.mxu0 %v6048
      %v6050 = vpop.f32.mrf.mxu0
      %v6051 = vadd.f32 %v5848, %v6050
      %v6052 = vand.u32 %v5262, 4294901760
      %v6053 = vsub.f32 %v5262, %v6052
      %v6054 = vand.u32 %v6053, 4294901760
      %6055 = vmatmul.f32.gmra.mxu0 %v6054
      %v6056 = vpop.f32.mrf.mxu0
      %v6057 = vadd.f32 %v5853, %v6056
      %v6058 = vand.u32 %v5265, 4294901760
      %v6059 = vsub.f32 %v5265, %v6058
      %v6060 = vand.u32 %v6059, 4294901760
      %6061 = vmatmul.f32.gmra.mxu0 %v6060
      %v6062 = vpop.f32.mrf.mxu0
      %v6063 = vadd.f32 %v5858, %v6062
      %v6064 = vand.u32 %v5268, 4294901760
      %v6065 = vsub.f32 %v5268, %v6064
      %v6066 = vand.u32 %v6065, 4294901760
      %6067 = vmatmul.f32.gmra.mxu0 %v6066
      %v6068 = vpop.f32.mrf.mxu0
      %v6069 = vadd.f32 %v5863, %v6068
      %v6070 = vand.u32 %v5271, 4294901760
      %v6071 = vsub.f32 %v5271, %v6070
      %v6072 = vand.u32 %v6071, 4294901760
      %6073 = vmatmul.f32.gmra.mxu0 %v6072
      %v6074 = vpop.f32.mrf.mxu0
      %v6075 = vadd.f32 %v5868, %v6074
      %v6076 = vand.u32 %v5274, 4294901760
      %v6077 = vsub.f32 %v5274, %v6076
      %v6078 = vand.u32 %v6077, 4294901760
      %6079 = vmatmul.f32.gmra.mxu0 %v6078
      %v6080 = vpop.f32.mrf.mxu0
      %v6081 = vadd.f32 %v5873, %v6080
      %v6082 = vand.u32 %v5277, 4294901760
      %v6083 = vsub.f32 %v5277, %v6082
      %v6084 = vand.u32 %v6083, 4294901760
      %6085 = vmatmul.f32.gmra.mxu0 %v6084
      %v6086 = vpop.f32.mrf.mxu0
      %v6087 = vadd.f32 %v5878, %v6086
      %v6088 = vand.u32 %v5280, 4294901760
      %v6089 = vsub.f32 %v5280, %v6088
      %v6090 = vand.u32 %v6089, 4294901760
      %6091 = vmatmul.f32.gmra.mxu0 %v6090
      %v6092 = vpop.f32.mrf.mxu0
      %v6093 = vadd.f32 %v5883, %v6092
      %6094 = vdwg.mxu0
      %6095 = vmatpush.msra.mxu0 0.0
      %6096 = vmatpush.msra.mxu0 0.0
      %6097 = vmatpush.msra.mxu0 0.0
      %6098 = vmatpush.msra.mxu0 0.0
      %6099 = vmatpush.msra.mxu0 0.0
      %6100 = vmatpush.msra.mxu0 0.0
      %6101 = vmatpush.msra.mxu0 0.0
      %6102 = vmatpush.msra.mxu0 0.0
      %6103 = vmatpush.msra.mxu0 0.0
      %6104 = vmatpush.msra.mxu0 0.0
      %6105 = vmatpush.msra.mxu0 0.0
      %6106 = vmatpush.msra.mxu0 0.0
      %6107 = vmatpush.msra.mxu0 0.0
      %6108 = vmatpush.msra.mxu0 0.0
      %6109 = vmatpush.msra.mxu0 0.0
      %v6110 = vand.u32 %v5181, 4294901760
      %v6111 = vsub.f32 %v5181, %v6110
      %v6112 = vand.u32 %v6111, 4294901760
      %6113 = vmatpush.msra.mxu0 %v6112
      %v6114 = vand.u32 %v5187, 4294901760
      %6115 = vmatmul.f32.gmra.mxu0 %v6114
      %v6116 = vpop.f32.mrf.mxu0
      %v6117 = vadd.f32 %v5907, %v6116
      %v6118 = vand.u32 %v5190, 4294901760
      %6119 = vmatmul.f32.gmra.mxu0 %v6118
      %v6120 = vpop.f32.mrf.mxu0
      %v6121 = vadd.f32 %v5913, %v6120
      %v6122 = vand.u32 %v5193, 4294901760
      %6123 = vmatmul.f32.gmra.mxu0 %v6122
      %v6124 = vpop.f32.mrf.mxu0
      %v6125 = vadd.f32 %v5919, %v6124
      %v6126 = vand.u32 %v5196, 4294901760
      %6127 = vmatmul.f32.gmra.mxu0 %v6126
      %v6128 = vpop.f32.mrf.mxu0
      %v6129 = vadd.f32 %v5925, %v6128
      %v6130 = vand.u32 %v5199, 4294901760
      %6131 = vmatmul.f32.gmra.mxu0 %v6130
      %v6132 = vpop.f32.mrf.mxu0
      %v6133 = vadd.f32 %v5931, %v6132
      %v6134 = vand.u32 %v5202, 4294901760
      %6135 = vmatmul.f32.gmra.mxu0 %v6134
      %v6136 = vpop.f32.mrf.mxu0
      %v6137 = vadd.f32 %v5937, %v6136
      %v6138 = vand.u32 %v5205, 4294901760
      %6139 = vmatmul.f32.gmra.mxu0 %v6138
      %v6140 = vpop.f32.mrf.mxu0
      %v6141 = vadd.f32 %v5943, %v6140
      %v6142 = vand.u32 %v5208, 4294901760
      %6143 = vmatmul.f32.gmra.mxu0 %v6142
      %v6144 = vpop.f32.mrf.mxu0
      %v6145 = vadd.f32 %v5949, %v6144
      %v6146 = vand.u32 %v5211, 4294901760
      %6147 = vmatmul.f32.gmra.mxu0 %v6146
      %v6148 = vpop.f32.mrf.mxu0
      %v6149 = vadd.f32 %v5955, %v6148
      %v6150 = vand.u32 %v5214, 4294901760
      %6151 = vmatmul.f32.gmra.mxu0 %v6150
      %v6152 = vpop.f32.mrf.mxu0
      %v6153 = vadd.f32 %v5961, %v6152
      %v6154 = vand.u32 %v5217, 4294901760
      %6155 = vmatmul.f32.gmra.mxu0 %v6154
      %v6156 = vpop.f32.mrf.mxu0
      %v6157 = vadd.f32 %v5967, %v6156
      %v6158 = vand.u32 %v5220, 4294901760
      %6159 = vmatmul.f32.gmra.mxu0 %v6158
      %v6160 = vpop.f32.mrf.mxu0
      %v6161 = vadd.f32 %v5973, %v6160
      %v6162 = vand.u32 %v5223, 4294901760
      %6163 = vmatmul.f32.gmra.mxu0 %v6162
      %v6164 = vpop.f32.mrf.mxu0
      %v6165 = vadd.f32 %v5979, %v6164
      %v6166 = vand.u32 %v5226, 4294901760
      %6167 = vmatmul.f32.gmra.mxu0 %v6166
      %v6168 = vpop.f32.mrf.mxu0
      %v6169 = vadd.f32 %v5985, %v6168
      %v6170 = vand.u32 %v5229, 4294901760
      %6171 = vmatmul.f32.gmra.mxu0 %v6170
      %v6172 = vpop.f32.mrf.mxu0
      %v6173 = vadd.f32 %v5991, %v6172
      %v6174 = vand.u32 %v5232, 4294901760
      %6175 = vmatmul.f32.gmra.mxu0 %v6174
      %v6176 = vpop.f32.mrf.mxu0
      %v6177 = vadd.f32 %v5997, %v6176
      %v6178 = vand.u32 %v5235, 4294901760
      %6179 = vmatmul.f32.gmra.mxu0 %v6178
      %v6180 = vpop.f32.mrf.mxu0
      %v6181 = vadd.f32 %v6003, %v6180
      %v6182 = vand.u32 %v5238, 4294901760
      %6183 = vmatmul.f32.gmra.mxu0 %v6182
      %v6184 = vpop.f32.mrf.mxu0
      %v6185 = vadd.f32 %v6009, %v6184
      %v6186 = vand.u32 %v5241, 4294901760
      %6187 = vmatmul.f32.gmra.mxu0 %v6186
      %v6188 = vpop.f32.mrf.mxu0
      %v6189 = vadd.f32 %v6015, %v6188
      %v6190 = vand.u32 %v5244, 4294901760
      %6191 = vmatmul.f32.gmra.mxu0 %v6190
      %v6192 = vpop.f32.mrf.mxu0
      %v6193 = vadd.f32 %v6021, %v6192
      %v6194 = vand.u32 %v5247, 4294901760
      %6195 = vmatmul.f32.gmra.mxu0 %v6194
      %v6196 = vpop.f32.mrf.mxu0
      %v6197 = vadd.f32 %v6027, %v6196
      %v6198 = vand.u32 %v5250, 4294901760
      %6199 = vmatmul.f32.gmra.mxu0 %v6198
      %v6200 = vpop.f32.mrf.mxu0
      %v6201 = vadd.f32 %v6033, %v6200
      %v6202 = vand.u32 %v5253, 4294901760
      %6203 = vmatmul.f32.gmra.mxu0 %v6202
      %v6204 = vpop.f32.mrf.mxu0
      %v6205 = vadd.f32 %v6039, %v6204
      %v6206 = vand.u32 %v5256, 4294901760
      %6207 = vmatmul.f32.gmra.mxu0 %v6206
      %v6208 = vpop.f32.mrf.mxu0
      %v6209 = vadd.f32 %v6045, %v6208
      %v6210 = vand.u32 %v5259, 4294901760
      %6211 = vmatmul.f32.gmra.mxu0 %v6210
      %v6212 = vpop.f32.mrf.mxu0
      %v6213 = vadd.f32 %v6051, %v6212
      %v6214 = vand.u32 %v5262, 4294901760
      %6215 = vmatmul.f32.gmra.mxu0 %v6214
      %v6216 = vpop.f32.mrf.mxu0
      %v6217 = vadd.f32 %v6057, %v6216
      %v6218 = vand.u32 %v5265, 4294901760
      %6219 = vmatmul.f32.gmra.mxu0 %v6218
      %v6220 = vpop.f32.mrf.mxu0
      %v6221 = vadd.f32 %v6063, %v6220
      %v6222 = vand.u32 %v5268, 4294901760
      %6223 = vmatmul.f32.gmra.mxu0 %v6222
      %v6224 = vpop.f32.mrf.mxu0
      %v6225 = vadd.f32 %v6069, %v6224
      %v6226 = vand.u32 %v5271, 4294901760
      %6227 = vmatmul.f32.gmra.mxu0 %v6226
      %v6228 = vpop.f32.mrf.mxu0
      %v6229 = vadd.f32 %v6075, %v6228
      %v6230 = vand.u32 %v5274, 4294901760
      %6231 = vmatmul.f32.gmra.mxu0 %v6230
      %v6232 = vpop.f32.mrf.mxu0
      %v6233 = vadd.f32 %v6081, %v6232
      %v6234 = vand.u32 %v5277, 4294901760
      %6235 = vmatmul.f32.gmra.mxu0 %v6234
      %v6236 = vpop.f32.mrf.mxu0
      %v6237 = vadd.f32 %v6087, %v6236
      %v6238 = vand.u32 %v5280, 4294901760
      %6239 = vmatmul.f32.gmra.mxu0 %v6238
      %v6240 = vpop.f32.mrf.mxu0
      %v6241 = vadd.f32 %v6093, %v6240
      %6242 = vdwg.mxu0
      %6243 = vmatpush.msra.mxu0 0.0
      %6244 = vmatpush.msra.mxu0 0.0
      %6245 = vmatpush.msra.mxu0 0.0
      %6246 = vmatpush.msra.mxu0 0.0
      %6247 = vmatpush.msra.mxu0 0.0
      %6248 = vmatpush.msra.mxu0 0.0
      %6249 = vmatpush.msra.mxu0 0.0
      %6250 = vmatpush.msra.mxu0 0.0
      %6251 = vmatpush.msra.mxu0 0.0
      %6252 = vmatpush.msra.mxu0 0.0
      %6253 = vmatpush.msra.mxu0 0.0
      %6254 = vmatpush.msra.mxu0 0.0
      %6255 = vmatpush.msra.mxu0 0.0
      %6256 = vmatpush.msra.mxu0 0.0
      %6257 = vmatpush.msra.mxu0 0.0
      %v6258 = vand.u32 %v5181, 4294901760
      %6259 = vmatpush.msra.mxu0 %v6258
      %v6260 = vand.u32 %v5187, 4294901760
      %6261 = vmatmul.f32.gmra.mxu0 %v6260
      %v6262 = vpop.f32.mrf.mxu0
      %v6263 = vadd.f32 %v6117, %v6262
      %v6264 = vand.u32 %v5190, 4294901760
      %6265 = vmatmul.f32.gmra.mxu0 %v6264
      %v6266 = vpop.f32.mrf.mxu0
      %v6267 = vadd.f32 %v6121, %v6266
      %v6268 = vand.u32 %v5193, 4294901760
      %6269 = vmatmul.f32.gmra.mxu0 %v6268
      %v6270 = vpop.f32.mrf.mxu0
      %v6271 = vadd.f32 %v6125, %v6270
      %v6272 = vand.u32 %v5196, 4294901760
      %6273 = vmatmul.f32.gmra.mxu0 %v6272
      %v6274 = vpop.f32.mrf.mxu0
      %v6275 = vadd.f32 %v6129, %v6274
      %v6276 = vand.u32 %v5199, 4294901760
      %6277 = vmatmul.f32.gmra.mxu0 %v6276
      %v6278 = vpop.f32.mrf.mxu0
      %v6279 = vadd.f32 %v6133, %v6278
      %v6280 = vand.u32 %v5202, 4294901760
      %6281 = vmatmul.f32.gmra.mxu0 %v6280
      %v6282 = vpop.f32.mrf.mxu0
      %v6283 = vadd.f32 %v6137, %v6282
      %v6284 = vand.u32 %v5205, 4294901760
      %6285 = vmatmul.f32.gmra.mxu0 %v6284
      %v6286 = vpop.f32.mrf.mxu0
      %v6287 = vadd.f32 %v6141, %v6286
      %v6288 = vand.u32 %v5208, 4294901760
      %6289 = vmatmul.f32.gmra.mxu0 %v6288
      %v6290 = vpop.f32.mrf.mxu0
      %v6291 = vadd.f32 %v6145, %v6290
      %v6292 = vand.u32 %v5211, 4294901760
      %6293 = vmatmul.f32.gmra.mxu0 %v6292
      %v6294 = vpop.f32.mrf.mxu0
      %v6295 = vadd.f32 %v6149, %v6294
      %v6296 = vand.u32 %v5214, 4294901760
      %6297 = vmatmul.f32.gmra.mxu0 %v6296
      %v6298 = vpop.f32.mrf.mxu0
      %v6299 = vadd.f32 %v6153, %v6298
      %v6300 = vand.u32 %v5217, 4294901760
      %6301 = vmatmul.f32.gmra.mxu0 %v6300
      %v6302 = vpop.f32.mrf.mxu0
      %v6303 = vadd.f32 %v6157, %v6302
      %v6304 = vand.u32 %v5220, 4294901760
      %6305 = vmatmul.f32.gmra.mxu0 %v6304
      %v6306 = vpop.f32.mrf.mxu0
      %v6307 = vadd.f32 %v6161, %v6306
      %v6308 = vand.u32 %v5223, 4294901760
      %6309 = vmatmul.f32.gmra.mxu0 %v6308
      %v6310 = vpop.f32.mrf.mxu0
      %v6311 = vadd.f32 %v6165, %v6310
      %v6312 = vand.u32 %v5226, 4294901760
      %6313 = vmatmul.f32.gmra.mxu0 %v6312
      %v6314 = vpop.f32.mrf.mxu0
      %v6315 = vadd.f32 %v6169, %v6314
      %v6316 = vand.u32 %v5229, 4294901760
      %6317 = vmatmul.f32.gmra.mxu0 %v6316
      %v6318 = vpop.f32.mrf.mxu0
      %v6319 = vadd.f32 %v6173, %v6318
      %v6320 = vand.u32 %v5232, 4294901760
      %6321 = vmatmul.f32.gmra.mxu0 %v6320
      %v6322 = vpop.f32.mrf.mxu0
      %v6323 = vadd.f32 %v6177, %v6322
      %v6324 = vand.u32 %v5235, 4294901760
      %6325 = vmatmul.f32.gmra.mxu0 %v6324
      %v6326 = vpop.f32.mrf.mxu0
      %v6327 = vadd.f32 %v6181, %v6326
      %v6328 = vand.u32 %v5238, 4294901760
      %6329 = vmatmul.f32.gmra.mxu0 %v6328
      %v6330 = vpop.f32.mrf.mxu0
      %v6331 = vadd.f32 %v6185, %v6330
      %v6332 = vand.u32 %v5241, 4294901760
      %6333 = vmatmul.f32.gmra.mxu0 %v6332
      %v6334 = vpop.f32.mrf.mxu0
      %v6335 = vadd.f32 %v6189, %v6334
      %v6336 = vand.u32 %v5244, 4294901760
      %6337 = vmatmul.f32.gmra.mxu0 %v6336
      %v6338 = vpop.f32.mrf.mxu0
      %v6339 = vadd.f32 %v6193, %v6338
      %v6340 = vand.u32 %v5247, 4294901760
      %6341 = vmatmul.f32.gmra.mxu0 %v6340
      %v6342 = vpop.f32.mrf.mxu0
      %v6343 = vadd.f32 %v6197, %v6342
      %v6344 = vand.u32 %v5250, 4294901760
      %6345 = vmatmul.f32.gmra.mxu0 %v6344
      %v6346 = vpop.f32.mrf.mxu0
      %v6347 = vadd.f32 %v6201, %v6346
      %v6348 = vand.u32 %v5253, 4294901760
      %6349 = vmatmul.f32.gmra.mxu0 %v6348
      %v6350 = vpop.f32.mrf.mxu0
      %v6351 = vadd.f32 %v6205, %v6350
      %v6352 = vand.u32 %v5256, 4294901760
      %6353 = vmatmul.f32.gmra.mxu0 %v6352
      %v6354 = vpop.f32.mrf.mxu0
      %v6355 = vadd.f32 %v6209, %v6354
      %v6356 = vand.u32 %v5259, 4294901760
      %6357 = vmatmul.f32.gmra.mxu0 %v6356
      %v6358 = vpop.f32.mrf.mxu0
      %v6359 = vadd.f32 %v6213, %v6358
      %v6360 = vand.u32 %v5262, 4294901760
      %6361 = vmatmul.f32.gmra.mxu0 %v6360
      %v6362 = vpop.f32.mrf.mxu0
      %v6363 = vadd.f32 %v6217, %v6362
      %v6364 = vand.u32 %v5265, 4294901760
      %6365 = vmatmul.f32.gmra.mxu0 %v6364
      %v6366 = vpop.f32.mrf.mxu0
      %v6367 = vadd.f32 %v6221, %v6366
      %v6368 = vand.u32 %v5268, 4294901760
      %6369 = vmatmul.f32.gmra.mxu0 %v6368
      %v6370 = vpop.f32.mrf.mxu0
      %v6371 = vadd.f32 %v6225, %v6370
      %v6372 = vand.u32 %v5271, 4294901760
      %6373 = vmatmul.f32.gmra.mxu0 %v6372
      %v6374 = vpop.f32.mrf.mxu0
      %v6375 = vadd.f32 %v6229, %v6374
      %v6376 = vand.u32 %v5274, 4294901760
      %6377 = vmatmul.f32.gmra.mxu0 %v6376
      %v6378 = vpop.f32.mrf.mxu0
      %v6379 = vadd.f32 %v6233, %v6378
      %v6380 = vand.u32 %v5277, 4294901760
      %6381 = vmatmul.f32.gmra.mxu0 %v6380
      %v6382 = vpop.f32.mrf.mxu0
      %v6383 = vadd.f32 %v6237, %v6382
      %v6384 = vand.u32 %v5280, 4294901760
      %6385 = vmatmul.f32.gmra.mxu0 %v6384
      %v6386 = vpop.f32.mrf.mxu0
      %v6387 = vadd.f32 %v6241, %v6386
      %6388 = vdwg.mxu0
      %v6389 = vadd.f32 %v6263, 3.0
      %v6390 = vadd.f32 %v6267, 3.0
      %v6391 = vadd.f32 %v6271, 3.0
      %v6392 = vadd.f32 %v6275, 3.0
      %v6393 = vadd.f32 %v6279, 3.0
      %v6394 = vadd.f32 %v6283, 3.0
      %v6395 = vadd.f32 %v6287, 3.0
      %v6396 = vadd.f32 %v6291, 3.0
      %v6397 = vadd.f32 %v6295, 3.0
      %v6398 = vadd.f32 %v6299, 3.0
      %v6399 = vadd.f32 %v6303, 3.0
      %v6400 = vadd.f32 %v6307, 3.0
      %v6401 = vadd.f32 %v6311, 3.0
      %v6402 = vadd.f32 %v6315, 3.0
      %v6403 = vadd.f32 %v6319, 3.0
      %v6404 = vadd.f32 %v6323, 3.0
      %v6405 = vadd.f32 %v6327, 3.0
      %v6406 = vadd.f32 %v6331, 3.0
      %v6407 = vadd.f32 %v6335, 3.0
      %v6408 = vadd.f32 %v6339, 3.0
      %v6409 = vadd.f32 %v6343, 3.0
      %v6410 = vadd.f32 %v6347, 3.0
      %v6411 = vadd.f32 %v6351, 3.0
      %v6412 = vadd.f32 %v6355, 3.0
      %v6413 = vadd.f32 %v6359, 3.0
      %v6414 = vadd.f32 %v6363, 3.0
      %v6415 = vadd.f32 %v6367, 3.0
      %v6416 = vadd.f32 %v6371, 3.0
      %v6417 = vadd.f32 %v6375, 3.0
      %v6418 = vadd.f32 %v6379, 3.0
      %v6419 = vadd.f32 %v6383, 3.0
      %v6420 = vadd.f32 %v6387, 3.0
      %v6421 = vmax.f32 %v6389, 0.0
      %v6422 = vmax.f32 %v6390, 0.0
      %v6423 = vmax.f32 %v6391, 0.0
      %v6424 = vmax.f32 %v6392, 0.0
      %v6425 = vmax.f32 %v6393, 0.0
      %v6426 = vmax.f32 %v6394, 0.0
      %v6427 = vmax.f32 %v6395, 0.0
      %v6428 = vmax.f32 %v6396, 0.0
      %v6429 = vmax.f32 %v6397, 0.0
      %v6430 = vmax.f32 %v6398, 0.0
      %v6431 = vmax.f32 %v6399, 0.0
      %v6432 = vmax.f32 %v6400, 0.0
      %v6433 = vmax.f32 %v6401, 0.0
      %v6434 = vmax.f32 %v6402, 0.0
      %v6435 = vmax.f32 %v6403, 0.0
      %v6436 = vmax.f32 %v6404, 0.0
      %v6437 = vmax.f32 %v6405, 0.0
      %v6438 = vmax.f32 %v6406, 0.0
      %v6439 = vmax.f32 %v6407, 0.0
      %v6440 = vmax.f32 %v6408, 0.0
      %v6441 = vmax.f32 %v6409, 0.0
      %v6442 = vmax.f32 %v6410, 0.0
      %v6443 = vmax.f32 %v6411, 0.0
      %v6444 = vmax.f32 %v6412, 0.0
      %v6445 = vmax.f32 %v6413, 0.0
      %v6446 = vmax.f32 %v6414, 0.0
      %v6447 = vmax.f32 %v6415, 0.0
      %v6448 = vmax.f32 %v6416, 0.0
      %v6449 = vmax.f32 %v6417, 0.0
      %v6450 = vmax.f32 %v6418, 0.0
      %v6451 = vmax.f32 %v6419, 0.0
      %v6452 = vmax.f32 %v6420, 0.0
      %v6453 = vmin.f32 %v6421, 6.0
      %v6454 = vmin.f32 %v6422, 6.0
      %v6455 = vmin.f32 %v6423, 6.0
      %v6456 = vmin.f32 %v6424, 6.0
      %v6457 = vmin.f32 %v6425, 6.0
      %v6458 = vmin.f32 %v6426, 6.0
      %v6459 = vmin.f32 %v6427, 6.0
      %v6460 = vmin.f32 %v6428, 6.0
      %v6461 = vmin.f32 %v6429, 6.0
      %v6462 = vmin.f32 %v6430, 6.0
      %v6463 = vmin.f32 %v6431, 6.0
      %v6464 = vmin.f32 %v6432, 6.0
      %v6465 = vmin.f32 %v6433, 6.0
      %v6466 = vmin.f32 %v6434, 6.0
      %v6467 = vmin.f32 %v6435, 6.0
      %v6468 = vmin.f32 %v6436, 6.0
      %v6469 = vmin.f32 %v6437, 6.0
      %v6470 = vmin.f32 %v6438, 6.0
      %v6471 = vmin.f32 %v6439, 6.0
      %v6472 = vmin.f32 %v6440, 6.0
      %v6473 = vmin.f32 %v6441, 6.0
      %v6474 = vmin.f32 %v6442, 6.0
      %v6475 = vmin.f32 %v6443, 6.0
      %v6476 = vmin.f32 %v6444, 6.0
      %v6477 = vmin.f32 %v6445, 6.0
      %v6478 = vmin.f32 %v6446, 6.0
      %v6479 = vmin.f32 %v6447, 6.0
      %v6480 = vmin.f32 %v6448, 6.0
      %v6481 = vmin.f32 %v6449, 6.0
      %v6482 = vmin.f32 %v6450, 6.0
      %v6483 = vmin.f32 %v6451, 6.0
      %v6484 = vmin.f32 %v6452, 6.0
      %v6485 = vmul.f32 %v6453, 0.16666667
      %v6486 = vmul.f32 %v6454, 0.16666667
      %v6487 = vmul.f32 %v6455, 0.16666667
      %v6488 = vmul.f32 %v6456, 0.16666667
      %v6489 = vmul.f32 %v6457, 0.16666667
      %v6490 = vmul.f32 %v6458, 0.16666667
      %v6491 = vmul.f32 %v6459, 0.16666667
      %v6492 = vmul.f32 %v6460, 0.16666667
      %v6493 = vmul.f32 %v6461, 0.16666667
      %v6494 = vmul.f32 %v6462, 0.16666667
      %v6495 = vmul.f32 %v6463, 0.16666667
      %v6496 = vmul.f32 %v6464, 0.16666667
      %v6497 = vmul.f32 %v6465, 0.16666667
      %v6498 = vmul.f32 %v6466, 0.16666667
      %v6499 = vmul.f32 %v6467, 0.16666667
      %v6500 = vmul.f32 %v6468, 0.16666667
      %v6501 = vmul.f32 %v6469, 0.16666667
      %v6502 = vmul.f32 %v6470, 0.16666667
      %v6503 = vmul.f32 %v6471, 0.16666667
      %v6504 = vmul.f32 %v6472, 0.16666667
      %v6505 = vmul.f32 %v6473, 0.16666667
      %v6506 = vmul.f32 %v6474, 0.16666667
      %v6507 = vmul.f32 %v6475, 0.16666667
      %v6508 = vmul.f32 %v6476, 0.16666667
      %v6509 = vmul.f32 %v6477, 0.16666667
      %v6510 = vmul.f32 %v6478, 0.16666667
      %v6511 = vmul.f32 %v6479, 0.16666667
      %v6512 = vmul.f32 %v6480, 0.16666667
      %v6513 = vmul.f32 %v6481, 0.16666667
      %v6514 = vmul.f32 %v6482, 0.16666667
      %v6515 = vmul.f32 %v6483, 0.16666667
      %v6516 = vmul.f32 %v6484, 0.16666667
      %v6517 = vmul.f32 %v6263, %v6485
      %v6518 = vmul.f32 %v6267, %v6486
      %v6519 = vmul.f32 %v6271, %v6487
      %v6520 = vmul.f32 %v6275, %v6488
      %v6521 = vmul.f32 %v6279, %v6489
      %v6522 = vmul.f32 %v6283, %v6490
      %v6523 = vmul.f32 %v6287, %v6491
      %v6524 = vmul.f32 %v6291, %v6492
      %v6525 = vmul.f32 %v6295, %v6493
      %v6526 = vmul.f32 %v6299, %v6494
      %v6527 = vmul.f32 %v6303, %v6495
      %v6528 = vmul.f32 %v6307, %v6496
      %v6529 = vmul.f32 %v6311, %v6497
      %v6530 = vmul.f32 %v6315, %v6498
      %v6531 = vmul.f32 %v6319, %v6499
      %v6532 = vmul.f32 %v6323, %v6500
      %v6533 = vmul.f32 %v6327, %v6501
      %v6534 = vmul.f32 %v6331, %v6502
      %v6535 = vmul.f32 %v6335, %v6503
      %v6536 = vmul.f32 %v6339, %v6504
      %v6537 = vmul.f32 %v6343, %v6505
      %v6538 = vmul.f32 %v6347, %v6506
      %v6539 = vmul.f32 %v6351, %v6507
      %v6540 = vmul.f32 %v6355, %v6508
      %v6541 = vmul.f32 %v6359, %v6509
      %v6542 = vmul.f32 %v6363, %v6510
      %v6543 = vmul.f32 %v6367, %v6511
      %v6544 = vmul.f32 %v6371, %v6512
      %v6545 = vmul.f32 %v6375, %v6513
      %v6546 = vmul.f32 %v6379, %v6514
      %v6547 = vmul.f32 %v6383, %v6515
      %v6548 = vmul.f32 %v6387, %v6516
      %v6549 = vrot.slane %v417, 1
      %v6550 = vrot.slane %v418, 1
      %v6551 = vsel %vm3241, %v6549, %v6550
      %v6552 = vrot.slane %v419, 1
      %v6553 = vsel %vm3241, %v6550, %v6552
      %v6554 = vrot.slane %v420, 1
      %v6555 = vrot.slane %v421, 1
      %v6556 = vsel %vm3241, %v6554, %v6555
      %v6557 = vrot.slane %v422, 1
      %v6558 = vsel %vm3241, %v6555, %v6557
      %v6559 = vrot.slane %v423, 1
      %v6560 = vrot.slane %v424, 1
      %v6561 = vsel %vm3241, %v6559, %v6560
      %v6562 = vrot.slane %v425, 1
      %v6563 = vsel %vm3241, %v6560, %v6562
      %v6564 = vrot.slane %v426, 1
      %v6565 = vrot.slane %v427, 1
      %v6566 = vsel %vm3241, %v6564, %v6565
      %v6567 = vrot.slane %v428, 1
      %v6568 = vsel %vm3241, %v6565, %v6567
      %v6569 = vrot.slane %v429, 1
      %v6570 = vrot.slane %v430, 1
      %v6571 = vsel %vm3241, %v6569, %v6570
      %v6572 = vrot.slane %v431, 1
      %v6573 = vsel %vm3241, %v6570, %v6572
      %v6574 = vrot.slane %v432, 1
      %v6575 = vrot.slane %v433, 1
      %v6576 = vsel %vm3241, %v6574, %v6575
      %v6577 = vrot.slane %v434, 1
      %v6578 = vsel %vm3241, %v6575, %v6577
      %v6579 = vrot.slane %v435, 1
      %v6580 = vrot.slane %v436, 1
      %v6581 = vsel %vm3241, %v6579, %v6580
      %v6582 = vrot.slane %v437, 1
      %v6583 = vsel %vm3241, %v6580, %v6582
      %v6584 = vrot.slane %v438, 1
      %v6585 = vrot.slane %v439, 1
      %v6586 = vsel %vm3241, %v6584, %v6585
      %v6587 = vrot.slane %v440, 1
      %v6588 = vsel %vm3241, %v6585, %v6587
      %v6589 = vrot.slane %v441, 1
      %v6590 = vrot.slane %v442, 1
      %v6591 = vsel %vm3241, %v6589, %v6590
      %v6592 = vrot.slane %v443, 1
      %v6593 = vsel %vm3241, %v6590, %v6592
      %v6594 = vrot.slane %v444, 1
      %v6595 = vrot.slane %v445, 1
      %v6596 = vsel %vm3241, %v6594, %v6595
      %v6597 = vrot.slane %v446, 1
      %v6598 = vsel %vm3241, %v6595, %v6597
      %v6599 = vrot.slane %v447, 1
      %v6600 = vrot.slane %v448, 1
      %v6601 = vsel %vm3241, %v6599, %v6600
      %v6602 = vrot.slane %v449, 1
      %v6603 = vsel %vm3241, %v6600, %v6602
      %v6604 = vrot.slane %v450, 1
      %v6605 = vrot.slane %v451, 1
      %v6606 = vsel %vm3241, %v6604, %v6605
      %v6607 = vrot.slane %v452, 1
      %v6608 = vsel %vm3241, %v6605, %v6607
      %v6609 = vrot.slane %v453, 1
      %v6610 = vrot.slane %v454, 1
      %v6611 = vsel %vm3241, %v6609, %v6610
      %v6612 = vrot.slane %v455, 1
      %v6613 = vsel %vm3241, %v6610, %v6612
      %v6614 = vrot.slane %v456, 1
      %v6615 = vrot.slane %v457, 1
      %v6616 = vsel %vm3241, %v6614, %v6615
      %v6617 = vrot.slane %v458, 1
      %v6618 = vsel %vm3241, %v6615, %v6617
      %v6619 = vrot.slane %v459, 1
      %v6620 = vrot.slane %v460, 1
      %v6621 = vsel %vm3241, %v6619, %v6620
      %v6622 = vrot.slane %v461, 1
      %v6623 = vsel %vm3241, %v6620, %v6622
      %v6624 = vrot.slane %v462, 1
      %v6625 = vrot.slane %v463, 1
      %v6626 = vsel %vm3241, %v6624, %v6625
      %v6627 = vrot.slane %v464, 1
      %v6628 = vsel %vm3241, %v6625, %v6627
      %v6661 = vadd.f32 %v6517, %v6551
      %v6662 = vadd.f32 %v6518, %v6553
      %v6663 = vadd.f32 %v6519, %v6556
      %v6664 = vadd.f32 %v6520, %v6558
      %v6665 = vadd.f32 %v6521, %v6561
      %v6666 = vadd.f32 %v6522, %v6563
      %v6667 = vadd.f32 %v6523, %v6566
      %v6668 = vadd.f32 %v6524, %v6568
      %v6669 = vadd.f32 %v6525, %v6571
      %v6670 = vadd.f32 %v6526, %v6573
      %v6671 = vadd.f32 %v6527, %v6576
      %v6672 = vadd.f32 %v6528, %v6578
      %v6673 = vadd.f32 %v6529, %v6581
      %v6674 = vadd.f32 %v6530, %v6583
      %v6675 = vadd.f32 %v6531, %v6586
      %v6676 = vadd.f32 %v6532, %v6588
      %v6677 = vadd.f32 %v6533, %v6591
      %v6678 = vadd.f32 %v6534, %v6593
      %v6679 = vadd.f32 %v6535, %v6596
      %v6680 = vadd.f32 %v6536, %v6598
      %v6681 = vadd.f32 %v6537, %v6601
      %v6682 = vadd.f32 %v6538, %v6603
      %v6683 = vadd.f32 %v6539, %v6606
      %v6684 = vadd.f32 %v6540, %v6608
      %v6685 = vadd.f32 %v6541, %v6611
      %v6686 = vadd.f32 %v6542, %v6613
      %v6687 = vadd.f32 %v6543, %v6616
      %v6688 = vadd.f32 %v6544, %v6618
      %v6689 = vadd.f32 %v6545, %v6621
      %v6690 = vadd.f32 %v6546, %v6623
      %v6691 = vadd.f32 %v6547, %v6626
      %v6692 = vadd.f32 %v6548, %v6628
      %6693 = vst.msk [vmem:[%s413] sm:$0xff] %vm473, %v6661
      %6694 = vst.msk [vmem:[%s413 + $0x8] sm:$0xff] %vm473, %v6662
      %6695 = vst.msk [vmem:[%s413 + $0x10] sm:$0xff] %vm473, %v6663
      %6696 = vst.msk [vmem:[%s413 + $0x18] sm:$0xff] %vm473, %v6664
      %6697 = vst.msk [vmem:[%s413 + $0x20] sm:$0xff] %vm473, %v6665
      %6698 = vst.msk [vmem:[%s413 + $0x28] sm:$0xff] %vm473, %v6666
      %6699 = vst.msk [vmem:[%s413 + $0x30] sm:$0xff] %vm473, %v6667
      %6700 = vst.msk [vmem:[%s413 + $0x38] sm:$0xff] %vm473, %v6668
      %6701 = vst.msk [vmem:[%s413 + $0x40] sm:$0xff] %vm473, %v6669
      %6702 = vst.msk [vmem:[%s413 + $0x48] sm:$0xff] %vm473, %v6670
      %6703 = vst.msk [vmem:[%s413 + $0x50] sm:$0xff] %vm473, %v6671
      %6704 = vst.msk [vmem:[%s413 + $0x58] sm:$0xff] %vm473, %v6672
      %6705 = vst.msk [vmem:[%s413 + $0x60] sm:$0xff] %vm473, %v6673
      %6706 = vst.msk [vmem:[%s413 + $0x68] sm:$0xff] %vm473, %v6674
      %6707 = vst.msk [vmem:[%s413 + $0x70] sm:$0xff] %vm473, %v6675
      %6708 = vst.msk [vmem:[%s413 + $0x78] sm:$0xff] %vm473, %v6676
      %6709 = vst.msk [vmem:[%s413 + $0x80] sm:$0xff] %vm473, %v6677
      %6710 = vst.msk [vmem:[%s413 + $0x88] sm:$0xff] %vm473, %v6678
      %6711 = vst.msk [vmem:[%s413 + $0x90] sm:$0xff] %vm473, %v6679
      %6712 = vst.msk [vmem:[%s413 + $0x98] sm:$0xff] %vm473, %v6680
      %6713 = vst.msk [vmem:[%s413 + $0xa0] sm:$0xff] %vm473, %v6681
      %6714 = vst.msk [vmem:[%s413 + $0xa8] sm:$0xff] %vm473, %v6682
      %6715 = vst.msk [vmem:[%s413 + $0xb0] sm:$0xff] %vm473, %v6683
      %6716 = vst.msk [vmem:[%s413 + $0xb8] sm:$0xff] %vm473, %v6684
      %6717 = vst.msk [vmem:[%s413 + $0xc0] sm:$0xff] %vm473, %v6685
      %6718 = vst.msk [vmem:[%s413 + $0xc8] sm:$0xff] %vm473, %v6686
      %6719 = vst.msk [vmem:[%s413 + $0xd0] sm:$0xff] %vm473, %v6687
      %6720 = vst.msk [vmem:[%s413 + $0xd8] sm:$0xff] %vm473, %v6688
      %6721 = vst.msk [vmem:[%s413 + $0xe0] sm:$0xff] %vm473, %v6689
      %6722 = vst.msk [vmem:[%s413 + $0xe8] sm:$0xff] %vm473, %v6690
      %6723 = vst.msk [vmem:[%s413 + $0xf0] sm:$0xff] %vm473, %v6691
      %6724 = vst.msk [vmem:[%s413 + $0xf8] sm:$0xff] %vm473, %v6692
      %p6725 = scmp.lt.s32.totalorder %s23, 1
      %s6726 = scalar_select %p6725, %s23, 1
      %s6727 = smul.addr %s6726, 32
      %s6728 = smul.addr %s6727, 8
      %s6729 = scalar_lea.vmem %s12, %s6728
      // Predicated region
      $region69: #{tpu_custom_call.1} parent=67 // pred_check
        %p6730 = pneg %p298
      $region70: #{tpu_custom_call.1} parent=67 // pred_check_branch
        %6732 = sbr.rel (%p6730) target = $region72
      $region71: #{tpu_custom_call.1} parent=67 // pred_region
        _
      $region72: #{tpu_custom_call.1} parent=67 // pred_fallthru
        _
    $region68: #{tpu_custom_call.1} parent=5 // pred_fallthru
      _
    %p6733 = scmp.le.s32.totalorder 2, %s18
    // Predicated region
    $region73: #{tpu_custom_call.1} parent=5 // pred_check
      %p6734 = pneg %p6733
    $region74: #{tpu_custom_call.1} parent=5 // pred_check_branch
      %6736 = sbr.rel (%p6734) target = $region76
    $region75: #{tpu_custom_call.1} parent=5 // pred_region
      %s6737 = ssub.s32 %s18, 2
      // Predicated region
      $region77: #{tpu_custom_call.1} parent=75 // pred_check
        %p6738 = pneg %p304
      $region78: #{tpu_custom_call.1} parent=75 // pred_check_branch
        %6740 = sbr.rel (%p6738) target = $region80
      $region79: #{tpu_custom_call.1} parent=75 // pred_region
        %p6741 = scmp.lt.s32.totalorder %s24, 1
        %s6742 = scalar_select %p6741, %s24, 1
        %s6743 = smul.addr %s6742, 32
        %s6744 = smul.addr %s6743, 8
        %s6745 = scalar_lea.vmem %s12, %s6744
      $region80: #{tpu_custom_call.1} parent=75 // pred_fallthru
        _
    $region76: #{tpu_custom_call.1} parent=5 // pred_fallthru
      _
  $region6: #{tpu_custom_call.1} parent=0 // loop_footer
    %s22 = sadd.s32 1, %s18
  $region7: #{tpu_custom_call.1} parent=0 // loop_footer_branch
    %17 = sbr.rel target = $region3
  $region8: #{tpu_custom_call.1} parent=0 // loop_exit
    _

</llo_original>
